<compile_context>
chip_gen: v5e
topology: v5e:2x2
jax: 0.10.0
libtpu: 0.0.40
codegen_flags: <defaults>
</compile_context>

<pallas_src>
import jax
import jax.numpy as jnp
from jax.experimental import pallas as pl
from jax.experimental.pallas import tpu as pltpu

# ---- small, module-consistent shapes ---------------------------------------
B, T = 2, 8                # batch, sequence length
D_IN = 16                  # final_task_params['input_dim']
HID = 32                   # final_task_params['hidden_dim']
N_LAYERS = 2               # final_task_params['n_layers'] (kernel specialized to 2)
UNITS = 64                 # attention_units
N_DIR = 2                  # bidirectional
OUT_DIM = 1

H = HID
W_BLOB = 6 * H             # 192 lanes: width of the packed parameter blob

# ---- row offsets into the single packed parameter blob ----------------------
R_WIH0 = 0                         # (2*D_IN, 192)
R_WHH0 = R_WIH0 + 2 * D_IN         # (2H, 192)
R_WIH1 = R_WHH0 + 2 * H            # (4H, 192)
R_WHH1 = R_WIH1 + 4 * H            # (2H, 192)
R_W1 = R_WHH1 + 2 * H              # (2H, UNITS) in cols 0:UNITS
R_W2 = R_W1 + 2 * H                # (D_IN, UNITS)
R_BGI0 = R_W2 + D_IN               # (1, 192)  gi bias layer 0 (bhh_r/z folded in)
R_BGI1 = R_BGI0 + 1                # (1, 192)
R_BHN0 = R_BGI1 + 1                # (1, 2H)   bhh_n layer 0
R_BHN1 = R_BHN0 + 1                # (1, 2H)
R_B1 = R_BHN1 + 1                  # (1, UNITS)
R_B2 = R_B1 + 1                    # (1, UNITS)
R_V = R_B2 + 1                     # (1, UNITS)
R_WFC = R_V + 1                    # (1, D_IN + 2H)
R_MISC = R_WFC + 1                 # col 0: bv, col 1: bfc
N_PROWS = R_MISC + 1               # 377 (padded to a multiple of 8 in prepack)


# =============================================================================
# Fused kernel: 2-layer bidirectional GRU + additive attention + fc head
# =============================================================================
def _make_kernel(has_mask):
    H2, H4, H6 = 2 * H, 4 * H, 6 * H

    def kernel(*refs):
        if has_mask:
            x_ref, mask_ref, p_ref, out_ref = refs
        else:
            x_ref, p_ref, out_ref = refs

        B_, T_, D_ = x_ref.shape
        x = x_ref[...]                                         # (B, T, D)

        # ---- static slices into the single packed parameter blob ----
        wih0 = p_ref[R_WIH0:R_WIH0 + 2 * D_, :]                # (2D, 6H)
        whh0 = p_ref[R_WHH0:R_WHH0 + H2, :]                    # (2H, 6H) block-diag
        wih1 = p_ref[R_WIH1:R_WIH1 + H4, :]                    # (4H, 6H)
        whh1 = p_ref[R_WHH1:R_WHH1 + H2, :]                    # (2H, 6H) block-diag
        w1 = p_ref[R_W1:R_W1 + H2, :UNITS]                     # (2H, U)
        w2 = p_ref[R_W2:R_W2 + D_, :UNITS]                     # (D, U)
        bgi0 = p_ref[R_BGI0:R_BGI0 + 1, :]                     # (1, 6H)
        bgi1 = p_ref[R_BGI1:R_BGI1 + 1, :]                     # (1, 6H)
        bhn0 = p_ref[R_BHN0:R_BHN0 + 1, :H2]                   # (1, 2H)
        bhn1 = p_ref[R_BHN1:R_BHN1 + 1, :H2]                   # (1, 2H)
        b1 = p_ref[R_B1:R_B1 + 1, :UNITS]                      # (1, U)
        b2 = p_ref[R_B2:R_B2 + 1, :UNITS]                      # (1, U)
        v_row = p_ref[R_V:R_V + 1, :UNITS]                     # (1, U)
        wfc = p_ref[R_WFC:R_WFC + 1, :D_ + H2]                 # (1, D+2H)
        bv = p_ref[R_MISC:R_MISC + 1, 0:1]                     # (1, 1)
        bfc = p_ref[R_MISC:R_MISC + 1, 1:2]                    # (1, 1)

        def run_layer(gi, whh, bhn, collect):
            # Fused bidirectional recurrence: state h = [h_fwd | h_bwd]  (B, 2H).
            # Gate column order of gi/gh: [r_f, r_b, z_f, z_b, n_f, n_b].
            # One matmul + one 128-lane sigmoid + one tanh per step.
            bhn_b = jnp.broadcast_to(bhn, (B_, H2))            # hoisted broadcast
            h = jnp.zeros((B_, H2), jnp.float32)
            hs = []
            for t in range(T_):                                # fully unrolled, static T
                g = gi[:, t, :]                                # (B, 6H) step-aligned
                gh = jnp.dot(h, whh, preferred_element_type=jnp.float32)
                rz = jax.nn.sigmoid(g[:, :H4] + gh[:, :H4])    # (B, 4H): one vreg
                r = rz[:, :H2]
                z = rz[:, H2:]
                n = jnp.tanh(g[:, H4:] + r * (gh[:, H4:] + bhn_b))
                h = n + z * (h - n)                            # == (1-z)*n + z*h
                if collect:
                    hs.append(h)
            return h, hs

        # ---- layer 0: hoisted input projection, ONE matmul for both directions.
        # Row t of the doubled input = [x(t) | x(T-1-t)]; the packed Wih0 routes
        # the first half to forward-gate columns and the second to backward ones.
        xt = [x[:, t, :] for t in range(T_)]
        x2 = jnp.stack([jnp.concatenate([xt[t], xt[T_ - 1 - t]], axis=-1)
                        for t in range(T_)], axis=1)           # (B, T, 2D)
        gi0 = (jnp.dot(x2.reshape(B_ * T_, 2 * D_), wih0,
                       preferred_element_type=jnp.float32)
               + bgi0).reshape(B_, T_, H6)
        _, hs0 = run_layer(gi0, whh0, bhn0, True)

        # ---- layer 1: input row t = [state(t) | state(T-1-t)].  Layer-0 states
        # stay in registers (traced values) -> no scratch stores / reloads.
        x2l1 = jnp.stack([jnp.concatenate([hs0[t], hs0[T_ - 1 - t]], axis=-1)
                          for t in range(T_)], axis=1)         # (B, T, 4H)
        gi1 = (jnp.dot(x2l1.reshape(B_ * T_, H4), wih1,
                       preferred_element_type=jnp.float32)
               + bgi1).reshape(B_, T_, H6)
        h1, _ = run_layer(gi1, whh1, bhn1, False)
        # dec_hidden = cat(h_n[-2], h_n[-1]) == h1 (already [fwd | bwd] ordered)

        # ---- additive attention over the ORIGINAL x ----
        a = jnp.dot(h1, w1, preferred_element_type=jnp.float32) + b1      # (B, U)
        b2x = (jnp.dot(x.reshape(B_ * T_, D_), w2,
                       preferred_element_type=jnp.float32)
               + b2).reshape(B_, T_, UNITS)                                # (B, T, U)
        s = jnp.tanh(a[:, None, :] + b2x)                                  # (B, T, U)
        # V projection (N=1): VPU multiply + lane reduction, no MXU
        scores = jnp.sum(s * v_row.reshape(1, 1, UNITS), axis=-1,
                         keepdims=True) + bv                               # (B, T, 1)
        if has_mask:
            scores = scores + mask_ref[...] * (-10000.0)
        m = jnp.max(scores, axis=1, keepdims=True)
        e = jnp.exp(scores - m)
        attn = e / jnp.sum(e, axis=1, keepdims=True)                       # (B, T, 1)
        context = jnp.sum(attn * x, axis=1)                                # (B, D)

        # ---- fc head (output_dim == 1): VPU multiply + lane reduction ----
        out = (jnp.sum(context * wfc[:, :D_], axis=-1, keepdims=True)
               + jnp.sum(h1 * wfc[:, D_:], axis=-1, keepdims=True)
               + bfc)                                                      # (B, 1)
        out_ref[...] = out

    return kernel


# =============================================================================
# Parameter init (deterministic, PyTorch-style uniform(-1/sqrt(fan), +))
# =============================================================================
def _uniform(key, shape, fan):
    bound = 1.0 / jnp.sqrt(jnp.float32(fan))
    return jax.random.uniform(key, shape, jnp.float32, -bound, bound)


def init_params(key):
    params = {'gru': {}, 'attn': {}}
    for l in range(N_LAYERS):
        in_dim = D_IN if l == 0 else N_DIR * HID
        for d in range(N_DIR):
            key, k1, k2, k3, k4 = jax.random.split(key, 5)
            params['gru'][(l, d)] = (
                _uniform(k1, (3 * HID, in_dim), HID),   # weight_ih
                _uniform(k2, (3 * HID, HID), HID),      # weight_hh
                _uniform(k3, (3 * HID,), HID),          # bias_ih
                _uniform(k4, (3 * HID,), HID),          # bias_hh
            )
    key, k1, k2, k3, k4, k5, k6, k7, k8 = jax.random.split(key, 9)
    params['attn'] = {
        'w1': _uniform(k1, (UNITS, N_DIR * HID), N_DIR * HID),
        'b1': _uniform(k2, (UNITS,), N_DIR * HID),
        'w2': _uniform(k3, (UNITS, D_IN), D_IN),
        'b2': _uniform(k4, (UNITS,), D_IN),
        'v': _uniform(k5, (1, UNITS), UNITS),
        'bv': _uniform(k6, (1,), UNITS),
    }
    fc_in = D_IN + N_DIR * HID
    params['fc_w'] = _uniform(k7, (OUT_DIM, fc_in), fc_in)
    params['fc_b'] = _uniform(k8, (OUT_DIM,), fc_in)
    return params


# =============================================================================
# One-time weight pre-packing into a single lane-dense (N_rows, 192) blob.
# Gate column order everywhere: [r_f, r_b, z_f, z_b, n_f, n_b].
# =============================================================================
def prepack_params(params):
    g = params['gru']

    def split3(w):
        return w[:H], w[H:2 * H], w[2 * H:]

    def pack_whh(whh_f, whh_b):
        # block-diagonal (2H, 6H): rows 0:H act on h_f, rows H:2H act on h_b
        rf, zf, nf = split3(whh_f)
        rb, zb, nb = split3(whh_b)
        Z = jnp.zeros((H, H), jnp.float32)
        top = jnp.concatenate([rf.T, Z, zf.T, Z, nf.T, Z], axis=1)
        bot = jnp.concatenate([Z, rb.T, Z, zb.T, Z, nb.T], axis=1)
        return jnp.concatenate([top, bot], axis=0)                  # (2H, 6H)

    def pack_wih0(wih_f, wih_b):
        # input row layout at step t: [x(t) (D) | x(T-1-t) (D)]
        rf, zf, nf = split3(wih_f)                                  # (H, D)
        rb, zb, nb = split3(wih_b)
        Z = jnp.zeros((D_IN, H), jnp.float32)
        top = jnp.concatenate([rf.T, Z, zf.T, Z, nf.T, Z], axis=1)  # x(t) -> fwd gates
        bot = jnp.concatenate([Z, rb.T, Z, zb.T, Z, nb.T], axis=1)  # x(T-1-t) -> bwd
        return jnp.concatenate([top, bot], axis=0)                  # (2D, 6H)

    def pack_wih1(wih_f, wih_b):
        # input row layout at step t (from fused layer-0 states):
        #   [h0_f(t) | h0_b(T-1-t) | h0_f(T-1-t) | h0_b(t)]   (4H columns)
        rf, zf, nf = split3(wih_f)                                  # (H, 2H)
        rb, zb, nb = split3(wih_b)
        Z = jnp.zeros((H, H), jnp.float32)
        r0 = jnp.concatenate([rf[:, :H].T, Z, zf[:, :H].T, Z, nf[:, :H].T, Z], axis=1)
        r1 = jnp.concatenate([Z, rb[:, H:].T, Z, zb[:, H:].T, Z, nb[:, H:].T], axis=1)
        r2 = jnp.concatenate([Z, rb[:, :H].T, Z, zb[:, :H].T, Z, nb[:, :H].T], axis=1)
        r3 = jnp.concatenate([rf[:, H:].T, Z, zf[:, H:].T, Z, nf[:, H:].T, Z], axis=1)
        return jnp.concatenate([r0, r1, r2, r3], axis=0)            # (4H, 6H)

    def pack_bias(bih_f, bih_b, bhh_f, bhh_b):
        # fold bhh_{r,z} into the gi bias; keep bhh_n separate (it sits inside r*()).
        rfi, zfi, nfi = split3(bih_f)
        rbi, zbi, nbi = split3(bih_b)
        rfh, zfh, nfh = split3(bhh_f)
        rbh, zbh, nbh = split3(bhh_b)
        bgi = jnp.concatenate([rfi + rfh, rbi + rbh, zfi + zfh, zbi + zbh, nfi, nbi])
        bhn = jnp.concatenate([nfh, nbh])
        return bgi[None, :], bhn[None, :]

    wihf0, whhf0, bihf0, bhhf0 = g[(0, 0)]
    wihb0, whhb0, bihb0, bhhb0 = g[(0, 1)]
    wihf1, whhf1, bihf1, bhhf1 = g[(1, 0)]
    wihb1, whhb1, bihb1, bhhb1 = g[(1, 1)]

    wih0 = pack_wih0(wihf0, wihb0)
    whh0 = pack_whh(whhf0, whhb0)
    wih1 = pack_wih1(wihf1, wihb1)
    whh1 = pack_whh(whhf1, whhb1)
    bgi0, bhn0 = pack_bias(bihf0, bihb0, bhhf0, bhhb0)
    bgi1, bhn1 = pack_bias(bihf1, bihb1, bhhf1, bhhb1)

    p = params['attn']

    def pad_w(a):
        a = a.astype(jnp.float32)
        return jnp.pad(a, ((0, 0), (0, W_BLOB - a.shape[1])))

    misc = jnp.zeros((1, W_BLOB), jnp.float32)
    misc = misc.at[0, 0].set(p['bv'][0]).at[0, 1].set(params['fc_b'][0])

    rows = [
        pad_w(wih0), pad_w(whh0), pad_w(wih1), pad_w(whh1),
        pad_w(p['w1'].T), pad_w(p['w2'].T),
        pad_w(bgi0), pad_w(bgi1), pad_w(bhn0), pad_w(bhn1),
        pad_w(p['b1'][None, :]), pad_w(p['b2'][None, :]),
        pad_w(p['v']), pad_w(params['fc_w']), misc,
    ]
    blob = jnp.concatenate(rows, axis=0)
    assert blob.shape[0] == N_PROWS
    pad_r = (-blob.shape[0]) % 8
    if pad_r:
        blob = jnp.pad(blob, ((0, pad_r), (0, 0)))
    return blob


# =============================================================================
# Forward pass: a single fused pallas_call (2 or 3 inputs total)
# =============================================================================
def gru_classifier_forward(x, param_blob, attention_mask=None):
    Bn, Tn, _ = x.shape
    has_mask = attention_mask is not None
    args = [x]
    if has_mask:
        mask = attention_mask.astype(jnp.float32)
        if mask.ndim == 2:
            mask = mask[:, :, None]
        args.append(mask)
    args.append(param_blob)

    vm = pl.BlockSpec(memory_space=pltpu.MemorySpace.VMEM)
    return pl.pallas_call(
        _make_kernel(has_mask),
        out_shape=jax.ShapeDtypeStruct((Bn, OUT_DIM), jnp.float32),
        in_specs=[vm] * len(args),
        out_specs=vm,
    )(*args)


# =============================================================================
# Pure-JAX reference (for correctness check)
# =============================================================================
def _gru_cell_ref(x_t, h, wih, whh, bih, bhh):
    gi = x_t @ wih.T + bih
    gh = h @ whh.T + bhh
    r = jax.nn.sigmoid(gi[:, :H] + gh[:, :H])
    z = jax.nn.sigmoid(gi[:, H:2 * H] + gh[:, H:2 * H])
    n = jnp.tanh(gi[:, 2 * H:] + r * gh[:, 2 * H:])
    return (1.0 - z) * n + z * h


def ref_forward(x, params):
    inp = x
    finals = []
    for l in range(N_LAYERS):
        outs, finals = [], []
        for d in range(N_DIR):
            xi = inp if d == 0 else inp[:, ::-1, :]
            wih, whh, bih, bhh = params['gru'][(l, d)]
            h = jnp.zeros((x.shape[0], HID), jnp.float32)
            seq = []
            for t in range(xi.shape[1]):
                h = _gru_cell_ref(xi[:, t, :], h, wih, whh, bih, bhh)
                seq.append(h)
            seq = jnp.stack(seq, axis=1)
            if d == 1:
                seq = seq[:, ::-1, :]
            outs.append(seq)
            finals.append(h)
        inp = jnp.concatenate(outs, axis=-1)
    dech = jnp.concatenate(finals, axis=-1)
    p = params['attn']
    a = dech @ p['w1'].T + p['b1']
    b = jnp.einsum('btd,ud->btu', x, p['w2']) + p['b2']
    s = jnp.tanh(a[:, None, :] + b)
    scores = jnp.einsum('btu,ou->bto', s, p['v']) + p['bv']
    attn = jax.nn.softmax(scores, axis=1)
    context = jnp.sum(attn * x, axis=1)
    feats = jnp.concatenate([context, dech], axis=-1)
    return feats @ params['fc_w'].T + params['fc_b']


if __name__ == "__main__":
    key = jax.random.PRNGKey(0)
    kx, kp = jax.random.split(key)
    x = jax.random.normal(kx, (B, T, D_IN), jnp.float32)
    params = init_params(kp)
    blob = prepack_params(params)

    out = jax.block_until_ready(gru_classifier_forward(x, blob))        # (B, 1)
    ref = jax.block_until_ready(ref_forward(x, params))
    assert out.shape == (B, OUT_DIM)
    assert jnp.allclose(out, ref, atol=1e-4, rtol=1e-4), (out, ref)

    # zero mask must reproduce the unmasked result (exercises the mask-specialized kernel)
    out_m = jax.block_until_ready(
        gru_classifier_forward(x, blob, attention_mask=jnp.zeros((B, T), jnp.float32)))
    assert jnp.allclose(out_m, out, atol=1e-5, rtol=1e-5), (out_m, out)

    print("KERNEL_OK")
</pallas_src>

<mosaic_0001>
module attributes {stable_mosaic.version = 11 : i64} {
  func.func @kernel(%arg0: memref<2x8x16xf32, #tpu.memory_space<vmem>>, %arg1: memref<384x192xf32, #tpu.memory_space<vmem>>, %arg2: memref<2x1xf32, #tpu.memory_space<vmem>>) attributes {dimension_semantics = [], scalar_prefetch = 0 : i64, scratch_operands = 0 : i64, tpu.core_type = #tpu.core_type<tc>} {
    %c0 = arith.constant 0 : index
    %c0_0 = arith.constant 0 : index
    %c0_1 = arith.constant 0 : index
    %0 = vector.load %arg0[%c0, %c0_0, %c0_1] : memref<2x8x16xf32, #tpu.memory_space<vmem>>, vector<2x8x16xf32>
    %c0_2 = arith.constant 0 : index
    %c0_3 = arith.constant 0 : index
    %1 = vector.load %arg1[%c0_2, %c0_3] : memref<384x192xf32, #tpu.memory_space<vmem>>, vector<32x192xf32>
    %c32 = arith.constant 32 : index
    %c0_4 = arith.constant 0 : index
    %2 = vector.load %arg1[%c32, %c0_4] : memref<384x192xf32, #tpu.memory_space<vmem>>, vector<64x192xf32>
    %c96 = arith.constant 96 : index
    %c0_5 = arith.constant 0 : index
    %3 = vector.load %arg1[%c96, %c0_5] : memref<384x192xf32, #tpu.memory_space<vmem>>, vector<128x192xf32>
    %c224 = arith.constant 224 : index
    %c0_6 = arith.constant 0 : index
    %4 = vector.load %arg1[%c224, %c0_6] : memref<384x192xf32, #tpu.memory_space<vmem>>, vector<64x192xf32>
    %c288 = arith.constant 288 : index
    %c0_7 = arith.constant 0 : index
    %5 = vector.load %arg1[%c288, %c0_7] : memref<384x192xf32, #tpu.memory_space<vmem>>, vector<64x64xf32>
    %c352 = arith.constant 352 : index
    %c0_8 = arith.constant 0 : index
    %6 = vector.load %arg1[%c352, %c0_8] : memref<384x192xf32, #tpu.memory_space<vmem>>, vector<16x64xf32>
    %c368 = arith.constant 368 : index
    %c0_9 = arith.constant 0 : index
    %7 = vector.load %arg1[%c368, %c0_9] : memref<384x192xf32, #tpu.memory_space<vmem>>, vector<1x192xf32>
    %c369 = arith.constant 369 : index
    %c0_10 = arith.constant 0 : index
    %8 = vector.load %arg1[%c369, %c0_10] : memref<384x192xf32, #tpu.memory_space<vmem>>, vector<1x192xf32>
    %c370 = arith.constant 370 : index
    %c0_11 = arith.constant 0 : index
    %9 = vector.load %arg1[%c370, %c0_11] : memref<384x192xf32, #tpu.memory_space<vmem>>, vector<1x64xf32>
    %c371 = arith.constant 371 : index
    %c0_12 = arith.constant 0 : index
    %10 = vector.load %arg1[%c371, %c0_12] : memref<384x192xf32, #tpu.memory_space<vmem>>, vector<1x64xf32>
    %c372 = arith.constant 372 : index
    %c0_13 = arith.constant 0 : index
    %11 = vector.load %arg1[%c372, %c0_13] : memref<384x192xf32, #tpu.memory_space<vmem>>, vector<1x64xf32>
    %c373 = arith.constant 373 : index
    %c0_14 = arith.constant 0 : index
    %12 = vector.load %arg1[%c373, %c0_14] : memref<384x192xf32, #tpu.memory_space<vmem>>, vector<1x64xf32>
    %c374 = arith.constant 374 : index
    %c0_15 = arith.constant 0 : index
    %13 = vector.load %arg1[%c374, %c0_15] : memref<384x192xf32, #tpu.memory_space<vmem>>, vector<1x64xf32>
    %c375 = arith.constant 375 : index
    %c0_16 = arith.constant 0 : index
    %14 = vector.load %arg1[%c375, %c0_16] : memref<384x192xf32, #tpu.memory_space<vmem>>, vector<1x80xf32>
    %c376 = arith.constant 376 : index
    %c0_17 = arith.constant 0 : index
    %15 = vector.load %arg1[%c376, %c0_17] : memref<384x192xf32, #tpu.memory_space<vmem>>, vector<1x1xf32>
    %c376_18 = arith.constant 376 : index
    %c1 = arith.constant 1 : index
    %16 = vector.load %arg1[%c376_18, %c1] : memref<384x192xf32, #tpu.memory_space<vmem>>, vector<1x1xf32>
    %17 = vector.extract_strided_slice %0 {offsets = [0, 0, 0], sizes = [2, 1, 16], strides = [1, 1, 1]} : vector<2x8x16xf32> to vector<2x1x16xf32>
    %18 = vector.shape_cast %17 : vector<2x1x16xf32> to vector<2x16xf32>
    %19 = vector.extract_strided_slice %0 {offsets = [0, 1, 0], sizes = [2, 1, 16], strides = [1, 1, 1]} : vector<2x8x16xf32> to vector<2x1x16xf32>
    %20 = vector.shape_cast %19 : vector<2x1x16xf32> to vector<2x16xf32>
    %21 = vector.extract_strided_slice %0 {offsets = [0, 2, 0], sizes = [2, 1, 16], strides = [1, 1, 1]} : vector<2x8x16xf32> to vector<2x1x16xf32>
    %22 = vector.shape_cast %21 : vector<2x1x16xf32> to vector<2x16xf32>
    %23 = vector.extract_strided_slice %0 {offsets = [0, 3, 0], sizes = [2, 1, 16], strides = [1, 1, 1]} : vector<2x8x16xf32> to vector<2x1x16xf32>
    %24 = vector.shape_cast %23 : vector<2x1x16xf32> to vector<2x16xf32>
    %25 = vector.extract_strided_slice %0 {offsets = [0, 4, 0], sizes = [2, 1, 16], strides = [1, 1, 1]} : vector<2x8x16xf32> to vector<2x1x16xf32>
    %26 = vector.shape_cast %25 : vector<2x1x16xf32> to vector<2x16xf32>
    %27 = vector.extract_strided_slice %0 {offsets = [0, 5, 0], sizes = [2, 1, 16], strides = [1, 1, 1]} : vector<2x8x16xf32> to vector<2x1x16xf32>
    %28 = vector.shape_cast %27 : vector<2x1x16xf32> to vector<2x16xf32>
    %29 = vector.extract_strided_slice %0 {offsets = [0, 6, 0], sizes = [2, 1, 16], strides = [1, 1, 1]} : vector<2x8x16xf32> to vector<2x1x16xf32>
    %30 = vector.shape_cast %29 : vector<2x1x16xf32> to vector<2x16xf32>
    %31 = vector.extract_strided_slice %0 {offsets = [0, 7, 0], sizes = [2, 1, 16], strides = [1, 1, 1]} : vector<2x8x16xf32> to vector<2x1x16xf32>
    %32 = vector.shape_cast %31 : vector<2x1x16xf32> to vector<2x16xf32>
    %33 = tpu.concatenate %18, %32 in 1 : vector<2x16xf32>, vector<2x16xf32> -> vector<2x32xf32>
    %34 = tpu.concatenate %20, %30 in 1 : vector<2x16xf32>, vector<2x16xf32> -> vector<2x32xf32>
    %35 = tpu.concatenate %22, %28 in 1 : vector<2x16xf32>, vector<2x16xf32> -> vector<2x32xf32>
    %36 = tpu.concatenate %24, %26 in 1 : vector<2x16xf32>, vector<2x16xf32> -> vector<2x32xf32>
    %37 = tpu.concatenate %26, %24 in 1 : vector<2x16xf32>, vector<2x16xf32> -> vector<2x32xf32>
    %38 = tpu.concatenate %28, %22 in 1 : vector<2x16xf32>, vector<2x16xf32> -> vector<2x32xf32>
    %39 = tpu.concatenate %30, %20 in 1 : vector<2x16xf32>, vector<2x16xf32> -> vector<2x32xf32>
    %40 = tpu.concatenate %32, %18 in 1 : vector<2x16xf32>, vector<2x16xf32> -> vector<2x32xf32>
    %41 = vector.shape_cast %33 : vector<2x32xf32> to vector<2x1x32xf32>
    %42 = vector.shape_cast %34 : vector<2x32xf32> to vector<2x1x32xf32>
    %43 = vector.shape_cast %35 : vector<2x32xf32> to vector<2x1x32xf32>
    %44 = vector.shape_cast %36 : vector<2x32xf32> to vector<2x1x32xf32>
    %45 = vector.shape_cast %37 : vector<2x32xf32> to vector<2x1x32xf32>
    %46 = vector.shape_cast %38 : vector<2x32xf32> to vector<2x1x32xf32>
    %47 = vector.shape_cast %39 : vector<2x32xf32> to vector<2x1x32xf32>
    %48 = vector.shape_cast %40 : vector<2x32xf32> to vector<2x1x32xf32>
    %49 = tpu.concatenate %41, %42, %43, %44, %45, %46, %47, %48 in 1 : vector<2x1x32xf32>, vector<2x1x32xf32>, vector<2x1x32xf32>, vector<2x1x32xf32>, vector<2x1x32xf32>, vector<2x1x32xf32>, vector<2x1x32xf32>, vector<2x1x32xf32> -> vector<2x8x32xf32>
    %50 = vector.shape_cast %49 : vector<2x8x32xf32> to vector<16x32xf32>
    %cst = arith.constant dense<0.000000e+00> : vector<16x192xf32>
    %51 = tpu.matmul %50, %1, %cst {dimension_numbers = #tpu.dot_dimension_numbers<[1], [0], [0], [1], [0, 0, 1, 1], [], []>} : vector<16x32xf32>, vector<32x192xf32>, vector<16x192xf32> -> vector<16x192xf32>
    %52 = vector.broadcast %7 : vector<1x192xf32> to vector<16x192xf32>
    %53 = arith.addf %51, %52 : vector<16x192xf32>
    %54 = vector.shape_cast %53 : vector<16x192xf32> to vector<2x8x192xf32>
    %55 = vector.shape_cast %9 : vector<1x64xf32> to vector<1x64xf32>
    %56 = vector.broadcast %55 : vector<1x64xf32> to vector<2x64xf32>
    %cst_19 = arith.constant 0.000000e+00 : f32
    %57 = vector.broadcast %cst_19 : f32 to vector<2x64xf32>
    %58 = vector.extract_strided_slice %54 {offsets = [0, 0, 0], sizes = [2, 1, 192], strides = [1, 1, 1]} : vector<2x8x192xf32> to vector<2x1x192xf32>
    %59 = vector.shape_cast %58 : vector<2x1x192xf32> to vector<2x192xf32>
    %cst_20 = arith.constant dense<0.000000e+00> : vector<2x192xf32>
    %60 = tpu.matmul %57, %2, %cst_20 {dimension_numbers = #tpu.dot_dimension_numbers<[1], [0], [0], [1], [0, 0, 1, 1], [], []>} : vector<2x64xf32>, vector<64x192xf32>, vector<2x192xf32> -> vector<2x192xf32>
    %61 = vector.extract_strided_slice %59 {offsets = [0, 0], sizes = [2, 128], strides = [1, 1]} : vector<2x192xf32> to vector<2x128xf32>
    %62 = vector.extract_strided_slice %60 {offsets = [0, 0], sizes = [2, 128], strides = [1, 1]} : vector<2x192xf32> to vector<2x128xf32>
    %63 = arith.addf %61, %62 : vector<2x128xf32>
    %64 = arith.negf %63 : vector<2x128xf32>
    %65 = math.exp %64 : vector<2x128xf32>
    %cst_21 = arith.constant 1.000000e+00 : f32
    %66 = vector.broadcast %cst_21 : f32 to vector<2x128xf32>
    %67 = arith.addf %66, %65 : vector<2x128xf32>
    %68 = arith.divf %66, %67 : vector<2x128xf32>
    %69 = vector.extract_strided_slice %68 {offsets = [0, 0], sizes = [2, 64], strides = [1, 1]} : vector<2x128xf32> to vector<2x64xf32>
    %70 = vector.extract_strided_slice %68 {offsets = [0, 64], sizes = [2, 64], strides = [1, 1]} : vector<2x128xf32> to vector<2x64xf32>
    %71 = vector.extract_strided_slice %59 {offsets = [0, 128], sizes = [2, 64], strides = [1, 1]} : vector<2x192xf32> to vector<2x64xf32>
    %72 = vector.extract_strided_slice %60 {offsets = [0, 128], sizes = [2, 64], strides = [1, 1]} : vector<2x192xf32> to vector<2x64xf32>
    %73 = arith.addf %72, %56 : vector<2x64xf32>
    %74 = arith.mulf %69, %73 : vector<2x64xf32>
    %75 = arith.addf %71, %74 : vector<2x64xf32>
    %76 = math.tanh %75 : vector<2x64xf32>
    %77 = arith.subf %57, %76 : vector<2x64xf32>
    %78 = arith.mulf %70, %77 : vector<2x64xf32>
    %79 = arith.addf %76, %78 : vector<2x64xf32>
    %80 = vector.extract_strided_slice %54 {offsets = [0, 1, 0], sizes = [2, 1, 192], strides = [1, 1, 1]} : vector<2x8x192xf32> to vector<2x1x192xf32>
    %81 = vector.shape_cast %80 : vector<2x1x192xf32> to vector<2x192xf32>
    %cst_22 = arith.constant dense<0.000000e+00> : vector<2x192xf32>
    %82 = tpu.matmul %79, %2, %cst_22 {dimension_numbers = #tpu.dot_dimension_numbers<[1], [0], [0], [1], [0, 0, 1, 1], [], []>} : vector<2x64xf32>, vector<64x192xf32>, vector<2x192xf32> -> vector<2x192xf32>
    %83 = vector.extract_strided_slice %81 {offsets = [0, 0], sizes = [2, 128], strides = [1, 1]} : vector<2x192xf32> to vector<2x128xf32>
    %84 = vector.extract_strided_slice %82 {offsets = [0, 0], sizes = [2, 128], strides = [1, 1]} : vector<2x192xf32> to vector<2x128xf32>
    %85 = arith.addf %83, %84 : vector<2x128xf32>
    %86 = arith.negf %85 : vector<2x128xf32>
    %87 = math.exp %86 : vector<2x128xf32>
    %cst_23 = arith.constant 1.000000e+00 : f32
    %88 = vector.broadcast %cst_23 : f32 to vector<2x128xf32>
    %89 = arith.addf %88, %87 : vector<2x128xf32>
    %90 = arith.divf %88, %89 : vector<2x128xf32>
    %91 = vector.extract_strided_slice %90 {offsets = [0, 0], sizes = [2, 64], strides = [1, 1]} : vector<2x128xf32> to vector<2x64xf32>
    %92 = vector.extract_strided_slice %90 {offsets = [0, 64], sizes = [2, 64], strides = [1, 1]} : vector<2x128xf32> to vector<2x64xf32>
    %93 = vector.extract_strided_slice %81 {offsets = [0, 128], sizes = [2, 64], strides = [1, 1]} : vector<2x192xf32> to vector<2x64xf32>
    %94 = vector.extract_strided_slice %82 {offsets = [0, 128], sizes = [2, 64], strides = [1, 1]} : vector<2x192xf32> to vector<2x64xf32>
    %95 = arith.addf %94, %56 : vector<2x64xf32>
    %96 = arith.mulf %91, %95 : vector<2x64xf32>
    %97 = arith.addf %93, %96 : vector<2x64xf32>
    %98 = math.tanh %97 : vector<2x64xf32>
    %99 = arith.subf %79, %98 : vector<2x64xf32>
    %100 = arith.mulf %92, %99 : vector<2x64xf32>
    %101 = arith.addf %98, %100 : vector<2x64xf32>
    %102 = vector.extract_strided_slice %54 {offsets = [0, 2, 0], sizes = [2, 1, 192], strides = [1, 1, 1]} : vector<2x8x192xf32> to vector<2x1x192xf32>
    %103 = vector.shape_cast %102 : vector<2x1x192xf32> to vector<2x192xf32>
    %cst_24 = arith.constant dense<0.000000e+00> : vector<2x192xf32>
    %104 = tpu.matmul %101, %2, %cst_24 {dimension_numbers = #tpu.dot_dimension_numbers<[1], [0], [0], [1], [0, 0, 1, 1], [], []>} : vector<2x64xf32>, vector<64x192xf32>, vector<2x192xf32> -> vector<2x192xf32>
    %105 = vector.extract_strided_slice %103 {offsets = [0, 0], sizes = [2, 128], strides = [1, 1]} : vector<2x192xf32> to vector<2x128xf32>
    %106 = vector.extract_strided_slice %104 {offsets = [0, 0], sizes = [2, 128], strides = [1, 1]} : vector<2x192xf32> to vector<2x128xf32>
    %107 = arith.addf %105, %106 : vector<2x128xf32>
    %108 = arith.negf %107 : vector<2x128xf32>
    %109 = math.exp %108 : vector<2x128xf32>
    %cst_25 = arith.constant 1.000000e+00 : f32
    %110 = vector.broadcast %cst_25 : f32 to vector<2x128xf32>
    %111 = arith.addf %110, %109 : vector<2x128xf32>
    %112 = arith.divf %110, %111 : vector<2x128xf32>
    %113 = vector.extract_strided_slice %112 {offsets = [0, 0], sizes = [2, 64], strides = [1, 1]} : vector<2x128xf32> to vector<2x64xf32>
    %114 = vector.extract_strided_slice %112 {offsets = [0, 64], sizes = [2, 64], strides = [1, 1]} : vector<2x128xf32> to vector<2x64xf32>
    %115 = vector.extract_strided_slice %103 {offsets = [0, 128], sizes = [2, 64], strides = [1, 1]} : vector<2x192xf32> to vector<2x64xf32>
    %116 = vector.extract_strided_slice %104 {offsets = [0, 128], sizes = [2, 64], strides = [1, 1]} : vector<2x192xf32> to vector<2x64xf32>
    %117 = arith.addf %116, %56 : vector<2x64xf32>
    %118 = arith.mulf %113, %117 : vector<2x64xf32>
    %119 = arith.addf %115, %118 : vector<2x64xf32>
    %120 = math.tanh %119 : vector<2x64xf32>
    %121 = arith.subf %101, %120 : vector<2x64xf32>
    %122 = arith.mulf %114, %121 : vector<2x64xf32>
    %123 = arith.addf %120, %122 : vector<2x64xf32>
    %124 = vector.extract_strided_slice %54 {offsets = [0, 3, 0], sizes = [2, 1, 192], strides = [1, 1, 1]} : vector<2x8x192xf32> to vector<2x1x192xf32>
    %125 = vector.shape_cast %124 : vector<2x1x192xf32> to vector<2x192xf32>
    %cst_26 = arith.constant dense<0.000000e+00> : vector<2x192xf32>
    %126 = tpu.matmul %123, %2, %cst_26 {dimension_numbers = #tpu.dot_dimension_numbers<[1], [0], [0], [1], [0, 0, 1, 1], [], []>} : vector<2x64xf32>, vector<64x192xf32>, vector<2x192xf32> -> vector<2x192xf32>
    %127 = vector.extract_strided_slice %125 {offsets = [0, 0], sizes = [2, 128], strides = [1, 1]} : vector<2x192xf32> to vector<2x128xf32>
    %128 = vector.extract_strided_slice %126 {offsets = [0, 0], sizes = [2, 128], strides = [1, 1]} : vector<2x192xf32> to vector<2x128xf32>
    %129 = arith.addf %127, %128 : vector<2x128xf32>
    %130 = arith.negf %129 : vector<2x128xf32>
    %131 = math.exp %130 : vector<2x128xf32>
    %cst_27 = arith.constant 1.000000e+00 : f32
    %132 = vector.broadcast %cst_27 : f32 to vector<2x128xf32>
    %133 = arith.addf %132, %131 : vector<2x128xf32>
    %134 = arith.divf %132, %133 : vector<2x128xf32>
    %135 = vector.extract_strided_slice %134 {offsets = [0, 0], sizes = [2, 64], strides = [1, 1]} : vector<2x128xf32> to vector<2x64xf32>
    %136 = vector.extract_strided_slice %134 {offsets = [0, 64], sizes = [2, 64], strides = [1, 1]} : vector<2x128xf32> to vector<2x64xf32>
    %137 = vector.extract_strided_slice %125 {offsets = [0, 128], sizes = [2, 64], strides = [1, 1]} : vector<2x192xf32> to vector<2x64xf32>
    %138 = vector.extract_strided_slice %126 {offsets = [0, 128], sizes = [2, 64], strides = [1, 1]} : vector<2x192xf32> to vector<2x64xf32>
    %139 = arith.addf %138, %56 : vector<2x64xf32>
    %140 = arith.mulf %135, %139 : vector<2x64xf32>
    %141 = arith.addf %137, %140 : vector<2x64xf32>
    %142 = math.tanh %141 : vector<2x64xf32>
    %143 = arith.subf %123, %142 : vector<2x64xf32>
    %144 = arith.mulf %136, %143 : vector<2x64xf32>
    %145 = arith.addf %142, %144 : vector<2x64xf32>
    %146 = vector.extract_strided_slice %54 {offsets = [0, 4, 0], sizes = [2, 1, 192], strides = [1, 1, 1]} : vector<2x8x192xf32> to vector<2x1x192xf32>
    %147 = vector.shape_cast %146 : vector<2x1x192xf32> to vector<2x192xf32>
    %cst_28 = arith.constant dense<0.000000e+00> : vector<2x192xf32>
    %148 = tpu.matmul %145, %2, %cst_28 {dimension_numbers = #tpu.dot_dimension_numbers<[1], [0], [0], [1], [0, 0, 1, 1], [], []>} : vector<2x64xf32>, vector<64x192xf32>, vector<2x192xf32> -> vector<2x192xf32>
    %149 = vector.extract_strided_slice %147 {offsets = [0, 0], sizes = [2, 128], strides = [1, 1]} : vector<2x192xf32> to vector<2x128xf32>
    %150 = vector.extract_strided_slice %148 {offsets = [0, 0], sizes = [2, 128], strides = [1, 1]} : vector<2x192xf32> to vector<2x128xf32>
    %151 = arith.addf %149, %150 : vector<2x128xf32>
    %152 = arith.negf %151 : vector<2x128xf32>
    %153 = math.exp %152 : vector<2x128xf32>
    %cst_29 = arith.constant 1.000000e+00 : f32
    %154 = vector.broadcast %cst_29 : f32 to vector<2x128xf32>
    %155 = arith.addf %154, %153 : vector<2x128xf32>
    %156 = arith.divf %154, %155 : vector<2x128xf32>
    %157 = vector.extract_strided_slice %156 {offsets = [0, 0], sizes = [2, 64], strides = [1, 1]} : vector<2x128xf32> to vector<2x64xf32>
    %158 = vector.extract_strided_slice %156 {offsets = [0, 64], sizes = [2, 64], strides = [1, 1]} : vector<2x128xf32> to vector<2x64xf32>
    %159 = vector.extract_strided_slice %147 {offsets = [0, 128], sizes = [2, 64], strides = [1, 1]} : vector<2x192xf32> to vector<2x64xf32>
    %160 = vector.extract_strided_slice %148 {offsets = [0, 128], sizes = [2, 64], strides = [1, 1]} : vector<2x192xf32> to vector<2x64xf32>
    %161 = arith.addf %160, %56 : vector<2x64xf32>
    %162 = arith.mulf %157, %161 : vector<2x64xf32>
    %163 = arith.addf %159, %162 : vector<2x64xf32>
    %164 = math.tanh %163 : vector<2x64xf32>
    %165 = arith.subf %145, %164 : vector<2x64xf32>
    %166 = arith.mulf %158, %165 : vector<2x64xf32>
    %167 = arith.addf %164, %166 : vector<2x64xf32>
    %168 = vector.extract_strided_slice %54 {offsets = [0, 5, 0], sizes = [2, 1, 192], strides = [1, 1, 1]} : vector<2x8x192xf32> to vector<2x1x192xf32>
    %169 = vector.shape_cast %168 : vector<2x1x192xf32> to vector<2x192xf32>
    %cst_30 = arith.constant dense<0.000000e+00> : vector<2x192xf32>
    %170 = tpu.matmul %167, %2, %cst_30 {dimension_numbers = #tpu.dot_dimension_numbers<[1], [0], [0], [1], [0, 0, 1, 1], [], []>} : vector<2x64xf32>, vector<64x192xf32>, vector<2x192xf32> -> vector<2x192xf32>
    %171 = vector.extract_strided_slice %169 {offsets = [0, 0], sizes = [2, 128], strides = [1, 1]} : vector<2x192xf32> to vector<2x128xf32>
    %172 = vector.extract_strided_slice %170 {offsets = [0, 0], sizes = [2, 128], strides = [1, 1]} : vector<2x192xf32> to vector<2x128xf32>
    %173 = arith.addf %171, %172 : vector<2x128xf32>
    %174 = arith.negf %173 : vector<2x128xf32>
    %175 = math.exp %174 : vector<2x128xf32>
    %cst_31 = arith.constant 1.000000e+00 : f32
    %176 = vector.broadcast %cst_31 : f32 to vector<2x128xf32>
    %177 = arith.addf %176, %175 : vector<2x128xf32>
    %178 = arith.divf %176, %177 : vector<2x128xf32>
    %179 = vector.extract_strided_slice %178 {offsets = [0, 0], sizes = [2, 64], strides = [1, 1]} : vector<2x128xf32> to vector<2x64xf32>
    %180 = vector.extract_strided_slice %178 {offsets = [0, 64], sizes = [2, 64], strides = [1, 1]} : vector<2x128xf32> to vector<2x64xf32>
    %181 = vector.extract_strided_slice %169 {offsets = [0, 128], sizes = [2, 64], strides = [1, 1]} : vector<2x192xf32> to vector<2x64xf32>
    %182 = vector.extract_strided_slice %170 {offsets = [0, 128], sizes = [2, 64], strides = [1, 1]} : vector<2x192xf32> to vector<2x64xf32>
    %183 = arith.addf %182, %56 : vector<2x64xf32>
    %184 = arith.mulf %179, %183 : vector<2x64xf32>
    %185 = arith.addf %181, %184 : vector<2x64xf32>
    %186 = math.tanh %185 : vector<2x64xf32>
    %187 = arith.subf %167, %186 : vector<2x64xf32>
    %188 = arith.mulf %180, %187 : vector<2x64xf32>
    %189 = arith.addf %186, %188 : vector<2x64xf32>
    %190 = vector.extract_strided_slice %54 {offsets = [0, 6, 0], sizes = [2, 1, 192], strides = [1, 1, 1]} : vector<2x8x192xf32> to vector<2x1x192xf32>
    %191 = vector.shape_cast %190 : vector<2x1x192xf32> to vector<2x192xf32>
    %cst_32 = arith.constant dense<0.000000e+00> : vector<2x192xf32>
    %192 = tpu.matmul %189, %2, %cst_32 {dimension_numbers = #tpu.dot_dimension_numbers<[1], [0], [0], [1], [0, 0, 1, 1], [], []>} : vector<2x64xf32>, vector<64x192xf32>, vector<2x192xf32> -> vector<2x192xf32>
    %193 = vector.extract_strided_slice %191 {offsets = [0, 0], sizes = [2, 128], strides = [1, 1]} : vector<2x192xf32> to vector<2x128xf32>
    %194 = vector.extract_strided_slice %192 {offsets = [0, 0], sizes = [2, 128], strides = [1, 1]} : vector<2x192xf32> to vector<2x128xf32>
    %195 = arith.addf %193, %194 : vector<2x128xf32>
    %196 = arith.negf %195 : vector<2x128xf32>
    %197 = math.exp %196 : vector<2x128xf32>
    %cst_33 = arith.constant 1.000000e+00 : f32
    %198 = vector.broadcast %cst_33 : f32 to vector<2x128xf32>
    %199 = arith.addf %198, %197 : vector<2x128xf32>
    %200 = arith.divf %198, %199 : vector<2x128xf32>
    %201 = vector.extract_strided_slice %200 {offsets = [0, 0], sizes = [2, 64], strides = [1, 1]} : vector<2x128xf32> to vector<2x64xf32>
    %202 = vector.extract_strided_slice %200 {offsets = [0, 64], sizes = [2, 64], strides = [1, 1]} : vector<2x128xf32> to vector<2x64xf32>
    %203 = vector.extract_strided_slice %191 {offsets = [0, 128], sizes = [2, 64], strides = [1, 1]} : vector<2x192xf32> to vector<2x64xf32>
    %204 = vector.extract_strided_slice %192 {offsets = [0, 128], sizes = [2, 64], strides = [1, 1]} : vector<2x192xf32> to vector<2x64xf32>
    %205 = arith.addf %204, %56 : vector<2x64xf32>
    %206 = arith.mulf %201, %205 : vector<2x64xf32>
    %207 = arith.addf %203, %206 : vector<2x64xf32>
    %208 = math.tanh %207 : vector<2x64xf32>
    %209 = arith.subf %189, %208 : vector<2x64xf32>
    %210 = arith.mulf %202, %209 : vector<2x64xf32>
    %211 = arith.addf %208, %210 : vector<2x64xf32>
    %212 = vector.extract_strided_slice %54 {offsets = [0, 7, 0], sizes = [2, 1, 192], strides = [1, 1, 1]} : vector<2x8x192xf32> to vector<2x1x192xf32>
    %213 = vector.shape_cast %212 : vector<2x1x192xf32> to vector<2x192xf32>
    %cst_34 = arith.constant dense<0.000000e+00> : vector<2x192xf32>
    %214 = tpu.matmul %211, %2, %cst_34 {dimension_numbers = #tpu.dot_dimension_numbers<[1], [0], [0], [1], [0, 0, 1, 1], [], []>} : vector<2x64xf32>, vector<64x192xf32>, vector<2x192xf32> -> vector<2x192xf32>
    %215 = vector.extract_strided_slice %213 {offsets = [0, 0], sizes = [2, 128], strides = [1, 1]} : vector<2x192xf32> to vector<2x128xf32>
    %216 = vector.extract_strided_slice %214 {offsets = [0, 0], sizes = [2, 128], strides = [1, 1]} : vector<2x192xf32> to vector<2x128xf32>
    %217 = arith.addf %215, %216 : vector<2x128xf32>
    %218 = arith.negf %217 : vector<2x128xf32>
    %219 = math.exp %218 : vector<2x128xf32>
    %cst_35 = arith.constant 1.000000e+00 : f32
    %220 = vector.broadcast %cst_35 : f32 to vector<2x128xf32>
    %221 = arith.addf %220, %219 : vector<2x128xf32>
    %222 = arith.divf %220, %221 : vector<2x128xf32>
    %223 = vector.extract_strided_slice %222 {offsets = [0, 0], sizes = [2, 64], strides = [1, 1]} : vector<2x128xf32> to vector<2x64xf32>
    %224 = vector.extract_strided_slice %222 {offsets = [0, 64], sizes = [2, 64], strides = [1, 1]} : vector<2x128xf32> to vector<2x64xf32>
    %225 = vector.extract_strided_slice %213 {offsets = [0, 128], sizes = [2, 64], strides = [1, 1]} : vector<2x192xf32> to vector<2x64xf32>
    %226 = vector.extract_strided_slice %214 {offsets = [0, 128], sizes = [2, 64], strides = [1, 1]} : vector<2x192xf32> to vector<2x64xf32>
    %227 = arith.addf %226, %56 : vector<2x64xf32>
    %228 = arith.mulf %223, %227 : vector<2x64xf32>
    %229 = arith.addf %225, %228 : vector<2x64xf32>
    %230 = math.tanh %229 : vector<2x64xf32>
    %231 = arith.subf %211, %230 : vector<2x64xf32>
    %232 = arith.mulf %224, %231 : vector<2x64xf32>
    %233 = arith.addf %230, %232 : vector<2x64xf32>
    %234 = tpu.concatenate %79, %233 in 1 : vector<2x64xf32>, vector<2x64xf32> -> vector<2x128xf32>
    %235 = tpu.concatenate %101, %211 in 1 : vector<2x64xf32>, vector<2x64xf32> -> vector<2x128xf32>
    %236 = tpu.concatenate %123, %189 in 1 : vector<2x64xf32>, vector<2x64xf32> -> vector<2x128xf32>
    %237 = tpu.concatenate %145, %167 in 1 : vector<2x64xf32>, vector<2x64xf32> -> vector<2x128xf32>
    %238 = tpu.concatenate %167, %145 in 1 : vector<2x64xf32>, vector<2x64xf32> -> vector<2x128xf32>
    %239 = tpu.concatenate %189, %123 in 1 : vector<2x64xf32>, vector<2x64xf32> -> vector<2x128xf32>
    %240 = tpu.concatenate %211, %101 in 1 : vector<2x64xf32>, vector<2x64xf32> -> vector<2x128xf32>
    %241 = tpu.concatenate %233, %79 in 1 : vector<2x64xf32>, vector<2x64xf32> -> vector<2x128xf32>
    %242 = vector.shape_cast %234 : vector<2x128xf32> to vector<2x1x128xf32>
    %243 = vector.shape_cast %235 : vector<2x128xf32> to vector<2x1x128xf32>
    %244 = vector.shape_cast %236 : vector<2x128xf32> to vector<2x1x128xf32>
    %245 = vector.shape_cast %237 : vector<2x128xf32> to vector<2x1x128xf32>
    %246 = vector.shape_cast %238 : vector<2x128xf32> to vector<2x1x128xf32>
    %247 = vector.shape_cast %239 : vector<2x128xf32> to vector<2x1x128xf32>
    %248 = vector.shape_cast %240 : vector<2x128xf32> to vector<2x1x128xf32>
    %249 = vector.shape_cast %241 : vector<2x128xf32> to vector<2x1x128xf32>
    %250 = tpu.concatenate %242, %243, %244, %245, %246, %247, %248, %249 in 1 : vector<2x1x128xf32>, vector<2x1x128xf32>, vector<2x1x128xf32>, vector<2x1x128xf32>, vector<2x1x128xf32>, vector<2x1x128xf32>, vector<2x1x128xf32>, vector<2x1x128xf32> -> vector<2x8x128xf32>
    %251 = vector.shape_cast %250 : vector<2x8x128xf32> to vector<16x128xf32>
    %cst_36 = arith.constant dense<0.000000e+00> : vector<16x192xf32>
    %252 = tpu.matmul %251, %3, %cst_36 {dimension_numbers = #tpu.dot_dimension_numbers<[1], [0], [0], [1], [0, 0, 1, 1], [], []>} : vector<16x128xf32>, vector<128x192xf32>, vector<16x192xf32> -> vector<16x192xf32>
    %253 = vector.broadcast %8 : vector<1x192xf32> to vector<16x192xf32>
    %254 = arith.addf %252, %253 : vector<16x192xf32>
    %255 = vector.shape_cast %254 : vector<16x192xf32> to vector<2x8x192xf32>
    %256 = vector.shape_cast %10 : vector<1x64xf32> to vector<1x64xf32>
    %257 = vector.broadcast %256 : vector<1x64xf32> to vector<2x64xf32>
    %cst_37 = arith.constant 0.000000e+00 : f32
    %258 = vector.broadcast %cst_37 : f32 to vector<2x64xf32>
    %259 = vector.extract_strided_slice %255 {offsets = [0, 0, 0], sizes = [2, 1, 192], strides = [1, 1, 1]} : vector<2x8x192xf32> to vector<2x1x192xf32>
    %260 = vector.shape_cast %259 : vector<2x1x192xf32> to vector<2x192xf32>
    %cst_38 = arith.constant dense<0.000000e+00> : vector<2x192xf32>
    %261 = tpu.matmul %258, %4, %cst_38 {dimension_numbers = #tpu.dot_dimension_numbers<[1], [0], [0], [1], [0, 0, 1, 1], [], []>} : vector<2x64xf32>, vector<64x192xf32>, vector<2x192xf32> -> vector<2x192xf32>
    %262 = vector.extract_strided_slice %260 {offsets = [0, 0], sizes = [2, 128], strides = [1, 1]} : vector<2x192xf32> to vector<2x128xf32>
    %263 = vector.extract_strided_slice %261 {offsets = [0, 0], sizes = [2, 128], strides = [1, 1]} : vector<2x192xf32> to vector<2x128xf32>
    %264 = arith.addf %262, %263 : vector<2x128xf32>
    %265 = arith.negf %264 : vector<2x128xf32>
    %266 = math.exp %265 : vector<2x128xf32>
    %cst_39 = arith.constant 1.000000e+00 : f32
    %267 = vector.broadcast %cst_39 : f32 to vector<2x128xf32>
    %268 = arith.addf %267, %266 : vector<2x128xf32>
    %269 = arith.divf %267, %268 : vector<2x128xf32>
    %270 = vector.extract_strided_slice %269 {offsets = [0, 0], sizes = [2, 64], strides = [1, 1]} : vector<2x128xf32> to vector<2x64xf32>
    %271 = vector.extract_strided_slice %269 {offsets = [0, 64], sizes = [2, 64], strides = [1, 1]} : vector<2x128xf32> to vector<2x64xf32>
    %272 = vector.extract_strided_slice %260 {offsets = [0, 128], sizes = [2, 64], strides = [1, 1]} : vector<2x192xf32> to vector<2x64xf32>
    %273 = vector.extract_strided_slice %261 {offsets = [0, 128], sizes = [2, 64], strides = [1, 1]} : vector<2x192xf32> to vector<2x64xf32>
    %274 = arith.addf %273, %257 : vector<2x64xf32>
    %275 = arith.mulf %270, %274 : vector<2x64xf32>
    %276 = arith.addf %272, %275 : vector<2x64xf32>
    %277 = math.tanh %276 : vector<2x64xf32>
    %278 = arith.subf %258, %277 : vector<2x64xf32>
    %279 = arith.mulf %271, %278 : vector<2x64xf32>
    %280 = arith.addf %277, %279 : vector<2x64xf32>
    %281 = vector.extract_strided_slice %255 {offsets = [0, 1, 0], sizes = [2, 1, 192], strides = [1, 1, 1]} : vector<2x8x192xf32> to vector<2x1x192xf32>
    %282 = vector.shape_cast %281 : vector<2x1x192xf32> to vector<2x192xf32>
    %cst_40 = arith.constant dense<0.000000e+00> : vector<2x192xf32>
    %283 = tpu.matmul %280, %4, %cst_40 {dimension_numbers = #tpu.dot_dimension_numbers<[1], [0], [0], [1], [0, 0, 1, 1], [], []>} : vector<2x64xf32>, vector<64x192xf32>, vector<2x192xf32> -> vector<2x192xf32>
    %284 = vector.extract_strided_slice %282 {offsets = [0, 0], sizes = [2, 128], strides = [1, 1]} : vector<2x192xf32> to vector<2x128xf32>
    %285 = vector.extract_strided_slice %283 {offsets = [0, 0], sizes = [2, 128], strides = [1, 1]} : vector<2x192xf32> to vector<2x128xf32>
    %286 = arith.addf %284, %285 : vector<2x128xf32>
    %287 = arith.negf %286 : vector<2x128xf32>
    %288 = math.exp %287 : vector<2x128xf32>
    %cst_41 = arith.constant 1.000000e+00 : f32
    %289 = vector.broadcast %cst_41 : f32 to vector<2x128xf32>
    %290 = arith.addf %289, %288 : vector<2x128xf32>
    %291 = arith.divf %289, %290 : vector<2x128xf32>
    %292 = vector.extract_strided_slice %291 {offsets = [0, 0], sizes = [2, 64], strides = [1, 1]} : vector<2x128xf32> to vector<2x64xf32>
    %293 = vector.extract_strided_slice %291 {offsets = [0, 64], sizes = [2, 64], strides = [1, 1]} : vector<2x128xf32> to vector<2x64xf32>
    %294 = vector.extract_strided_slice %282 {offsets = [0, 128], sizes = [2, 64], strides = [1, 1]} : vector<2x192xf32> to vector<2x64xf32>
    %295 = vector.extract_strided_slice %283 {offsets = [0, 128], sizes = [2, 64], strides = [1, 1]} : vector<2x192xf32> to vector<2x64xf32>
    %296 = arith.addf %295, %257 : vector<2x64xf32>
    %297 = arith.mulf %292, %296 : vector<2x64xf32>
    %298 = arith.addf %294, %297 : vector<2x64xf32>
    %299 = math.tanh %298 : vector<2x64xf32>
    %300 = arith.subf %280, %299 : vector<2x64xf32>
    %301 = arith.mulf %293, %300 : vector<2x64xf32>
    %302 = arith.addf %299, %301 : vector<2x64xf32>
    %303 = vector.extract_strided_slice %255 {offsets = [0, 2, 0], sizes = [2, 1, 192], strides = [1, 1, 1]} : vector<2x8x192xf32> to vector<2x1x192xf32>
    %304 = vector.shape_cast %303 : vector<2x1x192xf32> to vector<2x192xf32>
    %cst_42 = arith.constant dense<0.000000e+00> : vector<2x192xf32>
    %305 = tpu.matmul %302, %4, %cst_42 {dimension_numbers = #tpu.dot_dimension_numbers<[1], [0], [0], [1], [0, 0, 1, 1], [], []>} : vector<2x64xf32>, vector<64x192xf32>, vector<2x192xf32> -> vector<2x192xf32>
    %306 = vector.extract_strided_slice %304 {offsets = [0, 0], sizes = [2, 128], strides = [1, 1]} : vector<2x192xf32> to vector<2x128xf32>
    %307 = vector.extract_strided_slice %305 {offsets = [0, 0], sizes = [2, 128], strides = [1, 1]} : vector<2x192xf32> to vector<2x128xf32>
    %308 = arith.addf %306, %307 : vector<2x128xf32>
    %309 = arith.negf %308 : vector<2x128xf32>
    %310 = math.exp %309 : vector<2x128xf32>
    %cst_43 = arith.constant 1.000000e+00 : f32
    %311 = vector.broadcast %cst_43 : f32 to vector<2x128xf32>
    %312 = arith.addf %311, %310 : vector<2x128xf32>
    %313 = arith.divf %311, %312 : vector<2x128xf32>
    %314 = vector.extract_strided_slice %313 {offsets = [0, 0], sizes = [2, 64], strides = [1, 1]} : vector<2x128xf32> to vector<2x64xf32>
    %315 = vector.extract_strided_slice %313 {offsets = [0, 64], sizes = [2, 64], strides = [1, 1]} : vector<2x128xf32> to vector<2x64xf32>
    %316 = vector.extract_strided_slice %304 {offsets = [0, 128], sizes = [2, 64], strides = [1, 1]} : vector<2x192xf32> to vector<2x64xf32>
    %317 = vector.extract_strided_slice %305 {offsets = [0, 128], sizes = [2, 64], strides = [1, 1]} : vector<2x192xf32> to vector<2x64xf32>
    %318 = arith.addf %317, %257 : vector<2x64xf32>
    %319 = arith.mulf %314, %318 : vector<2x64xf32>
    %320 = arith.addf %316, %319 : vector<2x64xf32>
    %321 = math.tanh %320 : vector<2x64xf32>
    %322 = arith.subf %302, %321 : vector<2x64xf32>
    %323 = arith.mulf %315, %322 : vector<2x64xf32>
    %324 = arith.addf %321, %323 : vector<2x64xf32>
    %325 = vector.extract_strided_slice %255 {offsets = [0, 3, 0], sizes = [2, 1, 192], strides = [1, 1, 1]} : vector<2x8x192xf32> to vector<2x1x192xf32>
    %326 = vector.shape_cast %325 : vector<2x1x192xf32> to vector<2x192xf32>
    %cst_44 = arith.constant dense<0.000000e+00> : vector<2x192xf32>
    %327 = tpu.matmul %324, %4, %cst_44 {dimension_numbers = #tpu.dot_dimension_numbers<[1], [0], [0], [1], [0, 0, 1, 1], [], []>} : vector<2x64xf32>, vector<64x192xf32>, vector<2x192xf32> -> vector<2x192xf32>
    %328 = vector.extract_strided_slice %326 {offsets = [0, 0], sizes = [2, 128], strides = [1, 1]} : vector<2x192xf32> to vector<2x128xf32>
    %329 = vector.extract_strided_slice %327 {offsets = [0, 0], sizes = [2, 128], strides = [1, 1]} : vector<2x192xf32> to vector<2x128xf32>
    %330 = arith.addf %328, %329 : vector<2x128xf32>
    %331 = arith.negf %330 : vector<2x128xf32>
    %332 = math.exp %331 : vector<2x128xf32>
    %cst_45 = arith.constant 1.000000e+00 : f32
    %333 = vector.broadcast %cst_45 : f32 to vector<2x128xf32>
    %334 = arith.addf %333, %332 : vector<2x128xf32>
    %335 = arith.divf %333, %334 : vector<2x128xf32>
    %336 = vector.extract_strided_slice %335 {offsets = [0, 0], sizes = [2, 64], strides = [1, 1]} : vector<2x128xf32> to vector<2x64xf32>
    %337 = vector.extract_strided_slice %335 {offsets = [0, 64], sizes = [2, 64], strides = [1, 1]} : vector<2x128xf32> to vector<2x64xf32>
    %338 = vector.extract_strided_slice %326 {offsets = [0, 128], sizes = [2, 64], strides = [1, 1]} : vector<2x192xf32> to vector<2x64xf32>
    %339 = vector.extract_strided_slice %327 {offsets = [0, 128], sizes = [2, 64], strides = [1, 1]} : vector<2x192xf32> to vector<2x64xf32>
    %340 = arith.addf %339, %257 : vector<2x64xf32>
    %341 = arith.mulf %336, %340 : vector<2x64xf32>
    %342 = arith.addf %338, %341 : vector<2x64xf32>
    %343 = math.tanh %342 : vector<2x64xf32>
    %344 = arith.subf %324, %343 : vector<2x64xf32>
    %345 = arith.mulf %337, %344 : vector<2x64xf32>
    %346 = arith.addf %343, %345 : vector<2x64xf32>
    %347 = vector.extract_strided_slice %255 {offsets = [0, 4, 0], sizes = [2, 1, 192], strides = [1, 1, 1]} : vector<2x8x192xf32> to vector<2x1x192xf32>
    %348 = vector.shape_cast %347 : vector<2x1x192xf32> to vector<2x192xf32>
    %cst_46 = arith.constant dense<0.000000e+00> : vector<2x192xf32>
    %349 = tpu.matmul %346, %4, %cst_46 {dimension_numbers = #tpu.dot_dimension_numbers<[1], [0], [0], [1], [0, 0, 1, 1], [], []>} : vector<2x64xf32>, vector<64x192xf32>, vector<2x192xf32> -> vector<2x192xf32>
    %350 = vector.extract_strided_slice %348 {offsets = [0, 0], sizes = [2, 128], strides = [1, 1]} : vector<2x192xf32> to vector<2x128xf32>
    %351 = vector.extract_strided_slice %349 {offsets = [0, 0], sizes = [2, 128], strides = [1, 1]} : vector<2x192xf32> to vector<2x128xf32>
    %352 = arith.addf %350, %351 : vector<2x128xf32>
    %353 = arith.negf %352 : vector<2x128xf32>
    %354 = math.exp %353 : vector<2x128xf32>
    %cst_47 = arith.constant 1.000000e+00 : f32
    %355 = vector.broadcast %cst_47 : f32 to vector<2x128xf32>
    %356 = arith.addf %355, %354 : vector<2x128xf32>
    %357 = arith.divf %355, %356 : vector<2x128xf32>
    %358 = vector.extract_strided_slice %357 {offsets = [0, 0], sizes = [2, 64], strides = [1, 1]} : vector<2x128xf32> to vector<2x64xf32>
    %359 = vector.extract_strided_slice %357 {offsets = [0, 64], sizes = [2, 64], strides = [1, 1]} : vector<2x128xf32> to vector<2x64xf32>
    %360 = vector.extract_strided_slice %348 {offsets = [0, 128], sizes = [2, 64], strides = [1, 1]} : vector<2x192xf32> to vector<2x64xf32>
    %361 = vector.extract_strided_slice %349 {offsets = [0, 128], sizes = [2, 64], strides = [1, 1]} : vector<2x192xf32> to vector<2x64xf32>
    %362 = arith.addf %361, %257 : vector<2x64xf32>
    %363 = arith.mulf %358, %362 : vector<2x64xf32>
    %364 = arith.addf %360, %363 : vector<2x64xf32>
    %365 = math.tanh %364 : vector<2x64xf32>
    %366 = arith.subf %346, %365 : vector<2x64xf32>
    %367 = arith.mulf %359, %366 : vector<2x64xf32>
    %368 = arith.addf %365, %367 : vector<2x64xf32>
    %369 = vector.extract_strided_slice %255 {offsets = [0, 5, 0], sizes = [2, 1, 192], strides = [1, 1, 1]} : vector<2x8x192xf32> to vector<2x1x192xf32>
    %370 = vector.shape_cast %369 : vector<2x1x192xf32> to vector<2x192xf32>
    %cst_48 = arith.constant dense<0.000000e+00> : vector<2x192xf32>
    %371 = tpu.matmul %368, %4, %cst_48 {dimension_numbers = #tpu.dot_dimension_numbers<[1], [0], [0], [1], [0, 0, 1, 1], [], []>} : vector<2x64xf32>, vector<64x192xf32>, vector<2x192xf32> -> vector<2x192xf32>
    %372 = vector.extract_strided_slice %370 {offsets = [0, 0], sizes = [2, 128], strides = [1, 1]} : vector<2x192xf32> to vector<2x128xf32>
    %373 = vector.extract_strided_slice %371 {offsets = [0, 0], sizes = [2, 128], strides = [1, 1]} : vector<2x192xf32> to vector<2x128xf32>
    %374 = arith.addf %372, %373 : vector<2x128xf32>
    %375 = arith.negf %374 : vector<2x128xf32>
    %376 = math.exp %375 : vector<2x128xf32>
    %cst_49 = arith.constant 1.000000e+00 : f32
    %377 = vector.broadcast %cst_49 : f32 to vector<2x128xf32>
    %378 = arith.addf %377, %376 : vector<2x128xf32>
    %379 = arith.divf %377, %378 : vector<2x128xf32>
    %380 = vector.extract_strided_slice %379 {offsets = [0, 0], sizes = [2, 64], strides = [1, 1]} : vector<2x128xf32> to vector<2x64xf32>
    %381 = vector.extract_strided_slice %379 {offsets = [0, 64], sizes = [2, 64], strides = [1, 1]} : vector<2x128xf32> to vector<2x64xf32>
    %382 = vector.extract_strided_slice %370 {offsets = [0, 128], sizes = [2, 64], strides = [1, 1]} : vector<2x192xf32> to vector<2x64xf32>
    %383 = vector.extract_strided_slice %371 {offsets = [0, 128], sizes = [2, 64], strides = [1, 1]} : vector<2x192xf32> to vector<2x64xf32>
    %384 = arith.addf %383, %257 : vector<2x64xf32>
    %385 = arith.mulf %380, %384 : vector<2x64xf32>
    %386 = arith.addf %382, %385 : vector<2x64xf32>
    %387 = math.tanh %386 : vector<2x64xf32>
    %388 = arith.subf %368, %387 : vector<2x64xf32>
    %389 = arith.mulf %381, %388 : vector<2x64xf32>
    %390 = arith.addf %387, %389 : vector<2x64xf32>
    %391 = vector.extract_strided_slice %255 {offsets = [0, 6, 0], sizes = [2, 1, 192], strides = [1, 1, 1]} : vector<2x8x192xf32> to vector<2x1x192xf32>
    %392 = vector.shape_cast %391 : vector<2x1x192xf32> to vector<2x192xf32>
    %cst_50 = arith.constant dense<0.000000e+00> : vector<2x192xf32>
    %393 = tpu.matmul %390, %4, %cst_50 {dimension_numbers = #tpu.dot_dimension_numbers<[1], [0], [0], [1], [0, 0, 1, 1], [], []>} : vector<2x64xf32>, vector<64x192xf32>, vector<2x192xf32> -> vector<2x192xf32>
    %394 = vector.extract_strided_slice %392 {offsets = [0, 0], sizes = [2, 128], strides = [1, 1]} : vector<2x192xf32> to vector<2x128xf32>
    %395 = vector.extract_strided_slice %393 {offsets = [0, 0], sizes = [2, 128], strides = [1, 1]} : vector<2x192xf32> to vector<2x128xf32>
    %396 = arith.addf %394, %395 : vector<2x128xf32>
    %397 = arith.negf %396 : vector<2x128xf32>
    %398 = math.exp %397 : vector<2x128xf32>
    %cst_51 = arith.constant 1.000000e+00 : f32
    %399 = vector.broadcast %cst_51 : f32 to vector<2x128xf32>
    %400 = arith.addf %399, %398 : vector<2x128xf32>
    %401 = arith.divf %399, %400 : vector<2x128xf32>
    %402 = vector.extract_strided_slice %401 {offsets = [0, 0], sizes = [2, 64], strides = [1, 1]} : vector<2x128xf32> to vector<2x64xf32>
    %403 = vector.extract_strided_slice %401 {offsets = [0, 64], sizes = [2, 64], strides = [1, 1]} : vector<2x128xf32> to vector<2x64xf32>
    %404 = vector.extract_strided_slice %392 {offsets = [0, 128], sizes = [2, 64], strides = [1, 1]} : vector<2x192xf32> to vector<2x64xf32>
    %405 = vector.extract_strided_slice %393 {offsets = [0, 128], sizes = [2, 64], strides = [1, 1]} : vector<2x192xf32> to vector<2x64xf32>
    %406 = arith.addf %405, %257 : vector<2x64xf32>
    %407 = arith.mulf %402, %406 : vector<2x64xf32>
    %408 = arith.addf %404, %407 : vector<2x64xf32>
    %409 = math.tanh %408 : vector<2x64xf32>
    %410 = arith.subf %390, %409 : vector<2x64xf32>
    %411 = arith.mulf %403, %410 : vector<2x64xf32>
    %412 = arith.addf %409, %411 : vector<2x64xf32>
    %413 = vector.extract_strided_slice %255 {offsets = [0, 7, 0], sizes = [2, 1, 192], strides = [1, 1, 1]} : vector<2x8x192xf32> to vector<2x1x192xf32>
    %414 = vector.shape_cast %413 : vector<2x1x192xf32> to vector<2x192xf32>
    %cst_52 = arith.constant dense<0.000000e+00> : vector<2x192xf32>
    %415 = tpu.matmul %412, %4, %cst_52 {dimension_numbers = #tpu.dot_dimension_numbers<[1], [0], [0], [1], [0, 0, 1, 1], [], []>} : vector<2x64xf32>, vector<64x192xf32>, vector<2x192xf32> -> vector<2x192xf32>
    %416 = vector.extract_strided_slice %414 {offsets = [0, 0], sizes = [2, 128], strides = [1, 1]} : vector<2x192xf32> to vector<2x128xf32>
    %417 = vector.extract_strided_slice %415 {offsets = [0, 0], sizes = [2, 128], strides = [1, 1]} : vector<2x192xf32> to vector<2x128xf32>
    %418 = arith.addf %416, %417 : vector<2x128xf32>
    %419 = arith.negf %418 : vector<2x128xf32>
    %420 = math.exp %419 : vector<2x128xf32>
    %cst_53 = arith.constant 1.000000e+00 : f32
    %421 = vector.broadcast %cst_53 : f32 to vector<2x128xf32>
    %422 = arith.addf %421, %420 : vector<2x128xf32>
    %423 = arith.divf %421, %422 : vector<2x128xf32>
    %424 = vector.extract_strided_slice %423 {offsets = [0, 0], sizes = [2, 64], strides = [1, 1]} : vector<2x128xf32> to vector<2x64xf32>
    %425 = vector.extract_strided_slice %423 {offsets = [0, 64], sizes = [2, 64], strides = [1, 1]} : vector<2x128xf32> to vector<2x64xf32>
    %426 = vector.extract_strided_slice %414 {offsets = [0, 128], sizes = [2, 64], strides = [1, 1]} : vector<2x192xf32> to vector<2x64xf32>
    %427 = vector.extract_strided_slice %415 {offsets = [0, 128], sizes = [2, 64], strides = [1, 1]} : vector<2x192xf32> to vector<2x64xf32>
    %428 = arith.addf %427, %257 : vector<2x64xf32>
    %429 = arith.mulf %424, %428 : vector<2x64xf32>
    %430 = arith.addf %426, %429 : vector<2x64xf32>
    %431 = math.tanh %430 : vector<2x64xf32>
    %432 = arith.subf %412, %431 : vector<2x64xf32>
    %433 = arith.mulf %425, %432 : vector<2x64xf32>
    %434 = arith.addf %431, %433 : vector<2x64xf32>
    %cst_54 = arith.constant dense<0.000000e+00> : vector<2x64xf32>
    %435 = tpu.matmul %434, %5, %cst_54 {dimension_numbers = #tpu.dot_dimension_numbers<[1], [0], [0], [1], [0, 0, 1, 1], [], []>} : vector<2x64xf32>, vector<64x64xf32>, vector<2x64xf32> -> vector<2x64xf32>
    %436 = vector.broadcast %11 : vector<1x64xf32> to vector<2x64xf32>
    %437 = arith.addf %435, %436 : vector<2x64xf32>
    %438 = vector.shape_cast %0 : vector<2x8x16xf32> to vector<16x16xf32>
    %cst_55 = arith.constant dense<0.000000e+00> : vector<16x64xf32>
    %439 = tpu.matmul %438, %6, %cst_55 {dimension_numbers = #tpu.dot_dimension_numbers<[1], [0], [0], [1], [0, 0, 1, 1], [], []>} : vector<16x16xf32>, vector<16x64xf32>, vector<16x64xf32> -> vector<16x64xf32>
    %440 = vector.broadcast %12 : vector<1x64xf32> to vector<16x64xf32>
    %441 = arith.addf %439, %440 : vector<16x64xf32>
    %442 = vector.shape_cast %441 : vector<16x64xf32> to vector<2x8x64xf32>
    %443 = vector.shape_cast %437 : vector<2x64xf32> to vector<2x1x64xf32>
    %444 = vector.broadcast %443 : vector<2x1x64xf32> to vector<2x8x64xf32>
    %445 = arith.addf %444, %442 : vector<2x8x64xf32>
    %446 = math.tanh %445 : vector<2x8x64xf32>
    %447 = vector.shape_cast %13 : vector<1x64xf32> to vector<1x1x64xf32>
    %448 = vector.broadcast %447 : vector<1x1x64xf32> to vector<2x8x64xf32>
    %449 = arith.mulf %446, %448 : vector<2x8x64xf32>
    %cst_56 = arith.constant dense<0.000000e+00> : vector<2x8xf32>
    %450 = vector.multi_reduction <add>, %449, %cst_56 [2] : vector<2x8x64xf32> to vector<2x8xf32>
    %451 = vector.shape_cast %450 : vector<2x8xf32> to vector<2x8x1xf32>
    %452 = vector.shape_cast %15 : vector<1x1xf32> to vector<1x1x1xf32>
    %453 = vector.broadcast %452 : vector<1x1x1xf32> to vector<2x8x1xf32>
    %454 = arith.addf %451, %453 : vector<2x8x1xf32>
    %cst_57 = arith.constant dense<0xFF800000> : vector<2x1xf32>
    %455 = vector.multi_reduction <maximumf>, %454, %cst_57 [1] : vector<2x8x1xf32> to vector<2x1xf32>
    %456 = vector.shape_cast %455 : vector<2x1xf32> to vector<2x1x1xf32>
    %457 = vector.broadcast %456 : vector<2x1x1xf32> to vector<2x8x1xf32>
    %458 = arith.subf %454, %457 : vector<2x8x1xf32>
    %459 = math.exp %458 : vector<2x8x1xf32>
    %cst_58 = arith.constant dense<0.000000e+00> : vector<2x1xf32>
    %460 = vector.multi_reduction <add>, %459, %cst_58 [1] : vector<2x8x1xf32> to vector<2x1xf32>
    %461 = vector.shape_cast %460 : vector<2x1xf32> to vector<2x1x1xf32>
    %462 = vector.broadcast %461 : vector<2x1x1xf32> to vector<2x8x1xf32>
    %463 = arith.divf %459, %462 : vector<2x8x1xf32>
    %464 = vector.broadcast %463 : vector<2x8x1xf32> to vector<2x8x16xf32>
    %465 = arith.mulf %464, %0 : vector<2x8x16xf32>
    %cst_59 = arith.constant dense<0.000000e+00> : vector<2x16xf32>
    %466 = vector.multi_reduction <add>, %465, %cst_59 [1] : vector<2x8x16xf32> to vector<2x16xf32>
    %467 = vector.extract_strided_slice %14 {offsets = [0, 0], sizes = [1, 16], strides = [1, 1]} : vector<1x80xf32> to vector<1x16xf32>
    %468 = vector.broadcast %467 : vector<1x16xf32> to vector<2x16xf32>
    %469 = arith.mulf %466, %468 : vector<2x16xf32>
    %cst_60 = arith.constant dense<0.000000e+00> : vector<2xf32>
    %470 = vector.multi_reduction <add>, %469, %cst_60 [1] : vector<2x16xf32> to vector<2xf32>
    %471 = vector.shape_cast %470 : vector<2xf32> to vector<2x1xf32>
    %472 = vector.extract_strided_slice %14 {offsets = [0, 16], sizes = [1, 64], strides = [1, 1]} : vector<1x80xf32> to vector<1x64xf32>
    %473 = vector.broadcast %472 : vector<1x64xf32> to vector<2x64xf32>
    %474 = arith.mulf %434, %473 : vector<2x64xf32>
    %cst_61 = arith.constant dense<0.000000e+00> : vector<2xf32>
    %475 = vector.multi_reduction <add>, %474, %cst_61 [1] : vector<2x64xf32> to vector<2xf32>
    %476 = vector.shape_cast %475 : vector<2xf32> to vector<2x1xf32>
    %477 = arith.addf %471, %476 : vector<2x1xf32>
    %478 = vector.broadcast %16 : vector<1x1xf32> to vector<2x1xf32>
    %479 = arith.addf %477, %478 : vector<2x1xf32>
    %c0_62 = arith.constant 0 : index
    %c0_63 = arith.constant 0 : index
    %480 = vector.load %arg2[%c0_62, %c0_63] : memref<2x1xf32, #tpu.memory_space<vmem>>, vector<2x1xf32>
    tpu.vector_store %arg2[%c0_62, %c0_63], %479 {strides = array<i32>} : memref<2x1xf32, #tpu.memory_space<vmem>>, vector<2x1xf32>,
    return
  }
}

</mosaic_0001>

<llo_original>
// kernel: tpu_custom_call.1
$region0: #{tpu_custom_call.1}
  #allocation0 [shape = 'u32[]', space=smem, size = 0x4, offset = 0x4, fixed_abs, tag = 'smem constant byte address 0x4 - core index']
  #allocation1 [shape = 'u32[72,128]{1,0:T(1,128)}', space=vmem, size = 0x9000, scoped, tag = 'internal scratch']
  %s0 = inlined_call_operand.vmem [shape: f32[2,8,16], index: 0, kind: input, shape index: {}]
  %s1 = inlined_call_operand.vmem [shape: f32[384,192], index: 1, kind: input, shape index: {}]
  %s2 = inlined_call_operand.vmem [shape: f32[2,1], index: 2, kind: output, shape index: {}]
  %s3 = sld [smem:[#allocation0]]
  $region18: #{tpu_custom_call.1} parent=0
    _
  %s5 = ssub.s32 1, %s3
  %s6 = scalar_select 0, %s5, %s3
  // Predicated region
  $region2: #{tpu_custom_call.1} parent=0 // pred_check
    _
  $region3: #{tpu_custom_call.1} parent=0 // pred_check_branch
    %8 = sbr.rel (0) target = $region5
  $region4: #{tpu_custom_call.1} parent=0 // pred_region
    _
  $region5: #{tpu_custom_call.1} parent=0 // pred_fallthru
    _
  // Predicated region
  $region6: #{tpu_custom_call.1} parent=0 // pred_check
    _
  $region7: #{tpu_custom_call.1} parent=0 // pred_check_branch
    %10 = sbr.rel (0) target = $region9
  $region8: #{tpu_custom_call.1} parent=0 // pred_region
    _
  $region9: #{tpu_custom_call.1} parent=0 // pred_fallthru
    _
  %v11 = vld [vmem:[%s0] sm:$0xff]
  %v12 = vld [vmem:[%s0 + $0x8] sm:$0xff]
  %v13 = vld [vmem:[%s1] sm:$0xff]
  %v14 = vld [vmem:[%s1 + $0x8] sm:$0xff]
  %v15 = vld [vmem:[%s1 + $0x10] sm:$0xff]
  %v16 = vld [vmem:[%s1 + $0x18] sm:$0xff]
  %v17 = vld [vmem:[%s1 + $0x20] sm:$0xff]
  %v18 = vld [vmem:[%s1 + $0x28] sm:$0xff]
  %v19 = vld [vmem:[%s1 + $0x30] sm:$0xff]
  %v20 = vld [vmem:[%s1 + $0x38] sm:$0xff]
  %v21 = vld [vmem:[%s1 + $0x40] sm:$0xff]
  %v22 = vld [vmem:[%s1 + $0x48] sm:$0xff]
  %v23 = vld [vmem:[%s1 + $0x50] sm:$0xff]
  %v24 = vld [vmem:[%s1 + $0x58] sm:$0xff]
  %v25 = vld [vmem:[%s1 + $0x60] sm:$0xff]
  %v26 = vld [vmem:[%s1 + $0x68] sm:$0xff]
  %v27 = vld [vmem:[%s1 + $0x70] sm:$0xff]
  %v28 = vld [vmem:[%s1 + $0x78] sm:$0xff]
  %v29 = vld [vmem:[%s1 + $0x80] sm:$0xff]
  %v30 = vld [vmem:[%s1 + $0x88] sm:$0xff]
  %v31 = vld [vmem:[%s1 + $0x90] sm:$0xff]
  %v32 = vld [vmem:[%s1 + $0x98] sm:$0xff]
  %v33 = vld [vmem:[%s1 + $0xa0] sm:$0xff]
  %v34 = vld [vmem:[%s1 + $0xa8] sm:$0xff]
  %v35 = vld [vmem:[%s1 + $0xb0] sm:$0xff]
  %v36 = vld [vmem:[%s1 + $0xb8] sm:$0xff]
  %v37 = vld [vmem:[%s1 + $0xc0] sm:$0xff]
  %v38 = vld [vmem:[%s1 + $0xc8] sm:$0xff]
  %v39 = vld [vmem:[%s1 + $0xd0] sm:$0xff]
  %v40 = vld [vmem:[%s1 + $0xd8] sm:$0xff]
  %v41 = vld [vmem:[%s1 + $0xe0] sm:$0xff]
  %v42 = vld [vmem:[%s1 + $0xe8] sm:$0xff]
  %v43 = vld [vmem:[%s1 + $0xf0] sm:$0xff]
  %v44 = vld [vmem:[%s1 + $0xf8] sm:$0xff]
  %v45 = vld [vmem:[%s1 + $0x100] sm:$0xff]
  %v46 = vld [vmem:[%s1 + $0x108] sm:$0xff]
  %v47 = vld [vmem:[%s1 + $0x110] sm:$0xff]
  %v48 = vld [vmem:[%s1 + $0x118] sm:$0xff]
  %v49 = vld [vmem:[%s1 + $0x120] sm:$0xff]
  %v50 = vld [vmem:[%s1 + $0x128] sm:$0xff]
  %v51 = vld [vmem:[%s1 + $0x130] sm:$0xff]
  %v52 = vld [vmem:[%s1 + $0x138] sm:$0xff]
  %v53 = vld [vmem:[%s1 + $0x140] sm:$0xff]
  %v54 = vld [vmem:[%s1 + $0x148] sm:$0xff]
  %v55 = vld [vmem:[%s1 + $0x150] sm:$0xff]
  %v56 = vld [vmem:[%s1 + $0x158] sm:$0xff]
  %v57 = vld [vmem:[%s1 + $0x160] sm:$0xff]
  %v58 = vld [vmem:[%s1 + $0x168] sm:$0xff]
  %v59 = vld [vmem:[%s1 + $0x170] sm:$0xff]
  %v60 = vld [vmem:[%s1 + $0x178] sm:$0xff]
  %v61 = vld [vmem:[%s1 + $0x180] sm:$0xff]
  %v62 = vld [vmem:[%s1 + $0x188] sm:$0xff]
  %v63 = vld [vmem:[%s1 + $0x190] sm:$0xff]
  %v64 = vld [vmem:[%s1 + $0x198] sm:$0xff]
  %v65 = vld [vmem:[%s1 + $0x1a0] sm:$0xff]
  %v66 = vld [vmem:[%s1 + $0x1a8] sm:$0xff]
  %v67 = vld [vmem:[%s1 + $0x1b0] sm:$0xff]
  %v68 = vld [vmem:[%s1 + $0x1b8] sm:$0xff]
  %v69 = vld [vmem:[%s1 + $0x1c0] sm:$0xff]
  %v70 = vld [vmem:[%s1 + $0x1c8] sm:$0xff]
  %v71 = vld [vmem:[%s1 + $0x1d0] sm:$0xff]
  %v72 = vld [vmem:[%s1 + $0x1d8] sm:$0xff]
  %v73 = vld [vmem:[%s1 + $0x1e0] sm:$0xff]
  %v74 = vld [vmem:[%s1 + $0x1e8] sm:$0xff]
  %v75 = vld [vmem:[%s1 + $0x1f0] sm:$0xff]
  %v76 = vld [vmem:[%s1 + $0x1f8] sm:$0xff]
  %v77 = vld [vmem:[%s1 + $0x200] sm:$0xff]
  %v78 = vld [vmem:[%s1 + $0x208] sm:$0xff]
  %v79 = vld [vmem:[%s1 + $0x210] sm:$0xff]
  %v80 = vld [vmem:[%s1 + $0x218] sm:$0xff]
  %v81 = vld [vmem:[%s1 + $0x220] sm:$0xff]
  %v82 = vld [vmem:[%s1 + $0x228] sm:$0xff]
  %v83 = vld [vmem:[%s1 + $0x230] sm:$0xff]
  %v84 = vld [vmem:[%s1 + $0x238] sm:$0xff]
  %v85 = vld [vmem:[%s1 + $0x240] sm:$0xff]
  %v86 = vld [vmem:[%s1 + $0x250] sm:$0xff]
  %v87 = vld [vmem:[%s1 + $0x260] sm:$0xff]
  %v88 = vld [vmem:[%s1 + $0x270] sm:$0xff]
  %v89 = vld [vmem:[%s1 + $0x280] sm:$0xff]
  %v90 = vld [vmem:[%s1 + $0x290] sm:$0xff]
  %v91 = vld [vmem:[%s1 + $0x2a0] sm:$0xff]
  %v92 = vld [vmem:[%s1 + $0x2b0] sm:$0xff]
  %v93 = vld [vmem:[%s1 + $0x2c0] sm:$0xff]
  %v94 = vld [vmem:[%s1 + $0x2d0] sm:$0xff]
  %s95 = scalar_lea.vmem %s1, 736
  %v96 = vld [vmem:[%s95] ss:$8 sm:$0x3]
  %s97 = scalar_lea.vmem %s1, 737
  %v98 = vld [vmem:[%s97] ss:$8 sm:$0x3]
  %v99 = vld [vmem:[%s1 + $0x2e2] ss:$0 sm:$0xff]
  %v100 = vld [vmem:[%s1 + $0x2e3] ss:$0 sm:$0xff]
  %v101 = vld [vmem:[%s1 + $0x2e4] ss:$0 sm:$0xff]
  %v102 = vld [vmem:[%s1 + $0x2e5] ss:$0 sm:$0xff]
  %v103 = vld [vmem:[%s1 + $0x2e6] ss:$0 sm:$0xff]
  %v104 = vld [vmem:[%s1 + $0x2e7] ss:$0 sm:$0xff]
  %v105 = vld [vmem:[%s1 + $0x2f0] ss:$0 sm:$0xff]
  %v108 = vrot.slane %v12, 7
  %vm109 = vcmask 1041409
  %v110 = vsel %vm109, %v108, %v11
  %v112 = vrot.slane %v11, 7
  %v113 = vrot.slane %v12, 6
  %v114 = vsel %vm109, %v113, %v112
  %115 = vrot.lane.b32.xlu0 %v114, 16
  %v116 = vpop.permute.xlu0 %115
  %vm118 = vcmask 130048
  %v119 = vsel %vm118, %v110, %v116
  %vm120 = vcmask 1042434
  %v121 = vsel %vm120, %v108, %v11
  %v123 = vrot.slane %v11, 5
  %v124 = vrot.slane %v12, 4
  %v125 = vsel %vm120, %v124, %v123
  %126 = vrot.lane.b32.xlu0 %v125, 16
  %v127 = vpop.permute.xlu0 %126
  %v129 = vsel %vm118, %v121, %v127
  %vm130 = vcmask 1043459
  %v131 = vsel %vm130, %v108, %v11
  %v133 = vrot.slane %v11, 3
  %v134 = vrot.slane %v12, 2
  %v135 = vsel %vm130, %v134, %v133
  %136 = vrot.lane.b32.xlu0 %v135, 16
  %v137 = vpop.permute.xlu0 %136
  %v139 = vsel %vm118, %v131, %v137
  %vm140 = vcmask 1044484
  %v141 = vsel %vm140, %v108, %v11
  %v143 = vrot.slane %v11, 1
  %v144 = vsel %vm140, %v12, %v143
  %145 = vrot.lane.b32.xlu0 %v144, 16
  %v146 = vpop.permute.xlu0 %145
  %v148 = vsel %vm118, %v141, %v146
  %vm149 = vcmask 1045509
  %v150 = vsel %vm149, %v108, %v11
  %v152 = vsel %vm149, %v113, %v112
  %153 = vrot.lane.b32.xlu0 %v152, 16
  %v154 = vpop.permute.xlu0 %153
  %v156 = vsel %vm118, %v150, %v154
  %vm157 = vcmask 1046534
  %v158 = vsel %vm157, %v108, %v11
  %v160 = vsel %vm157, %v124, %v123
  %161 = vrot.lane.b32.xlu0 %v160, 16
  %v162 = vpop.permute.xlu0 %161
  %v164 = vsel %vm118, %v158, %v162
  %vm165 = vcmask 1047559
  %v166 = vsel %vm165, %v108, %v11
  %v168 = vsel %vm165, %v134, %v133
  %169 = vrot.lane.b32.xlu0 %v168, 16
  %v170 = vpop.permute.xlu0 %169
  %v172 = vsel %vm118, %v166, %v170
  %175 = vrot.lane.b32.xlu0 %v143, 16
  %v176 = vpop.permute.xlu0 %175
  %177 = vrot.lane.b32.xlu0 %v12, 16
  %v178 = vpop.permute.xlu0 %177
  %v181 = vsel %vm118, %v11, %v176
  %v182 = vsel %vm118, %v108, %v178
  %v184 = vrot.slane %v119, 1
  %187 = vst [vmem:[#allocation1] sm:$0xff] %v129
  %s188 = scalar_lea.vmem [#allocation1], 1
  %v189 = vld [vmem:[%s188] ss:$9 sm:$0xff]
  %s190 = scalar_lea.vmem [#allocation1], 2
  %v191 = vld [vmem:[%s190] ss:$9 sm:$0xff]
  %193 = vst [vmem:[#allocation1] sm:$0xff] %v139
  %s194 = scalar_lea.vmem [#allocation1], 2
  %v195 = vld [vmem:[%s194] ss:$9 sm:$0xff]
  %s196 = scalar_lea.vmem [#allocation1], 3
  %v197 = vld [vmem:[%s196] ss:$9 sm:$0xff]
  %199 = vst [vmem:[#allocation1] sm:$0xff] %v148
  %s200 = scalar_lea.vmem [#allocation1], 3
  %v201 = vld [vmem:[%s200] ss:$9 sm:$0xff]
  %s202 = scalar_lea.vmem [#allocation1], 4
  %v203 = vld [vmem:[%s202] ss:$9 sm:$0xff]
  %205 = vst [vmem:[#allocation1] sm:$0xff] %v156
  %s206 = scalar_lea.vmem [#allocation1], 4
  %v207 = vld [vmem:[%s206] ss:$9 sm:$0xff]
  %s208 = scalar_lea.vmem [#allocation1], 5
  %v209 = vld [vmem:[%s208] ss:$9 sm:$0xff]
  %211 = vst [vmem:[#allocation1] sm:$0xff] %v164
  %s212 = scalar_lea.vmem [#allocation1], 5
  %v213 = vld [vmem:[%s212] ss:$9 sm:$0xff]
  %s214 = scalar_lea.vmem [#allocation1], 6
  %v215 = vld [vmem:[%s214] ss:$9 sm:$0xff]
  %217 = vst [vmem:[#allocation1] sm:$0xff] %v172
  %s218 = scalar_lea.vmem [#allocation1], 6
  %v219 = vld [vmem:[%s218] ss:$9 sm:$0xff]
  %s220 = scalar_lea.vmem [#allocation1], 7
  %v221 = vld [vmem:[%s220] ss:$9 sm:$0xff]
  %224 = vst [vmem:[#allocation1] sm:$0xff] %v181
  %s225 = scalar_lea.vmem [#allocation1], 7
  %v226 = vld [vmem:[%s225] ss:$9 sm:$0xff]
  %227 = vst [vmem:[#allocation1] sm:$0xff] %v182
  %v228 = vld [vmem:[#allocation1] ss:$9 sm:$0xff]
  %v229 = vperm.slane %v189, 0
  %v230 = vperm.slane %v191, 0
  %v233 = vperm.slane %v195, 0
  %v234 = vperm.slane %v197, 0
  %v237 = vperm.slane %v201, 0
  %v238 = vperm.slane %v203, 0
  %v241 = vperm.slane %v207, 0
  %v242 = vperm.slane %v209, 0
  %v245 = vperm.slane %v213, 0
  %v246 = vperm.slane %v215, 0
  %v249 = vperm.slane %v219, 0
  %v250 = vperm.slane %v221, 0
  %v253 = vperm.slane %v226, 0
  %v254 = vperm.slane %v228, 0
  %vm257 = vcmask 1040384
  %v258 = vsel %vm257, %v119, %v229
  %v259 = vsel %vm257, %v184, %v230
  %vm260 = vcmask 1041408
  %v261 = vsel %vm260, %v258, %v233
  %v262 = vsel %vm260, %v259, %v234
  %vm263 = vcmask 1042432
  %v264 = vsel %vm263, %v261, %v237
  %v265 = vsel %vm263, %v262, %v238
  %vm266 = vcmask 1043456
  %v267 = vsel %vm266, %v264, %v241
  %v268 = vsel %vm266, %v265, %v242
  %vm269 = vcmask 1044480
  %v270 = vsel %vm269, %v267, %v245
  %v271 = vsel %vm269, %v268, %v246
  %vm272 = vcmask 1045504
  %v273 = vsel %vm272, %v270, %v249
  %v274 = vsel %vm272, %v271, %v250
  %vm275 = vcmask 1046528
  %v276 = vsel %vm275, %v273, %v253
  %v277 = vsel %vm275, %v274, %v254
  %v279 = vperm.slane %v96, 0
  %v280 = vperm.slane %v96, 1
  %vm283 = vcmask 261120
  %v285 = vsel %vm283, %v276, 0
  %v288 = vsel %vm283, %v277, 0
  %290 = vmatpush.msra.mxu0 0.0
  %291 = vmatpush.msra.mxu0 0.0
  %292 = vmatpush.msra.mxu0 0.0
  %293 = vmatpush.msra.mxu0 0.0
  %294 = vmatpush.msra.mxu0 0.0
  %295 = vmatpush.msra.mxu0 0.0
  %296 = vmatpush.msra.mxu0 0.0
  %297 = vmatpush.msra.mxu0 0.0
  %298 = vmatpush.msra.mxu0 0.0
  %299 = vmatpush.msra.mxu0 0.0
  %300 = vmatpush.msra.mxu0 0.0
  %301 = vmatpush.msra.mxu0 0.0
  %302 = vmatpush.msra.mxu0 %v19
  %303 = vmatpush.msra.mxu0 %v17
  %304 = vmatpush.msra.mxu0 %v15
  %305 = vmatpush.msra.mxu0 %v13
  %306 = vmatmul.f32.gmra.mxu0 %v285
  %v307 = vpop.f32.mrf.mxu0
  %v308 = vadd.f32 %v279, %v307
  %309 = vmatmul.f32.gmra.mxu0 %v288
  %v310 = vpop.f32.mrf.mxu0
  %v311 = vadd.f32 %v279, %v310
  %312 = vdwg.mxu0
  %313 = vmatpush.msra.mxu0 0.0
  %314 = vmatpush.msra.mxu0 0.0
  %315 = vmatpush.msra.mxu0 0.0
  %316 = vmatpush.msra.mxu0 0.0
  %317 = vmatpush.msra.mxu0 0.0
  %318 = vmatpush.msra.mxu0 0.0
  %319 = vmatpush.msra.mxu0 0.0
  %320 = vmatpush.msra.mxu0 0.0
  %321 = vmatpush.msra.mxu0 0.0
  %322 = vmatpush.msra.mxu0 0.0
  %323 = vmatpush.msra.mxu0 0.0
  %324 = vmatpush.msra.mxu0 0.0
  %325 = vmatpush.msra.mxu0 %v20
  %326 = vmatpush.msra.mxu0 %v18
  %327 = vmatpush.msra.mxu0 %v16
  %328 = vmatpush.msra.mxu0 %v14
  %329 = vmatmul.f32.gmra.mxu0 %v285
  %v330 = vpop.f32.mrf.mxu0
  %v331 = vadd.f32 %v280, %v330
  %332 = vmatmul.f32.gmra.mxu0 %v288
  %v333 = vpop.f32.mrf.mxu0
  %v334 = vadd.f32 %v280, %v333
  %335 = vdwg.mxu0
  %vm336 = vcmask 523264
  %v338 = vsel %vm336, 0.0, 0
  %340 = vmatpush.msra.mxu0 0.0
  %341 = vmatpush.msra.mxu0 0.0
  %342 = vmatpush.msra.mxu0 0.0
  %343 = vmatpush.msra.mxu0 0.0
  %344 = vmatpush.msra.mxu0 0.0
  %345 = vmatpush.msra.mxu0 0.0
  %346 = vmatpush.msra.mxu0 0.0
  %347 = vmatpush.msra.mxu0 0.0
  %348 = vmatpush.msra.mxu0 %v35
  %349 = vmatpush.msra.mxu0 %v33
  %350 = vmatpush.msra.mxu0 %v31
  %351 = vmatpush.msra.mxu0 %v29
  %352 = vmatpush.msra.mxu0 %v27
  %353 = vmatpush.msra.mxu0 %v25
  %354 = vmatpush.msra.mxu0 %v23
  %355 = vmatpush.msra.mxu0 %v21
  %356 = vmatmul.f32.gmra.mxu0 %v338
  %v357 = vpop.f32.mrf.mxu0
  %v358 = vadd.f32 0.0, %v357
  %359 = vdwg.mxu0
  %360 = vmatpush.msra.mxu0 0.0
  %361 = vmatpush.msra.mxu0 0.0
  %362 = vmatpush.msra.mxu0 0.0
  %363 = vmatpush.msra.mxu0 0.0
  %364 = vmatpush.msra.mxu0 0.0
  %365 = vmatpush.msra.mxu0 0.0
  %366 = vmatpush.msra.mxu0 0.0
  %367 = vmatpush.msra.mxu0 0.0
  %368 = vmatpush.msra.mxu0 %v36
  %369 = vmatpush.msra.mxu0 %v34
  %370 = vmatpush.msra.mxu0 %v32
  %371 = vmatpush.msra.mxu0 %v30
  %372 = vmatpush.msra.mxu0 %v28
  %373 = vmatpush.msra.mxu0 %v26
  %374 = vmatpush.msra.mxu0 %v24
  %375 = vmatpush.msra.mxu0 %v22
  %376 = vmatmul.f32.gmra.mxu0 %v338
  %v377 = vpop.f32.mrf.mxu0
  %v378 = vadd.f32 0.0, %v377
  %379 = vdwg.mxu0
  %v381 = vrot.slane %v358, 1
  %v384 = vadd.f32 %v308, %v358
  %v385 = vadd.f32 %v311, %v381
  %v386 = vxor.u32 %v384, 2147483648
  %v387 = vxor.u32 %v385, 2147483648
  %v388 = vmul.f32 %v386, 1.442695
  %v389 = vpow.pop %v388
  %v390 = vmul.f32 %v387, 1.442695
  %v391 = vpow.pop %v390
  %v392 = vadd.f32 %v389, 1.0
  %v393 = vadd.f32 %v391, 1.0
  %v394 = vrcp.pop %v392
  %v395 = vmul.f32 %v392, %v394
  %v396 = vsub.f32 1.0, %v395
  %v397 = vmul.f32 %v394, %v396
  %v398 = vadd.f32 %v394, %v397
  %vm399 = vweird.f32 %v392
  %vm400 = vweird.f32 %v394
  %vm401 = vmor %vm399, %vm400
  %v402 = vsel %vm401, %v394, %v398
  %v403 = vand.u32 2147483647, %v392
  %vm404 = vcmp.eq.f32.partialorder %v403, 8.507059e+37
  %v405 = vand.u32 %v392, 2147483648
  %v406 = vor.u32 1.1754944e-38, %v405
  %v407 = vsel %vm404, %v406, %v402
  %v408 = vmul.f32 1.0, %v407
  %v409 = vrcp.pop %v393
  %v410 = vmul.f32 %v393, %v409
  %v411 = vsub.f32 1.0, %v410
  %v412 = vmul.f32 %v409, %v411
  %v413 = vadd.f32 %v409, %v412
  %vm414 = vweird.f32 %v393
  %vm415 = vweird.f32 %v409
  %vm416 = vmor %vm414, %vm415
  %v417 = vsel %vm416, %v409, %v413
  %v418 = vand.u32 2147483647, %v393
  %vm419 = vcmp.eq.f32.partialorder %v418, 8.507059e+37
  %v420 = vand.u32 %v393, 2147483648
  %v421 = vor.u32 1.1754944e-38, %v420
  %v422 = vsel %vm419, %v421, %v417
  %v423 = vmul.f32 1.0, %v422
  %v424 = vadd.f32 %v378, %v99
  %v426 = vrot.slane %v424, 1
  %v429 = vmul.f32 %v408, %v424
  %v430 = vmul.f32 %v423, %v426
  %v431 = vadd.f32 %v331, %v429
  %v432 = vadd.f32 %v334, %v430
  %v433 = vtanh.pop %v431
  %v434 = vtanh.pop %v432
  %v435 = vsub.f32 0.0, %v433
  %v436 = vsub.f32 0.0, %v434
  %439 = vrot.lane.b32.xlu0 %v435, 64
  %v440 = vpop.permute.xlu0 %439
  %441 = vrot.lane.b32.xlu0 %v436, 64
  %v442 = vpop.permute.xlu0 %441
  %v445 = vmul.f32 %v408, %v440
  %v446 = vmul.f32 %v423, %v442
  %449 = vrot.lane.b32.xlu0 %v445, 64
  %v450 = vpop.permute.xlu0 %449
  %451 = vrot.lane.b32.xlu0 %v446, 64
  %v452 = vpop.permute.xlu0 %451
  %v455 = vadd.f32 %v433, %v450
  %v456 = vadd.f32 %v434, %v452
  %v459 = vrot.slane %v456, 7
  %v460 = vsel %vm109, %v459, %v455
  %v461 = vsel %vm336, %v460, 0
  %463 = vmatpush.msra.mxu0 0.0
  %464 = vmatpush.msra.mxu0 0.0
  %465 = vmatpush.msra.mxu0 0.0
  %466 = vmatpush.msra.mxu0 0.0
  %467 = vmatpush.msra.mxu0 0.0
  %468 = vmatpush.msra.mxu0 0.0
  %469 = vmatpush.msra.mxu0 0.0
  %470 = vmatpush.msra.mxu0 0.0
  %471 = vmatpush.msra.mxu0 %v35
  %472 = vmatpush.msra.mxu0 %v33
  %473 = vmatpush.msra.mxu0 %v31
  %474 = vmatpush.msra.mxu0 %v29
  %475 = vmatpush.msra.mxu0 %v27
  %476 = vmatpush.msra.mxu0 %v25
  %477 = vmatpush.msra.mxu0 %v23
  %478 = vmatpush.msra.mxu0 %v21
  %479 = vmatmul.f32.gmra.mxu0 %v461
  %v480 = vpop.f32.mrf.mxu0
  %v481 = vadd.f32 0.0, %v480
  %482 = vdwg.mxu0
  %483 = vmatpush.msra.mxu0 0.0
  %484 = vmatpush.msra.mxu0 0.0
  %485 = vmatpush.msra.mxu0 0.0
  %486 = vmatpush.msra.mxu0 0.0
  %487 = vmatpush.msra.mxu0 0.0
  %488 = vmatpush.msra.mxu0 0.0
  %489 = vmatpush.msra.mxu0 0.0
  %490 = vmatpush.msra.mxu0 0.0
  %491 = vmatpush.msra.mxu0 %v36
  %492 = vmatpush.msra.mxu0 %v34
  %493 = vmatpush.msra.mxu0 %v32
  %494 = vmatpush.msra.mxu0 %v30
  %495 = vmatpush.msra.mxu0 %v28
  %496 = vmatpush.msra.mxu0 %v26
  %497 = vmatpush.msra.mxu0 %v24
  %498 = vmatpush.msra.mxu0 %v22
  %499 = vmatmul.f32.gmra.mxu0 %v461
  %v500 = vpop.f32.mrf.mxu0
  %v501 = vadd.f32 0.0, %v500
  %502 = vdwg.mxu0
  %v504 = vrot.slane %v481, 7
  %v507 = vadd.f32 %v308, %v504
  %v508 = vadd.f32 %v311, %v481
  %v509 = vxor.u32 %v507, 2147483648
  %v510 = vxor.u32 %v508, 2147483648
  %v511 = vmul.f32 %v509, 1.442695
  %v512 = vpow.pop %v511
  %v513 = vmul.f32 %v510, 1.442695
  %v514 = vpow.pop %v513
  %v515 = vadd.f32 %v512, 1.0
  %v516 = vadd.f32 %v514, 1.0
  %v517 = vrcp.pop %v515
  %v518 = vmul.f32 %v515, %v517
  %v519 = vsub.f32 1.0, %v518
  %v520 = vmul.f32 %v517, %v519
  %v521 = vadd.f32 %v517, %v520
  %vm522 = vweird.f32 %v515
  %vm523 = vweird.f32 %v517
  %vm524 = vmor %vm522, %vm523
  %v525 = vsel %vm524, %v517, %v521
  %v526 = vand.u32 2147483647, %v515
  %vm527 = vcmp.eq.f32.partialorder %v526, 8.507059e+37
  %v528 = vand.u32 %v515, 2147483648
  %v529 = vor.u32 1.1754944e-38, %v528
  %v530 = vsel %vm527, %v529, %v525
  %v531 = vmul.f32 1.0, %v530
  %v532 = vrcp.pop %v516
  %v533 = vmul.f32 %v516, %v532
  %v534 = vsub.f32 1.0, %v533
  %v535 = vmul.f32 %v532, %v534
  %v536 = vadd.f32 %v532, %v535
  %vm537 = vweird.f32 %v516
  %vm538 = vweird.f32 %v532
  %vm539 = vmor %vm537, %vm538
  %v540 = vsel %vm539, %v532, %v536
  %v541 = vand.u32 2147483647, %v516
  %vm542 = vcmp.eq.f32.partialorder %v541, 8.507059e+37
  %v543 = vand.u32 %v516, 2147483648
  %v544 = vor.u32 1.1754944e-38, %v543
  %v545 = vsel %vm542, %v544, %v540
  %v546 = vmul.f32 1.0, %v545
  %v547 = vadd.f32 %v501, %v99
  %v549 = vrot.slane %v547, 7
  %v552 = vmul.f32 %v531, %v549
  %v553 = vmul.f32 %v546, %v547
  %v554 = vadd.f32 %v331, %v552
  %v555 = vadd.f32 %v334, %v553
  %v556 = vtanh.pop %v554
  %v557 = vtanh.pop %v555
  %v560 = vrot.slane %v556, 1
  %v561 = vrot.slane %v557, 1
  %v564 = vsub.f32 %v455, %v560
  %v565 = vsub.f32 %v456, %v561
  %v568 = vrot.slane %v564, 7
  %v569 = vrot.slane %v565, 7
  %570 = vrot.lane.b32.xlu0 %v568, 64
  %v571 = vpop.permute.xlu0 %570
  %572 = vrot.lane.b32.xlu0 %v569, 64
  %v573 = vpop.permute.xlu0 %572
  %v576 = vmul.f32 %v531, %v571
  %v577 = vmul.f32 %v546, %v573
  %580 = vrot.lane.b32.xlu0 %v576, 64
  %v581 = vpop.permute.xlu0 %580
  %582 = vrot.lane.b32.xlu0 %v577, 64
  %v583 = vpop.permute.xlu0 %582
  %v586 = vadd.f32 %v556, %v581
  %v587 = vadd.f32 %v557, %v583
  %v590 = vrot.slane %v586, 1
  %v591 = vsel %vm109, %v587, %v590
  %v592 = vsel %vm336, %v591, 0
  %594 = vmatpush.msra.mxu0 0.0
  %595 = vmatpush.msra.mxu0 0.0
  %596 = vmatpush.msra.mxu0 0.0
  %597 = vmatpush.msra.mxu0 0.0
  %598 = vmatpush.msra.mxu0 0.0
  %599 = vmatpush.msra.mxu0 0.0
  %600 = vmatpush.msra.mxu0 0.0
  %601 = vmatpush.msra.mxu0 0.0
  %602 = vmatpush.msra.mxu0 %v35
  %603 = vmatpush.msra.mxu0 %v33
  %604 = vmatpush.msra.mxu0 %v31
  %605 = vmatpush.msra.mxu0 %v29
  %606 = vmatpush.msra.mxu0 %v27
  %607 = vmatpush.msra.mxu0 %v25
  %608 = vmatpush.msra.mxu0 %v23
  %609 = vmatpush.msra.mxu0 %v21
  %610 = vmatmul.f32.gmra.mxu0 %v592
  %v611 = vpop.f32.mrf.mxu0
  %v612 = vadd.f32 0.0, %v611
  %613 = vdwg.mxu0
  %614 = vmatpush.msra.mxu0 0.0
  %615 = vmatpush.msra.mxu0 0.0
  %616 = vmatpush.msra.mxu0 0.0
  %617 = vmatpush.msra.mxu0 0.0
  %618 = vmatpush.msra.mxu0 0.0
  %619 = vmatpush.msra.mxu0 0.0
  %620 = vmatpush.msra.mxu0 0.0
  %621 = vmatpush.msra.mxu0 0.0
  %622 = vmatpush.msra.mxu0 %v36
  %623 = vmatpush.msra.mxu0 %v34
  %624 = vmatpush.msra.mxu0 %v32
  %625 = vmatpush.msra.mxu0 %v30
  %626 = vmatpush.msra.mxu0 %v28
  %627 = vmatpush.msra.mxu0 %v26
  %628 = vmatpush.msra.mxu0 %v24
  %629 = vmatpush.msra.mxu0 %v22
  %630 = vmatmul.f32.gmra.mxu0 %v592
  %v631 = vpop.f32.mrf.mxu0
  %v632 = vadd.f32 0.0, %v631
  %633 = vdwg.mxu0
  %v635 = vrot.slane %v612, 6
  %v636 = vrot.slane %v612, 7
  %v639 = vadd.f32 %v308, %v635
  %v640 = vadd.f32 %v311, %v636
  %v641 = vxor.u32 %v639, 2147483648
  %v642 = vxor.u32 %v640, 2147483648
  %v643 = vmul.f32 %v641, 1.442695
  %v644 = vpow.pop %v643
  %v645 = vmul.f32 %v642, 1.442695
  %v646 = vpow.pop %v645
  %v647 = vadd.f32 %v644, 1.0
  %v648 = vadd.f32 %v646, 1.0
  %v649 = vrcp.pop %v647
  %v650 = vmul.f32 %v647, %v649
  %v651 = vsub.f32 1.0, %v650
  %v652 = vmul.f32 %v649, %v651
  %v653 = vadd.f32 %v649, %v652
  %vm654 = vweird.f32 %v647
  %vm655 = vweird.f32 %v649
  %vm656 = vmor %vm654, %vm655
  %v657 = vsel %vm656, %v649, %v653
  %v658 = vand.u32 2147483647, %v647
  %vm659 = vcmp.eq.f32.partialorder %v658, 8.507059e+37
  %v660 = vand.u32 %v647, 2147483648
  %v661 = vor.u32 1.1754944e-38, %v660
  %v662 = vsel %vm659, %v661, %v657
  %v663 = vmul.f32 1.0, %v662
  %v664 = vrcp.pop %v648
  %v665 = vmul.f32 %v648, %v664
  %v666 = vsub.f32 1.0, %v665
  %v667 = vmul.f32 %v664, %v666
  %v668 = vadd.f32 %v664, %v667
  %vm669 = vweird.f32 %v648
  %vm670 = vweird.f32 %v664
  %vm671 = vmor %vm669, %vm670
  %v672 = vsel %vm671, %v664, %v668
  %v673 = vand.u32 2147483647, %v648
  %vm674 = vcmp.eq.f32.partialorder %v673, 8.507059e+37
  %v675 = vand.u32 %v648, 2147483648
  %v676 = vor.u32 1.1754944e-38, %v675
  %v677 = vsel %vm674, %v676, %v672
  %v678 = vmul.f32 1.0, %v677
  %v679 = vadd.f32 %v632, %v99
  %v681 = vrot.slane %v679, 6
  %v682 = vrot.slane %v679, 7
  %v685 = vmul.f32 %v663, %v681
  %v686 = vmul.f32 %v678, %v682
  %v687 = vadd.f32 %v331, %v685
  %v688 = vadd.f32 %v334, %v686
  %v689 = vtanh.pop %v687
  %v690 = vtanh.pop %v688
  %v693 = vrot.slane %v689, 1
  %v694 = vrot.slane %v690, 1
  %v697 = vsub.f32 %v586, %v693
  %v698 = vsub.f32 %v587, %v694
  %v701 = vrot.slane %v697, 7
  %v702 = vrot.slane %v698, 7
  %703 = vrot.lane.b32.xlu0 %v701, 64
  %v704 = vpop.permute.xlu0 %703
  %705 = vrot.lane.b32.xlu0 %v702, 64
  %v706 = vpop.permute.xlu0 %705
  %v709 = vmul.f32 %v663, %v704
  %v710 = vmul.f32 %v678, %v706
  %713 = vrot.lane.b32.xlu0 %v709, 64
  %v714 = vpop.permute.xlu0 %713
  %715 = vrot.lane.b32.xlu0 %v710, 64
  %v716 = vpop.permute.xlu0 %715
  %v719 = vadd.f32 %v689, %v714
  %v720 = vadd.f32 %v690, %v716
  %v723 = vrot.slane %v719, 2
  %v724 = vrot.slane %v720, 1
  %v725 = vsel %vm109, %v724, %v723
  %v726 = vsel %vm336, %v725, 0
  %728 = vmatpush.msra.mxu0 0.0
  %729 = vmatpush.msra.mxu0 0.0
  %730 = vmatpush.msra.mxu0 0.0
  %731 = vmatpush.msra.mxu0 0.0
  %732 = vmatpush.msra.mxu0 0.0
  %733 = vmatpush.msra.mxu0 0.0
  %734 = vmatpush.msra.mxu0 0.0
  %735 = vmatpush.msra.mxu0 0.0
  %736 = vmatpush.msra.mxu0 %v35
  %737 = vmatpush.msra.mxu0 %v33
  %738 = vmatpush.msra.mxu0 %v31
  %739 = vmatpush.msra.mxu0 %v29
  %740 = vmatpush.msra.mxu0 %v27
  %741 = vmatpush.msra.mxu0 %v25
  %742 = vmatpush.msra.mxu0 %v23
  %743 = vmatpush.msra.mxu0 %v21
  %744 = vmatmul.f32.gmra.mxu0 %v726
  %v745 = vpop.f32.mrf.mxu0
  %v746 = vadd.f32 0.0, %v745
  %747 = vdwg.mxu0
  %748 = vmatpush.msra.mxu0 0.0
  %749 = vmatpush.msra.mxu0 0.0
  %750 = vmatpush.msra.mxu0 0.0
  %751 = vmatpush.msra.mxu0 0.0
  %752 = vmatpush.msra.mxu0 0.0
  %753 = vmatpush.msra.mxu0 0.0
  %754 = vmatpush.msra.mxu0 0.0
  %755 = vmatpush.msra.mxu0 0.0
  %756 = vmatpush.msra.mxu0 %v36
  %757 = vmatpush.msra.mxu0 %v34
  %758 = vmatpush.msra.mxu0 %v32
  %759 = vmatpush.msra.mxu0 %v30
  %760 = vmatpush.msra.mxu0 %v28
  %761 = vmatpush.msra.mxu0 %v26
  %762 = vmatpush.msra.mxu0 %v24
  %763 = vmatpush.msra.mxu0 %v22
  %764 = vmatmul.f32.gmra.mxu0 %v726
  %v765 = vpop.f32.mrf.mxu0
  %v766 = vadd.f32 0.0, %v765
  %767 = vdwg.mxu0
  %v769 = vrot.slane %v746, 5
  %v770 = vrot.slane %v746, 6
  %v773 = vadd.f32 %v308, %v769
  %v774 = vadd.f32 %v311, %v770
  %v775 = vxor.u32 %v773, 2147483648
  %v776 = vxor.u32 %v774, 2147483648
  %v777 = vmul.f32 %v775, 1.442695
  %v778 = vpow.pop %v777
  %v779 = vmul.f32 %v776, 1.442695
  %v780 = vpow.pop %v779
  %v781 = vadd.f32 %v778, 1.0
  %v782 = vadd.f32 %v780, 1.0
  %v783 = vrcp.pop %v781
  %v784 = vmul.f32 %v781, %v783
  %v785 = vsub.f32 1.0, %v784
  %v786 = vmul.f32 %v783, %v785
  %v787 = vadd.f32 %v783, %v786
  %vm788 = vweird.f32 %v781
  %vm789 = vweird.f32 %v783
  %vm790 = vmor %vm788, %vm789
  %v791 = vsel %vm790, %v783, %v787
  %v792 = vand.u32 2147483647, %v781
  %vm793 = vcmp.eq.f32.partialorder %v792, 8.507059e+37
  %v794 = vand.u32 %v781, 2147483648
  %v795 = vor.u32 1.1754944e-38, %v794
  %v796 = vsel %vm793, %v795, %v791
  %v797 = vmul.f32 1.0, %v796
  %v798 = vrcp.pop %v782
  %v799 = vmul.f32 %v782, %v798
  %v800 = vsub.f32 1.0, %v799
  %v801 = vmul.f32 %v798, %v800
  %v802 = vadd.f32 %v798, %v801
  %vm803 = vweird.f32 %v782
  %vm804 = vweird.f32 %v798
  %vm805 = vmor %vm803, %vm804
  %v806 = vsel %vm805, %v798, %v802
  %v807 = vand.u32 2147483647, %v782
  %vm808 = vcmp.eq.f32.partialorder %v807, 8.507059e+37
  %v809 = vand.u32 %v782, 2147483648
  %v810 = vor.u32 1.1754944e-38, %v809
  %v811 = vsel %vm808, %v810, %v806
  %v812 = vmul.f32 1.0, %v811
  %v813 = vadd.f32 %v766, %v99
  %v815 = vrot.slane %v813, 5
  %v816 = vrot.slane %v813, 6
  %v819 = vmul.f32 %v797, %v815
  %v820 = vmul.f32 %v812, %v816
  %v821 = vadd.f32 %v331, %v819
  %v822 = vadd.f32 %v334, %v820
  %v823 = vtanh.pop %v821
  %v824 = vtanh.pop %v822
  %v827 = vrot.slane %v823, 1
  %v828 = vrot.slane %v824, 1
  %v831 = vsub.f32 %v719, %v827
  %v832 = vsub.f32 %v720, %v828
  %v835 = vrot.slane %v831, 7
  %v836 = vrot.slane %v832, 7
  %837 = vrot.lane.b32.xlu0 %v835, 64
  %v838 = vpop.permute.xlu0 %837
  %839 = vrot.lane.b32.xlu0 %v836, 64
  %v840 = vpop.permute.xlu0 %839
  %v843 = vmul.f32 %v797, %v838
  %v844 = vmul.f32 %v812, %v840
  %847 = vrot.lane.b32.xlu0 %v843, 64
  %v848 = vpop.permute.xlu0 %847
  %849 = vrot.lane.b32.xlu0 %v844, 64
  %v850 = vpop.permute.xlu0 %849
  %v853 = vadd.f32 %v823, %v848
  %v854 = vadd.f32 %v824, %v850
  %v857 = vrot.slane %v853, 3
  %v858 = vrot.slane %v854, 2
  %v859 = vsel %vm109, %v858, %v857
  %v860 = vsel %vm336, %v859, 0
  %862 = vmatpush.msra.mxu0 0.0
  %863 = vmatpush.msra.mxu0 0.0
  %864 = vmatpush.msra.mxu0 0.0
  %865 = vmatpush.msra.mxu0 0.0
  %866 = vmatpush.msra.mxu0 0.0
  %867 = vmatpush.msra.mxu0 0.0
  %868 = vmatpush.msra.mxu0 0.0
  %869 = vmatpush.msra.mxu0 0.0
  %870 = vmatpush.msra.mxu0 %v35
  %871 = vmatpush.msra.mxu0 %v33
  %872 = vmatpush.msra.mxu0 %v31
  %873 = vmatpush.msra.mxu0 %v29
  %874 = vmatpush.msra.mxu0 %v27
  %875 = vmatpush.msra.mxu0 %v25
  %876 = vmatpush.msra.mxu0 %v23
  %877 = vmatpush.msra.mxu0 %v21
  %878 = vmatmul.f32.gmra.mxu0 %v860
  %v879 = vpop.f32.mrf.mxu0
  %v880 = vadd.f32 0.0, %v879
  %881 = vdwg.mxu0
  %882 = vmatpush.msra.mxu0 0.0
  %883 = vmatpush.msra.mxu0 0.0
  %884 = vmatpush.msra.mxu0 0.0
  %885 = vmatpush.msra.mxu0 0.0
  %886 = vmatpush.msra.mxu0 0.0
  %887 = vmatpush.msra.mxu0 0.0
  %888 = vmatpush.msra.mxu0 0.0
  %889 = vmatpush.msra.mxu0 0.0
  %890 = vmatpush.msra.mxu0 %v36
  %891 = vmatpush.msra.mxu0 %v34
  %892 = vmatpush.msra.mxu0 %v32
  %893 = vmatpush.msra.mxu0 %v30
  %894 = vmatpush.msra.mxu0 %v28
  %895 = vmatpush.msra.mxu0 %v26
  %896 = vmatpush.msra.mxu0 %v24
  %897 = vmatpush.msra.mxu0 %v22
  %898 = vmatmul.f32.gmra.mxu0 %v860
  %v899 = vpop.f32.mrf.mxu0
  %v900 = vadd.f32 0.0, %v899
  %901 = vdwg.mxu0
  %v903 = vrot.slane %v880, 4
  %v904 = vrot.slane %v880, 5
  %v907 = vadd.f32 %v308, %v903
  %v908 = vadd.f32 %v311, %v904
  %v909 = vxor.u32 %v907, 2147483648
  %v910 = vxor.u32 %v908, 2147483648
  %v911 = vmul.f32 %v909, 1.442695
  %v912 = vpow.pop %v911
  %v913 = vmul.f32 %v910, 1.442695
  %v914 = vpow.pop %v913
  %v915 = vadd.f32 %v912, 1.0
  %v916 = vadd.f32 %v914, 1.0
  %v917 = vrcp.pop %v915
  %v918 = vmul.f32 %v915, %v917
  %v919 = vsub.f32 1.0, %v918
  %v920 = vmul.f32 %v917, %v919
  %v921 = vadd.f32 %v917, %v920
  %vm922 = vweird.f32 %v915
  %vm923 = vweird.f32 %v917
  %vm924 = vmor %vm922, %vm923
  %v925 = vsel %vm924, %v917, %v921
  %v926 = vand.u32 2147483647, %v915
  %vm927 = vcmp.eq.f32.partialorder %v926, 8.507059e+37
  %v928 = vand.u32 %v915, 2147483648
  %v929 = vor.u32 1.1754944e-38, %v928
  %v930 = vsel %vm927, %v929, %v925
  %v931 = vmul.f32 1.0, %v930
  %v932 = vrcp.pop %v916
  %v933 = vmul.f32 %v916, %v932
  %v934 = vsub.f32 1.0, %v933
  %v935 = vmul.f32 %v932, %v934
  %v936 = vadd.f32 %v932, %v935
  %vm937 = vweird.f32 %v916
  %vm938 = vweird.f32 %v932
  %vm939 = vmor %vm937, %vm938
  %v940 = vsel %vm939, %v932, %v936
  %v941 = vand.u32 2147483647, %v916
  %vm942 = vcmp.eq.f32.partialorder %v941, 8.507059e+37
  %v943 = vand.u32 %v916, 2147483648
  %v944 = vor.u32 1.1754944e-38, %v943
  %v945 = vsel %vm942, %v944, %v940
  %v946 = vmul.f32 1.0, %v945
  %v947 = vadd.f32 %v900, %v99
  %v949 = vrot.slane %v947, 4
  %v950 = vrot.slane %v947, 5
  %v953 = vmul.f32 %v931, %v949
  %v954 = vmul.f32 %v946, %v950
  %v955 = vadd.f32 %v331, %v953
  %v956 = vadd.f32 %v334, %v954
  %v957 = vtanh.pop %v955
  %v958 = vtanh.pop %v956
  %v961 = vrot.slane %v957, 1
  %v962 = vrot.slane %v958, 1
  %v965 = vsub.f32 %v853, %v961
  %v966 = vsub.f32 %v854, %v962
  %v969 = vrot.slane %v965, 7
  %v970 = vrot.slane %v966, 7
  %971 = vrot.lane.b32.xlu0 %v969, 64
  %v972 = vpop.permute.xlu0 %971
  %973 = vrot.lane.b32.xlu0 %v970, 64
  %v974 = vpop.permute.xlu0 %973
  %v977 = vmul.f32 %v931, %v972
  %v978 = vmul.f32 %v946, %v974
  %981 = vrot.lane.b32.xlu0 %v977, 64
  %v982 = vpop.permute.xlu0 %981
  %983 = vrot.lane.b32.xlu0 %v978, 64
  %v984 = vpop.permute.xlu0 %983
  %v987 = vadd.f32 %v957, %v982
  %v988 = vadd.f32 %v958, %v984
  %v991 = vrot.slane %v987, 4
  %v992 = vrot.slane %v988, 3
  %v993 = vsel %vm109, %v992, %v991
  %v994 = vsel %vm336, %v993, 0
  %996 = vmatpush.msra.mxu0 0.0
  %997 = vmatpush.msra.mxu0 0.0
  %998 = vmatpush.msra.mxu0 0.0
  %999 = vmatpush.msra.mxu0 0.0
  %1000 = vmatpush.msra.mxu0 0.0
  %1001 = vmatpush.msra.mxu0 0.0
  %1002 = vmatpush.msra.mxu0 0.0
  %1003 = vmatpush.msra.mxu0 0.0
  %1004 = vmatpush.msra.mxu0 %v35
  %1005 = vmatpush.msra.mxu0 %v33
  %1006 = vmatpush.msra.mxu0 %v31
  %1007 = vmatpush.msra.mxu0 %v29
  %1008 = vmatpush.msra.mxu0 %v27
  %1009 = vmatpush.msra.mxu0 %v25
  %1010 = vmatpush.msra.mxu0 %v23
  %1011 = vmatpush.msra.mxu0 %v21
  %1012 = vmatmul.f32.gmra.mxu0 %v994
  %v1013 = vpop.f32.mrf.mxu0
  %v1014 = vadd.f32 0.0, %v1013
  %1015 = vdwg.mxu0
  %1016 = vmatpush.msra.mxu0 0.0
  %1017 = vmatpush.msra.mxu0 0.0
  %1018 = vmatpush.msra.mxu0 0.0
  %1019 = vmatpush.msra.mxu0 0.0
  %1020 = vmatpush.msra.mxu0 0.0
  %1021 = vmatpush.msra.mxu0 0.0
  %1022 = vmatpush.msra.mxu0 0.0
  %1023 = vmatpush.msra.mxu0 0.0
  %1024 = vmatpush.msra.mxu0 %v36
  %1025 = vmatpush.msra.mxu0 %v34
  %1026 = vmatpush.msra.mxu0 %v32
  %1027 = vmatpush.msra.mxu0 %v30
  %1028 = vmatpush.msra.mxu0 %v28
  %1029 = vmatpush.msra.mxu0 %v26
  %1030 = vmatpush.msra.mxu0 %v24
  %1031 = vmatpush.msra.mxu0 %v22
  %1032 = vmatmul.f32.gmra.mxu0 %v994
  %v1033 = vpop.f32.mrf.mxu0
  %v1034 = vadd.f32 0.0, %v1033
  %1035 = vdwg.mxu0
  %v1037 = vrot.slane %v1014, 3
  %v1038 = vrot.slane %v1014, 4
  %v1041 = vadd.f32 %v308, %v1037
  %v1042 = vadd.f32 %v311, %v1038
  %v1043 = vxor.u32 %v1041, 2147483648
  %v1044 = vxor.u32 %v1042, 2147483648
  %v1045 = vmul.f32 %v1043, 1.442695
  %v1046 = vpow.pop %v1045
  %v1047 = vmul.f32 %v1044, 1.442695
  %v1048 = vpow.pop %v1047
  %v1049 = vadd.f32 %v1046, 1.0
  %v1050 = vadd.f32 %v1048, 1.0
  %v1051 = vrcp.pop %v1049
  %v1052 = vmul.f32 %v1049, %v1051
  %v1053 = vsub.f32 1.0, %v1052
  %v1054 = vmul.f32 %v1051, %v1053
  %v1055 = vadd.f32 %v1051, %v1054
  %vm1056 = vweird.f32 %v1049
  %vm1057 = vweird.f32 %v1051
  %vm1058 = vmor %vm1056, %vm1057
  %v1059 = vsel %vm1058, %v1051, %v1055
  %v1060 = vand.u32 2147483647, %v1049
  %vm1061 = vcmp.eq.f32.partialorder %v1060, 8.507059e+37
  %v1062 = vand.u32 %v1049, 2147483648
  %v1063 = vor.u32 1.1754944e-38, %v1062
  %v1064 = vsel %vm1061, %v1063, %v1059
  %v1065 = vmul.f32 1.0, %v1064
  %v1066 = vrcp.pop %v1050
  %v1067 = vmul.f32 %v1050, %v1066
  %v1068 = vsub.f32 1.0, %v1067
  %v1069 = vmul.f32 %v1066, %v1068
  %v1070 = vadd.f32 %v1066, %v1069
  %vm1071 = vweird.f32 %v1050
  %vm1072 = vweird.f32 %v1066
  %vm1073 = vmor %vm1071, %vm1072
  %v1074 = vsel %vm1073, %v1066, %v1070
  %v1075 = vand.u32 2147483647, %v1050
  %vm1076 = vcmp.eq.f32.partialorder %v1075, 8.507059e+37
  %v1077 = vand.u32 %v1050, 2147483648
  %v1078 = vor.u32 1.1754944e-38, %v1077
  %v1079 = vsel %vm1076, %v1078, %v1074
  %v1080 = vmul.f32 1.0, %v1079
  %v1081 = vadd.f32 %v1034, %v99
  %v1083 = vrot.slane %v1081, 3
  %v1084 = vrot.slane %v1081, 4
  %v1087 = vmul.f32 %v1065, %v1083
  %v1088 = vmul.f32 %v1080, %v1084
  %v1089 = vadd.f32 %v331, %v1087
  %v1090 = vadd.f32 %v334, %v1088
  %v1091 = vtanh.pop %v1089
  %v1092 = vtanh.pop %v1090
  %v1095 = vrot.slane %v1091, 1
  %v1096 = vrot.slane %v1092, 1
  %v1099 = vsub.f32 %v987, %v1095
  %v1100 = vsub.f32 %v988, %v1096
  %v1103 = vrot.slane %v1099, 7
  %v1104 = vrot.slane %v1100, 7
  %1105 = vrot.lane.b32.xlu0 %v1103, 64
  %v1106 = vpop.permute.xlu0 %1105
  %1107 = vrot.lane.b32.xlu0 %v1104, 64
  %v1108 = vpop.permute.xlu0 %1107
  %v1111 = vmul.f32 %v1065, %v1106
  %v1112 = vmul.f32 %v1080, %v1108
  %1115 = vrot.lane.b32.xlu0 %v1111, 64
  %v1116 = vpop.permute.xlu0 %1115
  %1117 = vrot.lane.b32.xlu0 %v1112, 64
  %v1118 = vpop.permute.xlu0 %1117
  %v1121 = vadd.f32 %v1091, %v1116
  %v1122 = vadd.f32 %v1092, %v1118
  %v1125 = vrot.slane %v1121, 5
  %v1126 = vrot.slane %v1122, 4
  %v1127 = vsel %vm109, %v1126, %v1125
  %v1128 = vsel %vm336, %v1127, 0
  %1130 = vmatpush.msra.mxu0 0.0
  %1131 = vmatpush.msra.mxu0 0.0
  %1132 = vmatpush.msra.mxu0 0.0
  %1133 = vmatpush.msra.mxu0 0.0
  %1134 = vmatpush.msra.mxu0 0.0
  %1135 = vmatpush.msra.mxu0 0.0
  %1136 = vmatpush.msra.mxu0 0.0
  %1137 = vmatpush.msra.mxu0 0.0
  %1138 = vmatpush.msra.mxu0 %v35
  %1139 = vmatpush.msra.mxu0 %v33
  %1140 = vmatpush.msra.mxu0 %v31
  %1141 = vmatpush.msra.mxu0 %v29
  %1142 = vmatpush.msra.mxu0 %v27
  %1143 = vmatpush.msra.mxu0 %v25
  %1144 = vmatpush.msra.mxu0 %v23
  %1145 = vmatpush.msra.mxu0 %v21
  %1146 = vmatmul.f32.gmra.mxu0 %v1128
  %v1147 = vpop.f32.mrf.mxu0
  %v1148 = vadd.f32 0.0, %v1147
  %1149 = vdwg.mxu0
  %1150 = vmatpush.msra.mxu0 0.0
  %1151 = vmatpush.msra.mxu0 0.0
  %1152 = vmatpush.msra.mxu0 0.0
  %1153 = vmatpush.msra.mxu0 0.0
  %1154 = vmatpush.msra.mxu0 0.0
  %1155 = vmatpush.msra.mxu0 0.0
  %1156 = vmatpush.msra.mxu0 0.0
  %1157 = vmatpush.msra.mxu0 0.0
  %1158 = vmatpush.msra.mxu0 %v36
  %1159 = vmatpush.msra.mxu0 %v34
  %1160 = vmatpush.msra.mxu0 %v32
  %1161 = vmatpush.msra.mxu0 %v30
  %1162 = vmatpush.msra.mxu0 %v28
  %1163 = vmatpush.msra.mxu0 %v26
  %1164 = vmatpush.msra.mxu0 %v24
  %1165 = vmatpush.msra.mxu0 %v22
  %1166 = vmatmul.f32.gmra.mxu0 %v1128
  %v1167 = vpop.f32.mrf.mxu0
  %v1168 = vadd.f32 0.0, %v1167
  %1169 = vdwg.mxu0
  %v1171 = vrot.slane %v1148, 2
  %v1172 = vrot.slane %v1148, 3
  %v1175 = vadd.f32 %v308, %v1171
  %v1176 = vadd.f32 %v311, %v1172
  %v1177 = vxor.u32 %v1175, 2147483648
  %v1178 = vxor.u32 %v1176, 2147483648
  %v1179 = vmul.f32 %v1177, 1.442695
  %v1180 = vpow.pop %v1179
  %v1181 = vmul.f32 %v1178, 1.442695
  %v1182 = vpow.pop %v1181
  %v1183 = vadd.f32 %v1180, 1.0
  %v1184 = vadd.f32 %v1182, 1.0
  %v1185 = vrcp.pop %v1183
  %v1186 = vmul.f32 %v1183, %v1185
  %v1187 = vsub.f32 1.0, %v1186
  %v1188 = vmul.f32 %v1185, %v1187
  %v1189 = vadd.f32 %v1185, %v1188
  %vm1190 = vweird.f32 %v1183
  %vm1191 = vweird.f32 %v1185
  %vm1192 = vmor %vm1190, %vm1191
  %v1193 = vsel %vm1192, %v1185, %v1189
  %v1194 = vand.u32 2147483647, %v1183
  %vm1195 = vcmp.eq.f32.partialorder %v1194, 8.507059e+37
  %v1196 = vand.u32 %v1183, 2147483648
  %v1197 = vor.u32 1.1754944e-38, %v1196
  %v1198 = vsel %vm1195, %v1197, %v1193
  %v1199 = vmul.f32 1.0, %v1198
  %v1200 = vrcp.pop %v1184
  %v1201 = vmul.f32 %v1184, %v1200
  %v1202 = vsub.f32 1.0, %v1201
  %v1203 = vmul.f32 %v1200, %v1202
  %v1204 = vadd.f32 %v1200, %v1203
  %vm1205 = vweird.f32 %v1184
  %vm1206 = vweird.f32 %v1200
  %vm1207 = vmor %vm1205, %vm1206
  %v1208 = vsel %vm1207, %v1200, %v1204
  %v1209 = vand.u32 2147483647, %v1184
  %vm1210 = vcmp.eq.f32.partialorder %v1209, 8.507059e+37
  %v1211 = vand.u32 %v1184, 2147483648
  %v1212 = vor.u32 1.1754944e-38, %v1211
  %v1213 = vsel %vm1210, %v1212, %v1208
  %v1214 = vmul.f32 1.0, %v1213
  %v1215 = vadd.f32 %v1168, %v99
  %v1217 = vrot.slane %v1215, 2
  %v1218 = vrot.slane %v1215, 3
  %v1221 = vmul.f32 %v1199, %v1217
  %v1222 = vmul.f32 %v1214, %v1218
  %v1223 = vadd.f32 %v331, %v1221
  %v1224 = vadd.f32 %v334, %v1222
  %v1225 = vtanh.pop %v1223
  %v1226 = vtanh.pop %v1224
  %v1229 = vrot.slane %v1225, 1
  %v1230 = vrot.slane %v1226, 1
  %v1233 = vsub.f32 %v1121, %v1229
  %v1234 = vsub.f32 %v1122, %v1230
  %v1237 = vrot.slane %v1233, 7
  %v1238 = vrot.slane %v1234, 7
  %1239 = vrot.lane.b32.xlu0 %v1237, 64
  %v1240 = vpop.permute.xlu0 %1239
  %1241 = vrot.lane.b32.xlu0 %v1238, 64
  %v1242 = vpop.permute.xlu0 %1241
  %v1245 = vmul.f32 %v1199, %v1240
  %v1246 = vmul.f32 %v1214, %v1242
  %1249 = vrot.lane.b32.xlu0 %v1245, 64
  %v1250 = vpop.permute.xlu0 %1249
  %1251 = vrot.lane.b32.xlu0 %v1246, 64
  %v1252 = vpop.permute.xlu0 %1251
  %v1255 = vadd.f32 %v1225, %v1250
  %v1256 = vadd.f32 %v1226, %v1252
  %v1259 = vrot.slane %v1255, 6
  %v1260 = vrot.slane %v1256, 5
  %v1261 = vsel %vm109, %v1260, %v1259
  %v1262 = vsel %vm336, %v1261, 0
  %1264 = vmatpush.msra.mxu0 0.0
  %1265 = vmatpush.msra.mxu0 0.0
  %1266 = vmatpush.msra.mxu0 0.0
  %1267 = vmatpush.msra.mxu0 0.0
  %1268 = vmatpush.msra.mxu0 0.0
  %1269 = vmatpush.msra.mxu0 0.0
  %1270 = vmatpush.msra.mxu0 0.0
  %1271 = vmatpush.msra.mxu0 0.0
  %1272 = vmatpush.msra.mxu0 %v35
  %1273 = vmatpush.msra.mxu0 %v33
  %1274 = vmatpush.msra.mxu0 %v31
  %1275 = vmatpush.msra.mxu0 %v29
  %1276 = vmatpush.msra.mxu0 %v27
  %1277 = vmatpush.msra.mxu0 %v25
  %1278 = vmatpush.msra.mxu0 %v23
  %1279 = vmatpush.msra.mxu0 %v21
  %1280 = vmatmul.f32.gmra.mxu0 %v1262
  %v1281 = vpop.f32.mrf.mxu0
  %v1282 = vadd.f32 0.0, %v1281
  %1283 = vdwg.mxu0
  %1284 = vmatpush.msra.mxu0 0.0
  %1285 = vmatpush.msra.mxu0 0.0
  %1286 = vmatpush.msra.mxu0 0.0
  %1287 = vmatpush.msra.mxu0 0.0
  %1288 = vmatpush.msra.mxu0 0.0
  %1289 = vmatpush.msra.mxu0 0.0
  %1290 = vmatpush.msra.mxu0 0.0
  %1291 = vmatpush.msra.mxu0 0.0
  %1292 = vmatpush.msra.mxu0 %v36
  %1293 = vmatpush.msra.mxu0 %v34
  %1294 = vmatpush.msra.mxu0 %v32
  %1295 = vmatpush.msra.mxu0 %v30
  %1296 = vmatpush.msra.mxu0 %v28
  %1297 = vmatpush.msra.mxu0 %v26
  %1298 = vmatpush.msra.mxu0 %v24
  %1299 = vmatpush.msra.mxu0 %v22
  %1300 = vmatmul.f32.gmra.mxu0 %v1262
  %v1301 = vpop.f32.mrf.mxu0
  %v1302 = vadd.f32 0.0, %v1301
  %1303 = vdwg.mxu0
  %v1305 = vrot.slane %v1282, 1
  %v1306 = vrot.slane %v1282, 2
  %v1309 = vadd.f32 %v308, %v1305
  %v1310 = vadd.f32 %v311, %v1306
  %v1311 = vxor.u32 %v1309, 2147483648
  %v1312 = vxor.u32 %v1310, 2147483648
  %v1313 = vmul.f32 %v1311, 1.442695
  %v1314 = vpow.pop %v1313
  %v1315 = vmul.f32 %v1312, 1.442695
  %v1316 = vpow.pop %v1315
  %v1317 = vadd.f32 %v1314, 1.0
  %v1318 = vadd.f32 %v1316, 1.0
  %v1319 = vrcp.pop %v1317
  %v1320 = vmul.f32 %v1317, %v1319
  %v1321 = vsub.f32 1.0, %v1320
  %v1322 = vmul.f32 %v1319, %v1321
  %v1323 = vadd.f32 %v1319, %v1322
  %vm1324 = vweird.f32 %v1317
  %vm1325 = vweird.f32 %v1319
  %vm1326 = vmor %vm1324, %vm1325
  %v1327 = vsel %vm1326, %v1319, %v1323
  %v1328 = vand.u32 2147483647, %v1317
  %vm1329 = vcmp.eq.f32.partialorder %v1328, 8.507059e+37
  %v1330 = vand.u32 %v1317, 2147483648
  %v1331 = vor.u32 1.1754944e-38, %v1330
  %v1332 = vsel %vm1329, %v1331, %v1327
  %v1333 = vmul.f32 1.0, %v1332
  %v1334 = vrcp.pop %v1318
  %v1335 = vmul.f32 %v1318, %v1334
  %v1336 = vsub.f32 1.0, %v1335
  %v1337 = vmul.f32 %v1334, %v1336
  %v1338 = vadd.f32 %v1334, %v1337
  %vm1339 = vweird.f32 %v1318
  %vm1340 = vweird.f32 %v1334
  %vm1341 = vmor %vm1339, %vm1340
  %v1342 = vsel %vm1341, %v1334, %v1338
  %v1343 = vand.u32 2147483647, %v1318
  %vm1344 = vcmp.eq.f32.partialorder %v1343, 8.507059e+37
  %v1345 = vand.u32 %v1318, 2147483648
  %v1346 = vor.u32 1.1754944e-38, %v1345
  %v1347 = vsel %vm1344, %v1346, %v1342
  %v1348 = vmul.f32 1.0, %v1347
  %v1349 = vadd.f32 %v1302, %v99
  %v1351 = vrot.slane %v1349, 1
  %v1352 = vrot.slane %v1349, 2
  %v1355 = vmul.f32 %v1333, %v1351
  %v1356 = vmul.f32 %v1348, %v1352
  %v1357 = vadd.f32 %v331, %v1355
  %v1358 = vadd.f32 %v334, %v1356
  %v1359 = vtanh.pop %v1357
  %v1360 = vtanh.pop %v1358
  %v1363 = vrot.slane %v1359, 1
  %v1364 = vrot.slane %v1360, 1
  %v1367 = vsub.f32 %v1255, %v1363
  %v1368 = vsub.f32 %v1256, %v1364
  %v1371 = vrot.slane %v1367, 7
  %v1372 = vrot.slane %v1368, 7
  %1373 = vrot.lane.b32.xlu0 %v1371, 64
  %v1374 = vpop.permute.xlu0 %1373
  %1375 = vrot.lane.b32.xlu0 %v1372, 64
  %v1376 = vpop.permute.xlu0 %1375
  %v1379 = vmul.f32 %v1333, %v1374
  %v1380 = vmul.f32 %v1348, %v1376
  %1383 = vrot.lane.b32.xlu0 %v1379, 64
  %v1384 = vpop.permute.xlu0 %1383
  %1385 = vrot.lane.b32.xlu0 %v1380, 64
  %v1386 = vpop.permute.xlu0 %1385
  %v1389 = vadd.f32 %v1359, %v1384
  %v1390 = vadd.f32 %v1360, %v1386
  %v1394 = vrot.slane %v1389, 7
  %v1395 = vrot.slane %v1390, 6
  %v1396 = vsel %vm109, %v1395, %v1394
  %1397 = vrot.lane.b32.xlu0 %v1396, 64
  %v1398 = vpop.permute.xlu0 %1397
  %v1400 = vsel %vm336, %v460, %v1398
  %v1401 = vrot.slane %v587, 7
  %v1402 = vsel %vm120, %v1401, %v586
  %v1404 = vrot.slane %v1255, 5
  %v1405 = vrot.slane %v1256, 4
  %v1406 = vsel %vm120, %v1405, %v1404
  %1407 = vrot.lane.b32.xlu0 %v1406, 64
  %v1408 = vpop.permute.xlu0 %1407
  %v1410 = vsel %vm336, %v1402, %v1408
  %v1411 = vrot.slane %v720, 7
  %v1412 = vsel %vm130, %v1411, %v719
  %v1414 = vrot.slane %v1121, 3
  %v1415 = vrot.slane %v1122, 2
  %v1416 = vsel %vm130, %v1415, %v1414
  %1417 = vrot.lane.b32.xlu0 %v1416, 64
  %v1418 = vpop.permute.xlu0 %1417
  %v1420 = vsel %vm336, %v1412, %v1418
  %v1421 = vrot.slane %v854, 7
  %v1422 = vsel %vm140, %v1421, %v853
  %v1424 = vrot.slane %v987, 1
  %v1425 = vsel %vm140, %v988, %v1424
  %1426 = vrot.lane.b32.xlu0 %v1425, 64
  %v1427 = vpop.permute.xlu0 %1426
  %v1429 = vsel %vm336, %v1422, %v1427
  %v1430 = vrot.slane %v988, 7
  %v1431 = vsel %vm149, %v1430, %v987
  %v1433 = vrot.slane %v853, 7
  %v1434 = vrot.slane %v854, 6
  %v1435 = vsel %vm149, %v1434, %v1433
  %1436 = vrot.lane.b32.xlu0 %v1435, 64
  %v1437 = vpop.permute.xlu0 %1436
  %v1439 = vsel %vm336, %v1431, %v1437
  %v1440 = vrot.slane %v1122, 7
  %v1441 = vsel %vm157, %v1440, %v1121
  %v1443 = vrot.slane %v719, 5
  %v1444 = vrot.slane %v720, 4
  %v1445 = vsel %vm157, %v1444, %v1443
  %1446 = vrot.lane.b32.xlu0 %v1445, 64
  %v1447 = vpop.permute.xlu0 %1446
  %v1449 = vsel %vm336, %v1441, %v1447
  %v1450 = vrot.slane %v1256, 7
  %v1451 = vsel %vm165, %v1450, %v1255
  %v1453 = vrot.slane %v586, 3
  %v1454 = vrot.slane %v587, 2
  %v1455 = vsel %vm165, %v1454, %v1453
  %1456 = vrot.lane.b32.xlu0 %v1455, 64
  %v1457 = vpop.permute.xlu0 %1456
  %v1459 = vsel %vm336, %v1451, %v1457
  %v1460 = vrot.slane %v1390, 7
  %v1463 = vrot.slane %v455, 1
  %1464 = vrot.lane.b32.xlu0 %v1463, 64
  %v1465 = vpop.permute.xlu0 %1464
  %1466 = vrot.lane.b32.xlu0 %v456, 64
  %v1467 = vpop.permute.xlu0 %1466
  %v1470 = vsel %vm336, %v1389, %v1465
  %v1471 = vsel %vm336, %v1460, %v1467
  %v1473 = vrot.slane %v1400, 1
  %1476 = vst [vmem:[#allocation1] sm:$0xff] %v1410
  %s1477 = scalar_lea.vmem [#allocation1], 1
  %v1478 = vld [vmem:[%s1477] ss:$9 sm:$0xff]
  %s1479 = scalar_lea.vmem [#allocation1], 2
  %v1480 = vld [vmem:[%s1479] ss:$9 sm:$0xff]
  %1482 = vst [vmem:[#allocation1] sm:$0xff] %v1420
  %s1483 = scalar_lea.vmem [#allocation1], 2
  %v1484 = vld [vmem:[%s1483] ss:$9 sm:$0xff]
  %s1485 = scalar_lea.vmem [#allocation1], 3
  %v1486 = vld [vmem:[%s1485] ss:$9 sm:$0xff]
  %1488 = vst [vmem:[#allocation1] sm:$0xff] %v1429
  %s1489 = scalar_lea.vmem [#allocation1], 3
  %v1490 = vld [vmem:[%s1489] ss:$9 sm:$0xff]
  %s1491 = scalar_lea.vmem [#allocation1], 4
  %v1492 = vld [vmem:[%s1491] ss:$9 sm:$0xff]
  %1494 = vst [vmem:[#allocation1] sm:$0xff] %v1439
  %s1495 = scalar_lea.vmem [#allocation1], 4
  %v1496 = vld [vmem:[%s1495] ss:$9 sm:$0xff]
  %s1497 = scalar_lea.vmem [#allocation1], 5
  %v1498 = vld [vmem:[%s1497] ss:$9 sm:$0xff]
  %1500 = vst [vmem:[#allocation1] sm:$0xff] %v1449
  %s1501 = scalar_lea.vmem [#allocation1], 5
  %v1502 = vld [vmem:[%s1501] ss:$9 sm:$0xff]
  %s1503 = scalar_lea.vmem [#allocation1], 6
  %v1504 = vld [vmem:[%s1503] ss:$9 sm:$0xff]
  %1506 = vst [vmem:[#allocation1] sm:$0xff] %v1459
  %s1507 = scalar_lea.vmem [#allocation1], 6
  %v1508 = vld [vmem:[%s1507] ss:$9 sm:$0xff]
  %s1509 = scalar_lea.vmem [#allocation1], 7
  %v1510 = vld [vmem:[%s1509] ss:$9 sm:$0xff]
  %1513 = vst [vmem:[#allocation1] sm:$0xff] %v1470
  %s1514 = scalar_lea.vmem [#allocation1], 7
  %v1515 = vld [vmem:[%s1514] ss:$9 sm:$0xff]
  %1516 = vst [vmem:[#allocation1] sm:$0xff] %v1471
  %v1517 = vld [vmem:[#allocation1] ss:$9 sm:$0xff]
  %v1518 = vperm.slane %v1478, 0
  %v1519 = vperm.slane %v1480, 0
  %v1522 = vperm.slane %v1484, 0
  %v1523 = vperm.slane %v1486, 0
  %v1526 = vperm.slane %v1490, 0
  %v1527 = vperm.slane %v1492, 0
  %v1530 = vperm.slane %v1496, 0
  %v1531 = vperm.slane %v1498, 0
  %v1534 = vperm.slane %v1502, 0
  %v1535 = vperm.slane %v1504, 0
  %v1538 = vperm.slane %v1508, 0
  %v1539 = vperm.slane %v1510, 0
  %v1542 = vperm.slane %v1515, 0
  %v1543 = vperm.slane %v1517, 0
  %v1546 = vsel %vm257, %v1400, %v1518
  %v1547 = vsel %vm257, %v1473, %v1519
  %v1548 = vsel %vm260, %v1546, %v1522
  %v1549 = vsel %vm260, %v1547, %v1523
  %v1550 = vsel %vm263, %v1548, %v1526
  %v1551 = vsel %vm263, %v1549, %v1527
  %v1552 = vsel %vm266, %v1550, %v1530
  %v1553 = vsel %vm266, %v1551, %v1531
  %v1554 = vsel %vm269, %v1552, %v1534
  %v1555 = vsel %vm269, %v1553, %v1535
  %v1556 = vsel %vm272, %v1554, %v1538
  %v1557 = vsel %vm272, %v1555, %v1539
  %v1558 = vsel %vm275, %v1556, %v1542
  %v1559 = vsel %vm275, %v1557, %v1543
  %v1561 = vperm.slane %v98, 0
  %v1562 = vperm.slane %v98, 1
  %1565 = vmatpush.msra.mxu0 %v67
  %1566 = vmatpush.msra.mxu0 %v65
  %1567 = vmatpush.msra.mxu0 %v63
  %1568 = vmatpush.msra.mxu0 %v61
  %1569 = vmatpush.msra.mxu0 %v59
  %1570 = vmatpush.msra.mxu0 %v57
  %1571 = vmatpush.msra.mxu0 %v55
  %1572 = vmatpush.msra.mxu0 %v53
  %1573 = vmatpush.msra.mxu0 %v51
  %1574 = vmatpush.msra.mxu0 %v49
  %1575 = vmatpush.msra.mxu0 %v47
  %1576 = vmatpush.msra.mxu0 %v45
  %1577 = vmatpush.msra.mxu0 %v43
  %1578 = vmatpush.msra.mxu0 %v41
  %1579 = vmatpush.msra.mxu0 %v39
  %1580 = vmatpush.msra.mxu0 %v37
  %1581 = vmatmul.f32.gmra.mxu0 %v1558
  %v1582 = vpop.f32.mrf.mxu0
  %v1583 = vadd.f32 %v1561, %v1582
  %1584 = vmatmul.f32.gmra.mxu0 %v1559
  %v1585 = vpop.f32.mrf.mxu0
  %v1586 = vadd.f32 %v1561, %v1585
  %1587 = vdwg.mxu0
  %1588 = vmatpush.msra.mxu0 %v68
  %1589 = vmatpush.msra.mxu0 %v66
  %1590 = vmatpush.msra.mxu0 %v64
  %1591 = vmatpush.msra.mxu0 %v62
  %1592 = vmatpush.msra.mxu0 %v60
  %1593 = vmatpush.msra.mxu0 %v58
  %1594 = vmatpush.msra.mxu0 %v56
  %1595 = vmatpush.msra.mxu0 %v54
  %1596 = vmatpush.msra.mxu0 %v52
  %1597 = vmatpush.msra.mxu0 %v50
  %1598 = vmatpush.msra.mxu0 %v48
  %1599 = vmatpush.msra.mxu0 %v46
  %1600 = vmatpush.msra.mxu0 %v44
  %1601 = vmatpush.msra.mxu0 %v42
  %1602 = vmatpush.msra.mxu0 %v40
  %1603 = vmatpush.msra.mxu0 %v38
  %1604 = vmatmul.f32.gmra.mxu0 %v1558
  %v1605 = vpop.f32.mrf.mxu0
  %v1606 = vadd.f32 %v1562, %v1605
  %1607 = vmatmul.f32.gmra.mxu0 %v1559
  %v1608 = vpop.f32.mrf.mxu0
  %v1609 = vadd.f32 %v1562, %v1608
  %1610 = vdwg.mxu0
  %1611 = vmatpush.msra.mxu0 0.0
  %1612 = vmatpush.msra.mxu0 0.0
  %1613 = vmatpush.msra.mxu0 0.0
  %1614 = vmatpush.msra.mxu0 0.0
  %1615 = vmatpush.msra.mxu0 0.0
  %1616 = vmatpush.msra.mxu0 0.0
  %1617 = vmatpush.msra.mxu0 0.0
  %1618 = vmatpush.msra.mxu0 0.0
  %1619 = vmatpush.msra.mxu0 %v83
  %1620 = vmatpush.msra.mxu0 %v81
  %1621 = vmatpush.msra.mxu0 %v79
  %1622 = vmatpush.msra.mxu0 %v77
  %1623 = vmatpush.msra.mxu0 %v75
  %1624 = vmatpush.msra.mxu0 %v73
  %1625 = vmatpush.msra.mxu0 %v71
  %1626 = vmatpush.msra.mxu0 %v69
  %1627 = vmatmul.f32.gmra.mxu0 %v338
  %v1628 = vpop.f32.mrf.mxu0
  %v1629 = vadd.f32 0.0, %v1628
  %1630 = vdwg.mxu0
  %1631 = vmatpush.msra.mxu0 0.0
  %1632 = vmatpush.msra.mxu0 0.0
  %1633 = vmatpush.msra.mxu0 0.0
  %1634 = vmatpush.msra.mxu0 0.0
  %1635 = vmatpush.msra.mxu0 0.0
  %1636 = vmatpush.msra.mxu0 0.0
  %1637 = vmatpush.msra.mxu0 0.0
  %1638 = vmatpush.msra.mxu0 0.0
  %1639 = vmatpush.msra.mxu0 %v84
  %1640 = vmatpush.msra.mxu0 %v82
  %1641 = vmatpush.msra.mxu0 %v80
  %1642 = vmatpush.msra.mxu0 %v78
  %1643 = vmatpush.msra.mxu0 %v76
  %1644 = vmatpush.msra.mxu0 %v74
  %1645 = vmatpush.msra.mxu0 %v72
  %1646 = vmatpush.msra.mxu0 %v70
  %1647 = vmatmul.f32.gmra.mxu0 %v338
  %v1648 = vpop.f32.mrf.mxu0
  %v1649 = vadd.f32 0.0, %v1648
  %1650 = vdwg.mxu0
  %v1652 = vrot.slane %v1629, 1
  %v1655 = vadd.f32 %v1583, %v1629
  %v1656 = vadd.f32 %v1586, %v1652
  %v1657 = vxor.u32 %v1655, 2147483648
  %v1658 = vxor.u32 %v1656, 2147483648
  %v1659 = vmul.f32 %v1657, 1.442695
  %v1660 = vpow.pop %v1659
  %v1661 = vmul.f32 %v1658, 1.442695
  %v1662 = vpow.pop %v1661
  %v1663 = vadd.f32 %v1660, 1.0
  %v1664 = vadd.f32 %v1662, 1.0
  %v1665 = vrcp.pop %v1663
  %v1666 = vmul.f32 %v1663, %v1665
  %v1667 = vsub.f32 1.0, %v1666
  %v1668 = vmul.f32 %v1665, %v1667
  %v1669 = vadd.f32 %v1665, %v1668
  %vm1670 = vweird.f32 %v1663
  %vm1671 = vweird.f32 %v1665
  %vm1672 = vmor %vm1670, %vm1671
  %v1673 = vsel %vm1672, %v1665, %v1669
  %v1674 = vand.u32 2147483647, %v1663
  %vm1675 = vcmp.eq.f32.partialorder %v1674, 8.507059e+37
  %v1676 = vand.u32 %v1663, 2147483648
  %v1677 = vor.u32 1.1754944e-38, %v1676
  %v1678 = vsel %vm1675, %v1677, %v1673
  %v1679 = vmul.f32 1.0, %v1678
  %v1680 = vrcp.pop %v1664
  %v1681 = vmul.f32 %v1664, %v1680
  %v1682 = vsub.f32 1.0, %v1681
  %v1683 = vmul.f32 %v1680, %v1682
  %v1684 = vadd.f32 %v1680, %v1683
  %vm1685 = vweird.f32 %v1664
  %vm1686 = vweird.f32 %v1680
  %vm1687 = vmor %vm1685, %vm1686
  %v1688 = vsel %vm1687, %v1680, %v1684
  %v1689 = vand.u32 2147483647, %v1664
  %vm1690 = vcmp.eq.f32.partialorder %v1689, 8.507059e+37
  %v1691 = vand.u32 %v1664, 2147483648
  %v1692 = vor.u32 1.1754944e-38, %v1691
  %v1693 = vsel %vm1690, %v1692, %v1688
  %v1694 = vmul.f32 1.0, %v1693
  %v1695 = vadd.f32 %v1649, %v100
  %v1697 = vrot.slane %v1695, 1
  %v1700 = vmul.f32 %v1679, %v1695
  %v1701 = vmul.f32 %v1694, %v1697
  %v1702 = vadd.f32 %v1606, %v1700
  %v1703 = vadd.f32 %v1609, %v1701
  %v1704 = vtanh.pop %v1702
  %v1705 = vtanh.pop %v1703
  %v1706 = vsub.f32 0.0, %v1704
  %v1707 = vsub.f32 0.0, %v1705
  %1710 = vrot.lane.b32.xlu0 %v1706, 64
  %v1711 = vpop.permute.xlu0 %1710
  %1712 = vrot.lane.b32.xlu0 %v1707, 64
  %v1713 = vpop.permute.xlu0 %1712
  %v1716 = vmul.f32 %v1679, %v1711
  %v1717 = vmul.f32 %v1694, %v1713
  %1720 = vrot.lane.b32.xlu0 %v1716, 64
  %v1721 = vpop.permute.xlu0 %1720
  %1722 = vrot.lane.b32.xlu0 %v1717, 64
  %v1723 = vpop.permute.xlu0 %1722
  %v1726 = vadd.f32 %v1704, %v1721
  %v1727 = vadd.f32 %v1705, %v1723
  %v1730 = vrot.slane %v1727, 7
  %v1731 = vsel %vm109, %v1730, %v1726
  %v1732 = vsel %vm336, %v1731, 0
  %1734 = vmatpush.msra.mxu0 0.0
  %1735 = vmatpush.msra.mxu0 0.0
  %1736 = vmatpush.msra.mxu0 0.0
  %1737 = vmatpush.msra.mxu0 0.0
  %1738 = vmatpush.msra.mxu0 0.0
  %1739 = vmatpush.msra.mxu0 0.0
  %1740 = vmatpush.msra.mxu0 0.0
  %1741 = vmatpush.msra.mxu0 0.0
  %1742 = vmatpush.msra.mxu0 %v83
  %1743 = vmatpush.msra.mxu0 %v81
  %1744 = vmatpush.msra.mxu0 %v79
  %1745 = vmatpush.msra.mxu0 %v77
  %1746 = vmatpush.msra.mxu0 %v75
  %1747 = vmatpush.msra.mxu0 %v73
  %1748 = vmatpush.msra.mxu0 %v71
  %1749 = vmatpush.msra.mxu0 %v69
  %1750 = vmatmul.f32.gmra.mxu0 %v1732
  %v1751 = vpop.f32.mrf.mxu0
  %v1752 = vadd.f32 0.0, %v1751
  %1753 = vdwg.mxu0
  %1754 = vmatpush.msra.mxu0 0.0
  %1755 = vmatpush.msra.mxu0 0.0
  %1756 = vmatpush.msra.mxu0 0.0
  %1757 = vmatpush.msra.mxu0 0.0
  %1758 = vmatpush.msra.mxu0 0.0
  %1759 = vmatpush.msra.mxu0 0.0
  %1760 = vmatpush.msra.mxu0 0.0
  %1761 = vmatpush.msra.mxu0 0.0
  %1762 = vmatpush.msra.mxu0 %v84
  %1763 = vmatpush.msra.mxu0 %v82
  %1764 = vmatpush.msra.mxu0 %v80
  %1765 = vmatpush.msra.mxu0 %v78
  %1766 = vmatpush.msra.mxu0 %v76
  %1767 = vmatpush.msra.mxu0 %v74
  %1768 = vmatpush.msra.mxu0 %v72
  %1769 = vmatpush.msra.mxu0 %v70
  %1770 = vmatmul.f32.gmra.mxu0 %v1732
  %v1771 = vpop.f32.mrf.mxu0
  %v1772 = vadd.f32 0.0, %v1771
  %1773 = vdwg.mxu0
  %v1775 = vrot.slane %v1752, 7
  %v1778 = vadd.f32 %v1583, %v1775
  %v1779 = vadd.f32 %v1586, %v1752
  %v1780 = vxor.u32 %v1778, 2147483648
  %v1781 = vxor.u32 %v1779, 2147483648
  %v1782 = vmul.f32 %v1780, 1.442695
  %v1783 = vpow.pop %v1782
  %v1784 = vmul.f32 %v1781, 1.442695
  %v1785 = vpow.pop %v1784
  %v1786 = vadd.f32 %v1783, 1.0
  %v1787 = vadd.f32 %v1785, 1.0
  %v1788 = vrcp.pop %v1786
  %v1789 = vmul.f32 %v1786, %v1788
  %v1790 = vsub.f32 1.0, %v1789
  %v1791 = vmul.f32 %v1788, %v1790
  %v1792 = vadd.f32 %v1788, %v1791
  %vm1793 = vweird.f32 %v1786
  %vm1794 = vweird.f32 %v1788
  %vm1795 = vmor %vm1793, %vm1794
  %v1796 = vsel %vm1795, %v1788, %v1792
  %v1797 = vand.u32 2147483647, %v1786
  %vm1798 = vcmp.eq.f32.partialorder %v1797, 8.507059e+37
  %v1799 = vand.u32 %v1786, 2147483648
  %v1800 = vor.u32 1.1754944e-38, %v1799
  %v1801 = vsel %vm1798, %v1800, %v1796
  %v1802 = vmul.f32 1.0, %v1801
  %v1803 = vrcp.pop %v1787
  %v1804 = vmul.f32 %v1787, %v1803
  %v1805 = vsub.f32 1.0, %v1804
  %v1806 = vmul.f32 %v1803, %v1805
  %v1807 = vadd.f32 %v1803, %v1806
  %vm1808 = vweird.f32 %v1787
  %vm1809 = vweird.f32 %v1803
  %vm1810 = vmor %vm1808, %vm1809
  %v1811 = vsel %vm1810, %v1803, %v1807
  %v1812 = vand.u32 2147483647, %v1787
  %vm1813 = vcmp.eq.f32.partialorder %v1812, 8.507059e+37
  %v1814 = vand.u32 %v1787, 2147483648
  %v1815 = vor.u32 1.1754944e-38, %v1814
  %v1816 = vsel %vm1813, %v1815, %v1811
  %v1817 = vmul.f32 1.0, %v1816
  %v1818 = vadd.f32 %v1772, %v100
  %v1820 = vrot.slane %v1818, 7
  %v1823 = vmul.f32 %v1802, %v1820
  %v1824 = vmul.f32 %v1817, %v1818
  %v1825 = vadd.f32 %v1606, %v1823
  %v1826 = vadd.f32 %v1609, %v1824
  %v1827 = vtanh.pop %v1825
  %v1828 = vtanh.pop %v1826
  %v1831 = vrot.slane %v1827, 1
  %v1832 = vrot.slane %v1828, 1
  %v1835 = vsub.f32 %v1726, %v1831
  %v1836 = vsub.f32 %v1727, %v1832
  %v1839 = vrot.slane %v1835, 7
  %v1840 = vrot.slane %v1836, 7
  %1841 = vrot.lane.b32.xlu0 %v1839, 64
  %v1842 = vpop.permute.xlu0 %1841
  %1843 = vrot.lane.b32.xlu0 %v1840, 64
  %v1844 = vpop.permute.xlu0 %1843
  %v1847 = vmul.f32 %v1802, %v1842
  %v1848 = vmul.f32 %v1817, %v1844
  %1851 = vrot.lane.b32.xlu0 %v1847, 64
  %v1852 = vpop.permute.xlu0 %1851
  %1853 = vrot.lane.b32.xlu0 %v1848, 64
  %v1854 = vpop.permute.xlu0 %1853
  %v1857 = vadd.f32 %v1827, %v1852
  %v1858 = vadd.f32 %v1828, %v1854
  %v1861 = vrot.slane %v1857, 1
  %v1862 = vsel %vm109, %v1858, %v1861
  %v1863 = vsel %vm336, %v1862, 0
  %1865 = vmatpush.msra.mxu0 0.0
  %1866 = vmatpush.msra.mxu0 0.0
  %1867 = vmatpush.msra.mxu0 0.0
  %1868 = vmatpush.msra.mxu0 0.0
  %1869 = vmatpush.msra.mxu0 0.0
  %1870 = vmatpush.msra.mxu0 0.0
  %1871 = vmatpush.msra.mxu0 0.0
  %1872 = vmatpush.msra.mxu0 0.0
  %1873 = vmatpush.msra.mxu0 %v83
  %1874 = vmatpush.msra.mxu0 %v81
  %1875 = vmatpush.msra.mxu0 %v79
  %1876 = vmatpush.msra.mxu0 %v77
  %1877 = vmatpush.msra.mxu0 %v75
  %1878 = vmatpush.msra.mxu0 %v73
  %1879 = vmatpush.msra.mxu0 %v71
  %1880 = vmatpush.msra.mxu0 %v69
  %1881 = vmatmul.f32.gmra.mxu0 %v1863
  %v1882 = vpop.f32.mrf.mxu0
  %v1883 = vadd.f32 0.0, %v1882
  %1884 = vdwg.mxu0
  %1885 = vmatpush.msra.mxu0 0.0
  %1886 = vmatpush.msra.mxu0 0.0
  %1887 = vmatpush.msra.mxu0 0.0
  %1888 = vmatpush.msra.mxu0 0.0
  %1889 = vmatpush.msra.mxu0 0.0
  %1890 = vmatpush.msra.mxu0 0.0
  %1891 = vmatpush.msra.mxu0 0.0
  %1892 = vmatpush.msra.mxu0 0.0
  %1893 = vmatpush.msra.mxu0 %v84
  %1894 = vmatpush.msra.mxu0 %v82
  %1895 = vmatpush.msra.mxu0 %v80
  %1896 = vmatpush.msra.mxu0 %v78
  %1897 = vmatpush.msra.mxu0 %v76
  %1898 = vmatpush.msra.mxu0 %v74
  %1899 = vmatpush.msra.mxu0 %v72
  %1900 = vmatpush.msra.mxu0 %v70
  %1901 = vmatmul.f32.gmra.mxu0 %v1863
  %v1902 = vpop.f32.mrf.mxu0
  %v1903 = vadd.f32 0.0, %v1902
  %1904 = vdwg.mxu0
  %v1906 = vrot.slane %v1883, 6
  %v1907 = vrot.slane %v1883, 7
  %v1910 = vadd.f32 %v1583, %v1906
  %v1911 = vadd.f32 %v1586, %v1907
  %v1912 = vxor.u32 %v1910, 2147483648
  %v1913 = vxor.u32 %v1911, 2147483648
  %v1914 = vmul.f32 %v1912, 1.442695
  %v1915 = vpow.pop %v1914
  %v1916 = vmul.f32 %v1913, 1.442695
  %v1917 = vpow.pop %v1916
  %v1918 = vadd.f32 %v1915, 1.0
  %v1919 = vadd.f32 %v1917, 1.0
  %v1920 = vrcp.pop %v1918
  %v1921 = vmul.f32 %v1918, %v1920
  %v1922 = vsub.f32 1.0, %v1921
  %v1923 = vmul.f32 %v1920, %v1922
  %v1924 = vadd.f32 %v1920, %v1923
  %vm1925 = vweird.f32 %v1918
  %vm1926 = vweird.f32 %v1920
  %vm1927 = vmor %vm1925, %vm1926
  %v1928 = vsel %vm1927, %v1920, %v1924
  %v1929 = vand.u32 2147483647, %v1918
  %vm1930 = vcmp.eq.f32.partialorder %v1929, 8.507059e+37
  %v1931 = vand.u32 %v1918, 2147483648
  %v1932 = vor.u32 1.1754944e-38, %v1931
  %v1933 = vsel %vm1930, %v1932, %v1928
  %v1934 = vmul.f32 1.0, %v1933
  %v1935 = vrcp.pop %v1919
  %v1936 = vmul.f32 %v1919, %v1935
  %v1937 = vsub.f32 1.0, %v1936
  %v1938 = vmul.f32 %v1935, %v1937
  %v1939 = vadd.f32 %v1935, %v1938
  %vm1940 = vweird.f32 %v1919
  %vm1941 = vweird.f32 %v1935
  %vm1942 = vmor %vm1940, %vm1941
  %v1943 = vsel %vm1942, %v1935, %v1939
  %v1944 = vand.u32 2147483647, %v1919
  %vm1945 = vcmp.eq.f32.partialorder %v1944, 8.507059e+37
  %v1946 = vand.u32 %v1919, 2147483648
  %v1947 = vor.u32 1.1754944e-38, %v1946
  %v1948 = vsel %vm1945, %v1947, %v1943
  %v1949 = vmul.f32 1.0, %v1948
  %v1950 = vadd.f32 %v1903, %v100
  %v1952 = vrot.slane %v1950, 6
  %v1953 = vrot.slane %v1950, 7
  %v1956 = vmul.f32 %v1934, %v1952
  %v1957 = vmul.f32 %v1949, %v1953
  %v1958 = vadd.f32 %v1606, %v1956
  %v1959 = vadd.f32 %v1609, %v1957
  %v1960 = vtanh.pop %v1958
  %v1961 = vtanh.pop %v1959
  %v1964 = vrot.slane %v1960, 1
  %v1965 = vrot.slane %v1961, 1
  %v1968 = vsub.f32 %v1857, %v1964
  %v1969 = vsub.f32 %v1858, %v1965
  %v1972 = vrot.slane %v1968, 7
  %v1973 = vrot.slane %v1969, 7
  %1974 = vrot.lane.b32.xlu0 %v1972, 64
  %v1975 = vpop.permute.xlu0 %1974
  %1976 = vrot.lane.b32.xlu0 %v1973, 64
  %v1977 = vpop.permute.xlu0 %1976
  %v1980 = vmul.f32 %v1934, %v1975
  %v1981 = vmul.f32 %v1949, %v1977
  %1984 = vrot.lane.b32.xlu0 %v1980, 64
  %v1985 = vpop.permute.xlu0 %1984
  %1986 = vrot.lane.b32.xlu0 %v1981, 64
  %v1987 = vpop.permute.xlu0 %1986
  %v1990 = vadd.f32 %v1960, %v1985
  %v1991 = vadd.f32 %v1961, %v1987
  %v1994 = vrot.slane %v1990, 2
  %v1995 = vrot.slane %v1991, 1
  %v1996 = vsel %vm109, %v1995, %v1994
  %v1997 = vsel %vm336, %v1996, 0
  %1999 = vmatpush.msra.mxu0 0.0
  %2000 = vmatpush.msra.mxu0 0.0
  %2001 = vmatpush.msra.mxu0 0.0
  %2002 = vmatpush.msra.mxu0 0.0
  %2003 = vmatpush.msra.mxu0 0.0
  %2004 = vmatpush.msra.mxu0 0.0
  %2005 = vmatpush.msra.mxu0 0.0
  %2006 = vmatpush.msra.mxu0 0.0
  %2007 = vmatpush.msra.mxu0 %v83
  %2008 = vmatpush.msra.mxu0 %v81
  %2009 = vmatpush.msra.mxu0 %v79
  %2010 = vmatpush.msra.mxu0 %v77
  %2011 = vmatpush.msra.mxu0 %v75
  %2012 = vmatpush.msra.mxu0 %v73
  %2013 = vmatpush.msra.mxu0 %v71
  %2014 = vmatpush.msra.mxu0 %v69
  %2015 = vmatmul.f32.gmra.mxu0 %v1997
  %v2016 = vpop.f32.mrf.mxu0
  %v2017 = vadd.f32 0.0, %v2016
  %2018 = vdwg.mxu0
  %2019 = vmatpush.msra.mxu0 0.0
  %2020 = vmatpush.msra.mxu0 0.0
  %2021 = vmatpush.msra.mxu0 0.0
  %2022 = vmatpush.msra.mxu0 0.0
  %2023 = vmatpush.msra.mxu0 0.0
  %2024 = vmatpush.msra.mxu0 0.0
  %2025 = vmatpush.msra.mxu0 0.0
  %2026 = vmatpush.msra.mxu0 0.0
  %2027 = vmatpush.msra.mxu0 %v84
  %2028 = vmatpush.msra.mxu0 %v82
  %2029 = vmatpush.msra.mxu0 %v80
  %2030 = vmatpush.msra.mxu0 %v78
  %2031 = vmatpush.msra.mxu0 %v76
  %2032 = vmatpush.msra.mxu0 %v74
  %2033 = vmatpush.msra.mxu0 %v72
  %2034 = vmatpush.msra.mxu0 %v70
  %2035 = vmatmul.f32.gmra.mxu0 %v1997
  %v2036 = vpop.f32.mrf.mxu0
  %v2037 = vadd.f32 0.0, %v2036
  %2038 = vdwg.mxu0
  %v2040 = vrot.slane %v2017, 5
  %v2041 = vrot.slane %v2017, 6
  %v2044 = vadd.f32 %v1583, %v2040
  %v2045 = vadd.f32 %v1586, %v2041
  %v2046 = vxor.u32 %v2044, 2147483648
  %v2047 = vxor.u32 %v2045, 2147483648
  %v2048 = vmul.f32 %v2046, 1.442695
  %v2049 = vpow.pop %v2048
  %v2050 = vmul.f32 %v2047, 1.442695
  %v2051 = vpow.pop %v2050
  %v2052 = vadd.f32 %v2049, 1.0
  %v2053 = vadd.f32 %v2051, 1.0
  %v2054 = vrcp.pop %v2052
  %v2055 = vmul.f32 %v2052, %v2054
  %v2056 = vsub.f32 1.0, %v2055
  %v2057 = vmul.f32 %v2054, %v2056
  %v2058 = vadd.f32 %v2054, %v2057
  %vm2059 = vweird.f32 %v2052
  %vm2060 = vweird.f32 %v2054
  %vm2061 = vmor %vm2059, %vm2060
  %v2062 = vsel %vm2061, %v2054, %v2058
  %v2063 = vand.u32 2147483647, %v2052
  %vm2064 = vcmp.eq.f32.partialorder %v2063, 8.507059e+37
  %v2065 = vand.u32 %v2052, 2147483648
  %v2066 = vor.u32 1.1754944e-38, %v2065
  %v2067 = vsel %vm2064, %v2066, %v2062
  %v2068 = vmul.f32 1.0, %v2067
  %v2069 = vrcp.pop %v2053
  %v2070 = vmul.f32 %v2053, %v2069
  %v2071 = vsub.f32 1.0, %v2070
  %v2072 = vmul.f32 %v2069, %v2071
  %v2073 = vadd.f32 %v2069, %v2072
  %vm2074 = vweird.f32 %v2053
  %vm2075 = vweird.f32 %v2069
  %vm2076 = vmor %vm2074, %vm2075
  %v2077 = vsel %vm2076, %v2069, %v2073
  %v2078 = vand.u32 2147483647, %v2053
  %vm2079 = vcmp.eq.f32.partialorder %v2078, 8.507059e+37
  %v2080 = vand.u32 %v2053, 2147483648
  %v2081 = vor.u32 1.1754944e-38, %v2080
  %v2082 = vsel %vm2079, %v2081, %v2077
  %v2083 = vmul.f32 1.0, %v2082
  %v2084 = vadd.f32 %v2037, %v100
  %v2086 = vrot.slane %v2084, 5
  %v2087 = vrot.slane %v2084, 6
  %v2090 = vmul.f32 %v2068, %v2086
  %v2091 = vmul.f32 %v2083, %v2087
  %v2092 = vadd.f32 %v1606, %v2090
  %v2093 = vadd.f32 %v1609, %v2091
  %v2094 = vtanh.pop %v2092
  %v2095 = vtanh.pop %v2093
  %v2098 = vrot.slane %v2094, 1
  %v2099 = vrot.slane %v2095, 1
  %v2102 = vsub.f32 %v1990, %v2098
  %v2103 = vsub.f32 %v1991, %v2099
  %v2106 = vrot.slane %v2102, 7
  %v2107 = vrot.slane %v2103, 7
  %2108 = vrot.lane.b32.xlu0 %v2106, 64
  %v2109 = vpop.permute.xlu0 %2108
  %2110 = vrot.lane.b32.xlu0 %v2107, 64
  %v2111 = vpop.permute.xlu0 %2110
  %v2114 = vmul.f32 %v2068, %v2109
  %v2115 = vmul.f32 %v2083, %v2111
  %2118 = vrot.lane.b32.xlu0 %v2114, 64
  %v2119 = vpop.permute.xlu0 %2118
  %2120 = vrot.lane.b32.xlu0 %v2115, 64
  %v2121 = vpop.permute.xlu0 %2120
  %v2124 = vadd.f32 %v2094, %v2119
  %v2125 = vadd.f32 %v2095, %v2121
  %v2128 = vrot.slane %v2124, 3
  %v2129 = vrot.slane %v2125, 2
  %v2130 = vsel %vm109, %v2129, %v2128
  %v2131 = vsel %vm336, %v2130, 0
  %2133 = vmatpush.msra.mxu0 0.0
  %2134 = vmatpush.msra.mxu0 0.0
  %2135 = vmatpush.msra.mxu0 0.0
  %2136 = vmatpush.msra.mxu0 0.0
  %2137 = vmatpush.msra.mxu0 0.0
  %2138 = vmatpush.msra.mxu0 0.0
  %2139 = vmatpush.msra.mxu0 0.0
  %2140 = vmatpush.msra.mxu0 0.0
  %2141 = vmatpush.msra.mxu0 %v83
  %2142 = vmatpush.msra.mxu0 %v81
  %2143 = vmatpush.msra.mxu0 %v79
  %2144 = vmatpush.msra.mxu0 %v77
  %2145 = vmatpush.msra.mxu0 %v75
  %2146 = vmatpush.msra.mxu0 %v73
  %2147 = vmatpush.msra.mxu0 %v71
  %2148 = vmatpush.msra.mxu0 %v69
  %2149 = vmatmul.f32.gmra.mxu0 %v2131
  %v2150 = vpop.f32.mrf.mxu0
  %v2151 = vadd.f32 0.0, %v2150
  %2152 = vdwg.mxu0
  %2153 = vmatpush.msra.mxu0 0.0
  %2154 = vmatpush.msra.mxu0 0.0
  %2155 = vmatpush.msra.mxu0 0.0
  %2156 = vmatpush.msra.mxu0 0.0
  %2157 = vmatpush.msra.mxu0 0.0
  %2158 = vmatpush.msra.mxu0 0.0
  %2159 = vmatpush.msra.mxu0 0.0
  %2160 = vmatpush.msra.mxu0 0.0
  %2161 = vmatpush.msra.mxu0 %v84
  %2162 = vmatpush.msra.mxu0 %v82
  %2163 = vmatpush.msra.mxu0 %v80
  %2164 = vmatpush.msra.mxu0 %v78
  %2165 = vmatpush.msra.mxu0 %v76
  %2166 = vmatpush.msra.mxu0 %v74
  %2167 = vmatpush.msra.mxu0 %v72
  %2168 = vmatpush.msra.mxu0 %v70
  %2169 = vmatmul.f32.gmra.mxu0 %v2131
  %v2170 = vpop.f32.mrf.mxu0
  %v2171 = vadd.f32 0.0, %v2170
  %2172 = vdwg.mxu0
  %v2174 = vrot.slane %v2151, 4
  %v2175 = vrot.slane %v2151, 5
  %v2178 = vadd.f32 %v1583, %v2174
  %v2179 = vadd.f32 %v1586, %v2175
  %v2180 = vxor.u32 %v2178, 2147483648
  %v2181 = vxor.u32 %v2179, 2147483648
  %v2182 = vmul.f32 %v2180, 1.442695
  %v2183 = vpow.pop %v2182
  %v2184 = vmul.f32 %v2181, 1.442695
  %v2185 = vpow.pop %v2184
  %v2186 = vadd.f32 %v2183, 1.0
  %v2187 = vadd.f32 %v2185, 1.0
  %v2188 = vrcp.pop %v2186
  %v2189 = vmul.f32 %v2186, %v2188
  %v2190 = vsub.f32 1.0, %v2189
  %v2191 = vmul.f32 %v2188, %v2190
  %v2192 = vadd.f32 %v2188, %v2191
  %vm2193 = vweird.f32 %v2186
  %vm2194 = vweird.f32 %v2188
  %vm2195 = vmor %vm2193, %vm2194
  %v2196 = vsel %vm2195, %v2188, %v2192
  %v2197 = vand.u32 2147483647, %v2186
  %vm2198 = vcmp.eq.f32.partialorder %v2197, 8.507059e+37
  %v2199 = vand.u32 %v2186, 2147483648
  %v2200 = vor.u32 1.1754944e-38, %v2199
  %v2201 = vsel %vm2198, %v2200, %v2196
  %v2202 = vmul.f32 1.0, %v2201
  %v2203 = vrcp.pop %v2187
  %v2204 = vmul.f32 %v2187, %v2203
  %v2205 = vsub.f32 1.0, %v2204
  %v2206 = vmul.f32 %v2203, %v2205
  %v2207 = vadd.f32 %v2203, %v2206
  %vm2208 = vweird.f32 %v2187
  %vm2209 = vweird.f32 %v2203
  %vm2210 = vmor %vm2208, %vm2209
  %v2211 = vsel %vm2210, %v2203, %v2207
  %v2212 = vand.u32 2147483647, %v2187
  %vm2213 = vcmp.eq.f32.partialorder %v2212, 8.507059e+37
  %v2214 = vand.u32 %v2187, 2147483648
  %v2215 = vor.u32 1.1754944e-38, %v2214
  %v2216 = vsel %vm2213, %v2215, %v2211
  %v2217 = vmul.f32 1.0, %v2216
  %v2218 = vadd.f32 %v2171, %v100
  %v2220 = vrot.slane %v2218, 4
  %v2221 = vrot.slane %v2218, 5
  %v2224 = vmul.f32 %v2202, %v2220
  %v2225 = vmul.f32 %v2217, %v2221
  %v2226 = vadd.f32 %v1606, %v2224
  %v2227 = vadd.f32 %v1609, %v2225
  %v2228 = vtanh.pop %v2226
  %v2229 = vtanh.pop %v2227
  %v2232 = vrot.slane %v2228, 1
  %v2233 = vrot.slane %v2229, 1
  %v2236 = vsub.f32 %v2124, %v2232
  %v2237 = vsub.f32 %v2125, %v2233
  %v2240 = vrot.slane %v2236, 7
  %v2241 = vrot.slane %v2237, 7
  %2242 = vrot.lane.b32.xlu0 %v2240, 64
  %v2243 = vpop.permute.xlu0 %2242
  %2244 = vrot.lane.b32.xlu0 %v2241, 64
  %v2245 = vpop.permute.xlu0 %2244
  %v2248 = vmul.f32 %v2202, %v2243
  %v2249 = vmul.f32 %v2217, %v2245
  %2252 = vrot.lane.b32.xlu0 %v2248, 64
  %v2253 = vpop.permute.xlu0 %2252
  %2254 = vrot.lane.b32.xlu0 %v2249, 64
  %v2255 = vpop.permute.xlu0 %2254
  %v2258 = vadd.f32 %v2228, %v2253
  %v2259 = vadd.f32 %v2229, %v2255
  %v2262 = vrot.slane %v2258, 4
  %v2263 = vrot.slane %v2259, 3
  %v2264 = vsel %vm109, %v2263, %v2262
  %v2265 = vsel %vm336, %v2264, 0
  %2267 = vmatpush.msra.mxu0 0.0
  %2268 = vmatpush.msra.mxu0 0.0
  %2269 = vmatpush.msra.mxu0 0.0
  %2270 = vmatpush.msra.mxu0 0.0
  %2271 = vmatpush.msra.mxu0 0.0
  %2272 = vmatpush.msra.mxu0 0.0
  %2273 = vmatpush.msra.mxu0 0.0
  %2274 = vmatpush.msra.mxu0 0.0
  %2275 = vmatpush.msra.mxu0 %v83
  %2276 = vmatpush.msra.mxu0 %v81
  %2277 = vmatpush.msra.mxu0 %v79
  %2278 = vmatpush.msra.mxu0 %v77
  %2279 = vmatpush.msra.mxu0 %v75
  %2280 = vmatpush.msra.mxu0 %v73
  %2281 = vmatpush.msra.mxu0 %v71
  %2282 = vmatpush.msra.mxu0 %v69
  %2283 = vmatmul.f32.gmra.mxu0 %v2265
  %v2284 = vpop.f32.mrf.mxu0
  %v2285 = vadd.f32 0.0, %v2284
  %2286 = vdwg.mxu0
  %2287 = vmatpush.msra.mxu0 0.0
  %2288 = vmatpush.msra.mxu0 0.0
  %2289 = vmatpush.msra.mxu0 0.0
  %2290 = vmatpush.msra.mxu0 0.0
  %2291 = vmatpush.msra.mxu0 0.0
  %2292 = vmatpush.msra.mxu0 0.0
  %2293 = vmatpush.msra.mxu0 0.0
  %2294 = vmatpush.msra.mxu0 0.0
  %2295 = vmatpush.msra.mxu0 %v84
  %2296 = vmatpush.msra.mxu0 %v82
  %2297 = vmatpush.msra.mxu0 %v80
  %2298 = vmatpush.msra.mxu0 %v78
  %2299 = vmatpush.msra.mxu0 %v76
  %2300 = vmatpush.msra.mxu0 %v74
  %2301 = vmatpush.msra.mxu0 %v72
  %2302 = vmatpush.msra.mxu0 %v70
  %2303 = vmatmul.f32.gmra.mxu0 %v2265
  %v2304 = vpop.f32.mrf.mxu0
  %v2305 = vadd.f32 0.0, %v2304
  %2306 = vdwg.mxu0
  %v2308 = vrot.slane %v2285, 3
  %v2309 = vrot.slane %v2285, 4
  %v2312 = vadd.f32 %v1583, %v2308
  %v2313 = vadd.f32 %v1586, %v2309
  %v2314 = vxor.u32 %v2312, 2147483648
  %v2315 = vxor.u32 %v2313, 2147483648
  %v2316 = vmul.f32 %v2314, 1.442695
  %v2317 = vpow.pop %v2316
  %v2318 = vmul.f32 %v2315, 1.442695
  %v2319 = vpow.pop %v2318
  %v2320 = vadd.f32 %v2317, 1.0
  %v2321 = vadd.f32 %v2319, 1.0
  %v2322 = vrcp.pop %v2320
  %v2323 = vmul.f32 %v2320, %v2322
  %v2324 = vsub.f32 1.0, %v2323
  %v2325 = vmul.f32 %v2322, %v2324
  %v2326 = vadd.f32 %v2322, %v2325
  %vm2327 = vweird.f32 %v2320
  %vm2328 = vweird.f32 %v2322
  %vm2329 = vmor %vm2327, %vm2328
  %v2330 = vsel %vm2329, %v2322, %v2326
  %v2331 = vand.u32 2147483647, %v2320
  %vm2332 = vcmp.eq.f32.partialorder %v2331, 8.507059e+37
  %v2333 = vand.u32 %v2320, 2147483648
  %v2334 = vor.u32 1.1754944e-38, %v2333
  %v2335 = vsel %vm2332, %v2334, %v2330
  %v2336 = vmul.f32 1.0, %v2335
  %v2337 = vrcp.pop %v2321
  %v2338 = vmul.f32 %v2321, %v2337
  %v2339 = vsub.f32 1.0, %v2338
  %v2340 = vmul.f32 %v2337, %v2339
  %v2341 = vadd.f32 %v2337, %v2340
  %vm2342 = vweird.f32 %v2321
  %vm2343 = vweird.f32 %v2337
  %vm2344 = vmor %vm2342, %vm2343
  %v2345 = vsel %vm2344, %v2337, %v2341
  %v2346 = vand.u32 2147483647, %v2321
  %vm2347 = vcmp.eq.f32.partialorder %v2346, 8.507059e+37
  %v2348 = vand.u32 %v2321, 2147483648
  %v2349 = vor.u32 1.1754944e-38, %v2348
  %v2350 = vsel %vm2347, %v2349, %v2345
  %v2351 = vmul.f32 1.0, %v2350
  %v2352 = vadd.f32 %v2305, %v100
  %v2354 = vrot.slane %v2352, 3
  %v2355 = vrot.slane %v2352, 4
  %v2358 = vmul.f32 %v2336, %v2354
  %v2359 = vmul.f32 %v2351, %v2355
  %v2360 = vadd.f32 %v1606, %v2358
  %v2361 = vadd.f32 %v1609, %v2359
  %v2362 = vtanh.pop %v2360
  %v2363 = vtanh.pop %v2361
  %v2366 = vrot.slane %v2362, 1
  %v2367 = vrot.slane %v2363, 1
  %v2370 = vsub.f32 %v2258, %v2366
  %v2371 = vsub.f32 %v2259, %v2367
  %v2374 = vrot.slane %v2370, 7
  %v2375 = vrot.slane %v2371, 7
  %2376 = vrot.lane.b32.xlu0 %v2374, 64
  %v2377 = vpop.permute.xlu0 %2376
  %2378 = vrot.lane.b32.xlu0 %v2375, 64
  %v2379 = vpop.permute.xlu0 %2378
  %v2382 = vmul.f32 %v2336, %v2377
  %v2383 = vmul.f32 %v2351, %v2379
  %2386 = vrot.lane.b32.xlu0 %v2382, 64
  %v2387 = vpop.permute.xlu0 %2386
  %2388 = vrot.lane.b32.xlu0 %v2383, 64
  %v2389 = vpop.permute.xlu0 %2388
  %v2392 = vadd.f32 %v2362, %v2387
  %v2393 = vadd.f32 %v2363, %v2389
  %v2396 = vrot.slane %v2392, 5
  %v2397 = vrot.slane %v2393, 4
  %v2398 = vsel %vm109, %v2397, %v2396
  %v2399 = vsel %vm336, %v2398, 0
  %2401 = vmatpush.msra.mxu0 0.0
  %2402 = vmatpush.msra.mxu0 0.0
  %2403 = vmatpush.msra.mxu0 0.0
  %2404 = vmatpush.msra.mxu0 0.0
  %2405 = vmatpush.msra.mxu0 0.0
  %2406 = vmatpush.msra.mxu0 0.0
  %2407 = vmatpush.msra.mxu0 0.0
  %2408 = vmatpush.msra.mxu0 0.0
  %2409 = vmatpush.msra.mxu0 %v83
  %2410 = vmatpush.msra.mxu0 %v81
  %2411 = vmatpush.msra.mxu0 %v79
  %2412 = vmatpush.msra.mxu0 %v77
  %2413 = vmatpush.msra.mxu0 %v75
  %2414 = vmatpush.msra.mxu0 %v73
  %2415 = vmatpush.msra.mxu0 %v71
  %2416 = vmatpush.msra.mxu0 %v69
  %2417 = vmatmul.f32.gmra.mxu0 %v2399
  %v2418 = vpop.f32.mrf.mxu0
  %v2419 = vadd.f32 0.0, %v2418
  %2420 = vdwg.mxu0
  %2421 = vmatpush.msra.mxu0 0.0
  %2422 = vmatpush.msra.mxu0 0.0
  %2423 = vmatpush.msra.mxu0 0.0
  %2424 = vmatpush.msra.mxu0 0.0
  %2425 = vmatpush.msra.mxu0 0.0
  %2426 = vmatpush.msra.mxu0 0.0
  %2427 = vmatpush.msra.mxu0 0.0
  %2428 = vmatpush.msra.mxu0 0.0
  %2429 = vmatpush.msra.mxu0 %v84
  %2430 = vmatpush.msra.mxu0 %v82
  %2431 = vmatpush.msra.mxu0 %v80
  %2432 = vmatpush.msra.mxu0 %v78
  %2433 = vmatpush.msra.mxu0 %v76
  %2434 = vmatpush.msra.mxu0 %v74
  %2435 = vmatpush.msra.mxu0 %v72
  %2436 = vmatpush.msra.mxu0 %v70
  %2437 = vmatmul.f32.gmra.mxu0 %v2399
  %v2438 = vpop.f32.mrf.mxu0
  %v2439 = vadd.f32 0.0, %v2438
  %2440 = vdwg.mxu0
  %v2442 = vrot.slane %v2419, 2
  %v2443 = vrot.slane %v2419, 3
  %v2446 = vadd.f32 %v1583, %v2442
  %v2447 = vadd.f32 %v1586, %v2443
  %v2448 = vxor.u32 %v2446, 2147483648
  %v2449 = vxor.u32 %v2447, 2147483648
  %v2450 = vmul.f32 %v2448, 1.442695
  %v2451 = vpow.pop %v2450
  %v2452 = vmul.f32 %v2449, 1.442695
  %v2453 = vpow.pop %v2452
  %v2454 = vadd.f32 %v2451, 1.0
  %v2455 = vadd.f32 %v2453, 1.0
  %v2456 = vrcp.pop %v2454
  %v2457 = vmul.f32 %v2454, %v2456
  %v2458 = vsub.f32 1.0, %v2457
  %v2459 = vmul.f32 %v2456, %v2458
  %v2460 = vadd.f32 %v2456, %v2459
  %vm2461 = vweird.f32 %v2454
  %vm2462 = vweird.f32 %v2456
  %vm2463 = vmor %vm2461, %vm2462
  %v2464 = vsel %vm2463, %v2456, %v2460
  %v2465 = vand.u32 2147483647, %v2454
  %vm2466 = vcmp.eq.f32.partialorder %v2465, 8.507059e+37
  %v2467 = vand.u32 %v2454, 2147483648
  %v2468 = vor.u32 1.1754944e-38, %v2467
  %v2469 = vsel %vm2466, %v2468, %v2464
  %v2470 = vmul.f32 1.0, %v2469
  %v2471 = vrcp.pop %v2455
  %v2472 = vmul.f32 %v2455, %v2471
  %v2473 = vsub.f32 1.0, %v2472
  %v2474 = vmul.f32 %v2471, %v2473
  %v2475 = vadd.f32 %v2471, %v2474
  %vm2476 = vweird.f32 %v2455
  %vm2477 = vweird.f32 %v2471
  %vm2478 = vmor %vm2476, %vm2477
  %v2479 = vsel %vm2478, %v2471, %v2475
  %v2480 = vand.u32 2147483647, %v2455
  %vm2481 = vcmp.eq.f32.partialorder %v2480, 8.507059e+37
  %v2482 = vand.u32 %v2455, 2147483648
  %v2483 = vor.u32 1.1754944e-38, %v2482
  %v2484 = vsel %vm2481, %v2483, %v2479
  %v2485 = vmul.f32 1.0, %v2484
  %v2486 = vadd.f32 %v2439, %v100
  %v2488 = vrot.slane %v2486, 2
  %v2489 = vrot.slane %v2486, 3
  %v2492 = vmul.f32 %v2470, %v2488
  %v2493 = vmul.f32 %v2485, %v2489
  %v2494 = vadd.f32 %v1606, %v2492
  %v2495 = vadd.f32 %v1609, %v2493
  %v2496 = vtanh.pop %v2494
  %v2497 = vtanh.pop %v2495
  %v2500 = vrot.slane %v2496, 1
  %v2501 = vrot.slane %v2497, 1
  %v2504 = vsub.f32 %v2392, %v2500
  %v2505 = vsub.f32 %v2393, %v2501
  %v2508 = vrot.slane %v2504, 7
  %v2509 = vrot.slane %v2505, 7
  %2510 = vrot.lane.b32.xlu0 %v2508, 64
  %v2511 = vpop.permute.xlu0 %2510
  %2512 = vrot.lane.b32.xlu0 %v2509, 64
  %v2513 = vpop.permute.xlu0 %2512
  %v2516 = vmul.f32 %v2470, %v2511
  %v2517 = vmul.f32 %v2485, %v2513
  %2520 = vrot.lane.b32.xlu0 %v2516, 64
  %v2521 = vpop.permute.xlu0 %2520
  %2522 = vrot.lane.b32.xlu0 %v2517, 64
  %v2523 = vpop.permute.xlu0 %2522
  %v2526 = vadd.f32 %v2496, %v2521
  %v2527 = vadd.f32 %v2497, %v2523
  %v2530 = vrot.slane %v2526, 6
  %v2531 = vrot.slane %v2527, 5
  %v2532 = vsel %vm109, %v2531, %v2530
  %v2533 = vsel %vm336, %v2532, 0
  %2535 = vmatpush.msra.mxu0 0.0
  %2536 = vmatpush.msra.mxu0 0.0
  %2537 = vmatpush.msra.mxu0 0.0
  %2538 = vmatpush.msra.mxu0 0.0
  %2539 = vmatpush.msra.mxu0 0.0
  %2540 = vmatpush.msra.mxu0 0.0
  %2541 = vmatpush.msra.mxu0 0.0
  %2542 = vmatpush.msra.mxu0 0.0
  %2543 = vmatpush.msra.mxu0 %v83
  %2544 = vmatpush.msra.mxu0 %v81
  %2545 = vmatpush.msra.mxu0 %v79
  %2546 = vmatpush.msra.mxu0 %v77
  %2547 = vmatpush.msra.mxu0 %v75
  %2548 = vmatpush.msra.mxu0 %v73
  %2549 = vmatpush.msra.mxu0 %v71
  %2550 = vmatpush.msra.mxu0 %v69
  %2551 = vmatmul.f32.gmra.mxu0 %v2533
  %v2552 = vpop.f32.mrf.mxu0
  %v2553 = vadd.f32 0.0, %v2552
  %2554 = vdwg.mxu0
  %2555 = vmatpush.msra.mxu0 0.0
  %2556 = vmatpush.msra.mxu0 0.0
  %2557 = vmatpush.msra.mxu0 0.0
  %2558 = vmatpush.msra.mxu0 0.0
  %2559 = vmatpush.msra.mxu0 0.0
  %2560 = vmatpush.msra.mxu0 0.0
  %2561 = vmatpush.msra.mxu0 0.0
  %2562 = vmatpush.msra.mxu0 0.0
  %2563 = vmatpush.msra.mxu0 %v84
  %2564 = vmatpush.msra.mxu0 %v82
  %2565 = vmatpush.msra.mxu0 %v80
  %2566 = vmatpush.msra.mxu0 %v78
  %2567 = vmatpush.msra.mxu0 %v76
  %2568 = vmatpush.msra.mxu0 %v74
  %2569 = vmatpush.msra.mxu0 %v72
  %2570 = vmatpush.msra.mxu0 %v70
  %2571 = vmatmul.f32.gmra.mxu0 %v2533
  %v2572 = vpop.f32.mrf.mxu0
  %v2573 = vadd.f32 0.0, %v2572
  %2574 = vdwg.mxu0
  %v2576 = vrot.slane %v2553, 1
  %v2577 = vrot.slane %v2553, 2
  %v2580 = vadd.f32 %v1583, %v2576
  %v2581 = vadd.f32 %v1586, %v2577
  %v2582 = vxor.u32 %v2580, 2147483648
  %v2583 = vxor.u32 %v2581, 2147483648
  %v2584 = vmul.f32 %v2582, 1.442695
  %v2585 = vpow.pop %v2584
  %v2586 = vmul.f32 %v2583, 1.442695
  %v2587 = vpow.pop %v2586
  %v2588 = vadd.f32 %v2585, 1.0
  %v2589 = vadd.f32 %v2587, 1.0
  %v2590 = vrcp.pop %v2588
  %v2591 = vmul.f32 %v2588, %v2590
  %v2592 = vsub.f32 1.0, %v2591
  %v2593 = vmul.f32 %v2590, %v2592
  %v2594 = vadd.f32 %v2590, %v2593
  %vm2595 = vweird.f32 %v2588
  %vm2596 = vweird.f32 %v2590
  %vm2597 = vmor %vm2595, %vm2596
  %v2598 = vsel %vm2597, %v2590, %v2594
  %v2599 = vand.u32 2147483647, %v2588
  %vm2600 = vcmp.eq.f32.partialorder %v2599, 8.507059e+37
  %v2601 = vand.u32 %v2588, 2147483648
  %v2602 = vor.u32 1.1754944e-38, %v2601
  %v2603 = vsel %vm2600, %v2602, %v2598
  %v2604 = vmul.f32 1.0, %v2603
  %v2605 = vrcp.pop %v2589
  %v2606 = vmul.f32 %v2589, %v2605
  %v2607 = vsub.f32 1.0, %v2606
  %v2608 = vmul.f32 %v2605, %v2607
  %v2609 = vadd.f32 %v2605, %v2608
  %vm2610 = vweird.f32 %v2589
  %vm2611 = vweird.f32 %v2605
  %vm2612 = vmor %vm2610, %vm2611
  %v2613 = vsel %vm2612, %v2605, %v2609
  %v2614 = vand.u32 2147483647, %v2589
  %vm2615 = vcmp.eq.f32.partialorder %v2614, 8.507059e+37
  %v2616 = vand.u32 %v2589, 2147483648
  %v2617 = vor.u32 1.1754944e-38, %v2616
  %v2618 = vsel %vm2615, %v2617, %v2613
  %v2619 = vmul.f32 1.0, %v2618
  %v2620 = vadd.f32 %v2573, %v100
  %v2622 = vrot.slane %v2620, 1
  %v2623 = vrot.slane %v2620, 2
  %v2626 = vmul.f32 %v2604, %v2622
  %v2627 = vmul.f32 %v2619, %v2623
  %v2628 = vadd.f32 %v1606, %v2626
  %v2629 = vadd.f32 %v1609, %v2627
  %v2630 = vtanh.pop %v2628
  %v2631 = vtanh.pop %v2629
  %v2634 = vrot.slane %v2630, 1
  %v2635 = vrot.slane %v2631, 1
  %v2638 = vsub.f32 %v2526, %v2634
  %v2639 = vsub.f32 %v2527, %v2635
  %v2642 = vrot.slane %v2638, 7
  %v2643 = vrot.slane %v2639, 7
  %2644 = vrot.lane.b32.xlu0 %v2642, 64
  %v2645 = vpop.permute.xlu0 %2644
  %2646 = vrot.lane.b32.xlu0 %v2643, 64
  %v2647 = vpop.permute.xlu0 %2646
  %v2650 = vmul.f32 %v2604, %v2645
  %v2651 = vmul.f32 %v2619, %v2647
  %2654 = vrot.lane.b32.xlu0 %v2650, 64
  %v2655 = vpop.permute.xlu0 %2654
  %2656 = vrot.lane.b32.xlu0 %v2651, 64
  %v2657 = vpop.permute.xlu0 %2656
  %v2660 = vadd.f32 %v2630, %v2655
  %v2661 = vadd.f32 %v2631, %v2657
  %v2664 = vrot.slane %v2660, 7
  %v2665 = vrot.slane %v2661, 6
  %v2666 = vsel %vm109, %v2665, %v2664
  %v2667 = vsel %vm336, %v2666, 0
  %2669 = vmatpush.msra.mxu0 0.0
  %2670 = vmatpush.msra.mxu0 0.0
  %2671 = vmatpush.msra.mxu0 0.0
  %2672 = vmatpush.msra.mxu0 0.0
  %2673 = vmatpush.msra.mxu0 0.0
  %2674 = vmatpush.msra.mxu0 0.0
  %2675 = vmatpush.msra.mxu0 0.0
  %2676 = vmatpush.msra.mxu0 0.0
  %2677 = vmatpush.msra.mxu0 %v92
  %2678 = vmatpush.msra.mxu0 %v91
  %2679 = vmatpush.msra.mxu0 %v90
  %2680 = vmatpush.msra.mxu0 %v89
  %2681 = vmatpush.msra.mxu0 %v88
  %2682 = vmatpush.msra.mxu0 %v87
  %2683 = vmatpush.msra.mxu0 %v86
  %2684 = vmatpush.msra.mxu0 %v85
  %2685 = vmatmul.f32.gmra.mxu0 %v2667
  %v2686 = vpop.f32.mrf.mxu0
  %v2687 = vadd.f32 %v101, %v2686
  %2688 = vdwg.mxu0
  %v2689 = vsel %vm118, %v11, 0
  %v2691 = vsel %vm118, %v12, 0
  %2693 = vmatpush.msra.mxu0 0.0
  %2694 = vmatpush.msra.mxu0 0.0
  %2695 = vmatpush.msra.mxu0 0.0
  %2696 = vmatpush.msra.mxu0 0.0
  %2697 = vmatpush.msra.mxu0 0.0
  %2698 = vmatpush.msra.mxu0 0.0
  %2699 = vmatpush.msra.mxu0 0.0
  %2700 = vmatpush.msra.mxu0 0.0
  %2701 = vmatpush.msra.mxu0 0.0
  %2702 = vmatpush.msra.mxu0 0.0
  %2703 = vmatpush.msra.mxu0 0.0
  %2704 = vmatpush.msra.mxu0 0.0
  %2705 = vmatpush.msra.mxu0 0.0
  %2706 = vmatpush.msra.mxu0 0.0
  %2707 = vmatpush.msra.mxu0 %v94
  %2708 = vmatpush.msra.mxu0 %v93
  %2709 = vmatmul.f32.gmra.mxu0 %v2689
  %v2710 = vpop.f32.mrf.mxu0
  %v2711 = vadd.f32 %v102, %v2710
  %2712 = vmatmul.f32.gmra.mxu0 %v2691
  %v2713 = vpop.f32.mrf.mxu0
  %v2714 = vadd.f32 %v102, %v2713
  %2715 = vdwg.mxu0
  %v2717 = vrot.slane %v2687, 1
  %v2718 = vperm.slane %v2687, 0
  %v2719 = vperm.slane %v2717, 0
  %v2722 = vadd.f32 %v2718, %v2711
  %v2723 = vadd.f32 %v2719, %v2714
  %v2724 = vtanh.pop %v2722
  %v2725 = vtanh.pop %v2723
  %v2726 = vmul.f32 %v2724, %v103
  %v2727 = vmul.f32 %v2725, %v103
  %v2728 = vsel %vm336, %v2726, 0.0
  %2729 = vadd.xlane.f32.xlu0 %v2728
  %v2730 = vpop.xlane.xlu0 %2729
  %v2731 = vsel %vm336, %v2727, 0.0
  %2732 = vadd.xlane.f32.xlu0 %v2731
  %v2733 = vpop.xlane.xlu0 %2732
  %v2734 = vadd.f32 %v2730, %v105
  %v2735 = vadd.f32 %v2733, %v105
  %vm2736 = vcmask 7168
  %v2737 = vsel %vm2736, %v2734, -inf
  %v2738 = vrot.slane %v2737, 4
  %v2739 = vmax.f32 %v2737, %v2738
  %v2740 = vrot.slane %v2739, 2
  %v2741 = vmax.f32 %v2739, %v2740
  %v2742 = vrot.slane %v2741, 1
  %v2743 = vmax.f32 %v2741, %v2742
  %v2744 = vsel %vm2736, %v2735, -inf
  %v2745 = vrot.slane %v2744, 4
  %v2746 = vmax.f32 %v2744, %v2745
  %v2747 = vrot.slane %v2746, 2
  %v2748 = vmax.f32 %v2746, %v2747
  %v2749 = vrot.slane %v2748, 1
  %v2750 = vmax.f32 %v2748, %v2749
  %v2751 = vsub.f32 %v2734, %v2743
  %v2752 = vsub.f32 %v2735, %v2750
  %v2753 = vmul.f32 %v2751, 1.442695
  %v2754 = vpow.pop %v2753
  %v2755 = vmul.f32 %v2752, 1.442695
  %v2756 = vpow.pop %v2755
  %v2757 = vsel %vm2736, %v2754, 0.0
  %v2758 = vrot.slane %v2757, 4
  %v2759 = vadd.f32 %v2757, %v2758
  %v2760 = vrot.slane %v2759, 2
  %v2761 = vadd.f32 %v2759, %v2760
  %v2762 = vrot.slane %v2761, 1
  %v2763 = vadd.f32 %v2761, %v2762
  %v2764 = vsel %vm2736, %v2756, 0.0
  %v2765 = vrot.slane %v2764, 4
  %v2766 = vadd.f32 %v2764, %v2765
  %v2767 = vrot.slane %v2766, 2
  %v2768 = vadd.f32 %v2766, %v2767
  %v2769 = vrot.slane %v2768, 1
  %v2770 = vadd.f32 %v2768, %v2769
  %v2771 = vrcp.pop %v2763
  %v2772 = vmul.f32 %v2763, %v2771
  %v2773 = vsub.f32 1.0, %v2772
  %v2774 = vmul.f32 %v2771, %v2773
  %v2775 = vadd.f32 %v2771, %v2774
  %vm2776 = vweird.f32 %v2763
  %vm2777 = vweird.f32 %v2771
  %vm2778 = vmor %vm2776, %vm2777
  %v2779 = vsel %vm2778, %v2771, %v2775
  %v2780 = vand.u32 2147483647, %v2763
  %vm2781 = vcmp.eq.f32.partialorder %v2780, 8.507059e+37
  %v2782 = vand.u32 %v2763, 2147483648
  %v2783 = vor.u32 1.1754944e-38, %v2782
  %v2784 = vsel %vm2781, %v2783, %v2779
  %v2785 = vmul.f32 %v2754, %v2784
  %v2786 = vrcp.pop %v2770
  %v2787 = vmul.f32 %v2770, %v2786
  %v2788 = vsub.f32 1.0, %v2787
  %v2789 = vmul.f32 %v2786, %v2788
  %v2790 = vadd.f32 %v2786, %v2789
  %vm2791 = vweird.f32 %v2770
  %vm2792 = vweird.f32 %v2786
  %vm2793 = vmor %vm2791, %vm2792
  %v2794 = vsel %vm2793, %v2786, %v2790
  %v2795 = vand.u32 2147483647, %v2770
  %vm2796 = vcmp.eq.f32.partialorder %v2795, 8.507059e+37
  %v2797 = vand.u32 %v2770, 2147483648
  %v2798 = vor.u32 1.1754944e-38, %v2797
  %v2799 = vsel %vm2796, %v2798, %v2794
  %v2800 = vmul.f32 %v2756, %v2799
  %2802 = vset.pattern.permute.xlu0 0
  %2803 = vperm.xlu0 %2802, %v2785
  %v2804 = vpop.permute.xlu0 %2803
  %2807 = vset.pattern.permute.xlu0 0
  %2808 = vperm.xlu0 %2807, %v2800
  %v2809 = vpop.permute.xlu0 %2808
  %v2811 = vmul.f32 %v2804, %v11
  %v2812 = vmul.f32 %v2809, %v12
  %v2813 = vsel %vm118, %v2811, 0.0
  %v2814 = vrot.slane %v2813, 4
  %v2815 = vadd.f32 %v2813, %v2814
  %v2816 = vrot.slane %v2815, 2
  %v2817 = vadd.f32 %v2815, %v2816
  %v2818 = vrot.slane %v2817, 1
  %v2819 = vadd.f32 %v2817, %v2818
  %v2820 = vsel %vm118, %v2812, 0.0
  %v2821 = vrot.slane %v2820, 4
  %v2822 = vadd.f32 %v2820, %v2821
  %v2823 = vrot.slane %v2822, 2
  %v2824 = vadd.f32 %v2822, %v2823
  %v2825 = vrot.slane %v2824, 1
  %v2826 = vadd.f32 %v2824, %v2825
  %v2827 = vmul.f32 %v2819, %v104
  %v2828 = vmul.f32 %v2826, %v104
  %v2831 = vrot.slane %v2828, 7
  %v2832 = vsel %vm109, %v2831, %v2827
  %vm2834 = vcmask 123904
  %v2835 = vsel %vm2834, %v2832, 0.0
  %2836 = vadd.xlane.f32.xlu0 %v2835
  %v2837 = vpop.xlane.xlu0 %2836
  %2839 = vrot.lane.b32.xlu0 %v104, 112
  %v2840 = vpop.permute.xlu0 %2839
  %v2842 = vmul.f32 %v2660, %v2840
  %v2843 = vmul.f32 %v2661, %v2840
  %v2846 = vrot.slane %v2843, 7
  %vm2849 = vcmask 523271
  %v2850 = vsel %vm2849, %v2842, 0.0
  %2851 = vadd.xlane.f32.xlu0 %v2850
  %v2852 = vpop.xlane.xlu0 %2851
  %vm2853 = vcmask 516096
  %v2854 = vsel %vm2853, %v2846, 0.0
  %2855 = vadd.xlane.f32.xlu0 %v2854
  %v2856 = vpop.xlane.xlu0 %2855
  %v2859 = vrot.slane %v2852, 7
  %v2860 = vrot.slane %v2856, 7
  %v2861 = vsel %vm257, %v2859, %v2860
  %v2863 = vadd.f32 %v2837, %v2861
  %2865 = vrot.lane.b32.xlu0 %v105, 127
  %v2866 = vpop.permute.xlu0 %2865
  %v2868 = vadd.f32 %v2863, %v2866
  %vm2869 = vcmask 1024
  %2870 = vst.msk [vmem:[%s2] sm:$0x3] %vm2869, %v2868
  // Predicated region
  $region10: #{tpu_custom_call.1} parent=0 // pred_check
    _
  $region11: #{tpu_custom_call.1} parent=0 // pred_check_branch
    %2872 = sbr.rel (0) target = $region13
  $region12: #{tpu_custom_call.1} parent=0 // pred_region
    _
  $region13: #{tpu_custom_call.1} parent=0 // pred_fallthru
    _
  // Predicated region
  $region14: #{tpu_custom_call.1} parent=0 // pred_check
    _
  $region15: #{tpu_custom_call.1} parent=0 // pred_check_branch
    %2874 = sbr.rel (0) target = $region17
  $region16: #{tpu_custom_call.1} parent=0 // pred_region
    _
  $region17: #{tpu_custom_call.1} parent=0 // pred_fallthru
    _

</llo_original>
